<compile_context>
chip_gen: v7x
topology: tpu7x:2x2x1
jax: 0.10.0
libtpu: 0.0.40
codegen_flags: <defaults>
</compile_context>

<pallas_src>
import functools

import jax
import jax.numpy as jnp
import numpy as np
from jax import lax
from jax.experimental import pallas as pl
from jax.experimental.pallas import tpu as pltpu

VMEM_SPEC = pl.BlockSpec(memory_space=pltpu.MemorySpace.VMEM)


def _sigmoid(x):
    # sigmoid(x) = 0.5 * (1 + tanh(x/2)): single EUP transcendental, no VALU divide.
    return 0.5 * jnp.tanh(0.5 * x) + 0.5


# ----------------------------------------------------------------------------
# One bidirectional LSTM layer (both directions fused) over a time-major flat
# input of shape (T*B, D); row block t holds x_t for all batch rows.
#   out_ref is not None : write the full hidden sequence as (T*B, 2H) rows
#                         [h_fwd(t) | h_bwd(t)]  (input of the next layer).
#   out_ref is None     : last layer -> only accumulate sum_t (h_fwd + h_bwd),
#                         returned as (B, H) (fused time/direction reduce).
# ----------------------------------------------------------------------------
def _bilstm_layer(flat_in, wih_f, whh_f, b_f, wih_b, whh_b, b_b, out_ref, *, T, B, H):
    f32 = jnp.float32
    # Hoisted input projections: one big matmul per direction instead of T tiny
    # ones inside the serial recurrence.
    ih_f = jnp.dot(flat_in, wih_f, preferred_element_type=f32) + b_f   # (T*B, 4H)
    ih_b = jnp.dot(flat_in, wih_b, preferred_element_type=f32) + b_b   # (T*B, 4H)

    zero = jnp.zeros((B, H), f32)
    h_f, c_f, h_b, c_b = zero, zero, zero, zero
    acc = zero

    for s in range(T):                      # static -> fully unrolled
        rt = T - 1 - s                      # time index processed by the bwd pass
        # Recurrent projections: two independent matmuls, back-to-back on the MXU.
        g_f = ih_f[s * B:(s + 1) * B, :] + jnp.dot(h_f, whh_f, preferred_element_type=f32)
        g_b = ih_b[rt * B:(rt + 1) * B, :] + jnp.dot(h_b, whh_b, preferred_element_type=f32)
        # PyTorch gate order: i, f, g, o.
        i_f = _sigmoid(g_f[:, 0 * H:1 * H]); i_b = _sigmoid(g_b[:, 0 * H:1 * H])
        f_f = _sigmoid(g_f[:, 1 * H:2 * H]); f_b = _sigmoid(g_b[:, 1 * H:2 * H])
        gg_f = jnp.tanh(g_f[:, 2 * H:3 * H]); gg_b = jnp.tanh(g_b[:, 2 * H:3 * H])
        o_f = _sigmoid(g_f[:, 3 * H:4 * H]); o_b = _sigmoid(g_b[:, 3 * H:4 * H])
        c_f = f_f * c_f + i_f * gg_f
        c_b = f_b * c_b + i_b * gg_b
        h_f = o_f * jnp.tanh(c_f)
        h_b = o_b * jnp.tanh(c_b)
        if out_ref is None:
            acc = acc + h_f + h_b                              # fused reduce
        else:
            out_ref[s * B:(s + 1) * B, 0:H] = h_f              # fwd hidden at time s
            out_ref[rt * B:(rt + 1) * B, H:2 * H] = h_b        # bwd hidden at time rt
    return acc


# ----------------------------------------------------------------------------
# Fully fused kernel: pre-MLP + stacked biLSTM + mean reduce + post-MLP + sigmoid
# ----------------------------------------------------------------------------
def _bilstm_fused_kernel(*refs, T, B, Din, H, num_layers):
    n_in = 5 + 6 * num_layers + 4
    x_ref = refs[0]
    pre_w1, pre_b1, pre_w2, pre_b2 = (r[...] for r in refs[1:5])
    lstm_w = [r[...] for r in refs[5:5 + 6 * num_layers]]        # hoisted weight loads
    post_w1, post_b1, post_w2, post_b2 = (r[...] for r in refs[5 + 6 * num_layers:n_in])
    o_ref = refs[n_in]
    seq_sc = refs[n_in + 1]                                      # (T*B, 2H) VMEM scratch

    f32 = jnp.float32

    # ---- pre_lstm: Linear -> ReLU -> Linear ---------------------------------
    x = x_ref[...]                                               # (T*B, Din), time-major rows
    if Din == 1:
        h1 = x * pre_w1                                          # K=1 matmul as VPU broadcast mul
    else:
        h1 = jnp.dot(x, pre_w1, preferred_element_type=f32)
    h1 = jnp.maximum(h1 + pre_b1, 0.0)
    flat = jnp.dot(h1, pre_w2, preferred_element_type=f32) + pre_b2   # (T*B, H)

    # ---- stacked bidirectional LSTM -----------------------------------------
    acc = None
    for l in range(num_layers):
        wih_f, whh_f, b_f, wih_b, whh_b, b_b = lstm_w[6 * l:6 * l + 6]
        last = l == num_layers - 1
        acc = _bilstm_layer(flat, wih_f, whh_f, b_f, wih_b, whh_b, b_b,
                            None if last else seq_sc, T=T, B=B, H=H)
        if not last:
            flat = seq_sc[...]                                   # (T*B, 2H) next-layer input

    # ---- mean over (time, direction) + post_lstm + Sigmoid ------------------
    mean_h = acc * (1.0 / (2.0 * T))                             # (B, H)
    z = jnp.maximum(jnp.dot(mean_h, post_w1, preferred_element_type=f32) + post_b1, 0.0)
    logit = jnp.dot(z, post_w2, preferred_element_type=f32) + post_b2
    o_ref[...] = _sigmoid(logit)


# ----------------------------------------------------------------------------
# Public wrapper (batch_first input like PyTorch)
# ----------------------------------------------------------------------------
def bilstm_forward(x, params):
    B, T, Din = x.shape
    H = params["H"]
    num_layers = len(params["lstm"])

    # Time-major flat rows: row (t, b) = t*B + b (tiny transpose done by XLA once).
    x_tm = x.astype(jnp.float32).transpose(1, 0, 2).reshape(T * B, Din)

    args = [x_tm, params["pre_w1"], params["pre_b1"], params["pre_w2"], params["pre_b2"]]
    for layer in params["lstm"]:
        args.extend(layer["fwd"])
        args.extend(layer["bwd"])
    args.extend([params["post_w1"], params["post_b1"], params["post_w2"], params["post_b2"]])

    kernel = functools.partial(_bilstm_fused_kernel, T=T, B=B, Din=Din, H=H,
                               num_layers=num_layers)
    return pl.pallas_call(
        kernel,
        out_shape=jax.ShapeDtypeStruct((B, 1), jnp.float32),
        in_specs=[VMEM_SPEC] * len(args),
        out_specs=VMEM_SPEC,
        scratch_shapes=[pltpu.VMEM((T * B, 2 * H), jnp.float32)],
    )(*args)
    # TODO(synk): on v7x the two LSTM directions / layers could be further split
    #             across the 2 TensorCores (pl.core_map); single-core here.


# ----------------------------------------------------------------------------
# Pure-JAX reference (same math) for correctness checking
# ----------------------------------------------------------------------------
def _lstm_dir_ref(x_tbd, w_ih, w_hh, b, reverse):
    T, B, _ = x_tbd.shape
    H = w_hh.shape[0]
    xs = x_tbd[::-1] if reverse else x_tbd

    def step(carry, x_t):
        h, c = carry
        gates = x_t @ w_ih + h @ w_hh + b
        i = jax.nn.sigmoid(gates[:, :H])
        f = jax.nn.sigmoid(gates[:, H:2 * H])
        g = jnp.tanh(gates[:, 2 * H:3 * H])
        o = jax.nn.sigmoid(gates[:, 3 * H:])
        c = f * c + i * g
        h = o * jnp.tanh(c)
        return (h, c), h

    init = (jnp.zeros((B, H), jnp.float32), jnp.zeros((B, H), jnp.float32))
    _, hs = lax.scan(step, init, xs)
    return hs[::-1] if reverse else hs


def bilstm_forward_ref(x, params):
    B, T, Din = x.shape
    H = params["H"]
    x2d = x.reshape(B * T, Din).astype(jnp.float32)
    h = jnp.maximum(x2d @ params["pre_w1"] + params["pre_b1"], 0.0)
    pre = h @ params["pre_w2"] + params["pre_b2"]
    layer_in = pre.reshape(B, T, H).transpose(1, 0, 2)
    for layer in params["lstm"]:
        fwd = _lstm_dir_ref(layer_in, *layer["fwd"], reverse=False)
        bwd = _lstm_dir_ref(layer_in, *layer["bwd"], reverse=True)
        layer_in = jnp.concatenate([fwd, bwd], axis=-1)
    m = jnp.mean(layer_in, axis=0)
    hm = 0.5 * (m[:, :H] + m[:, H:])
    z = jnp.maximum(hm @ params["post_w1"] + params["post_b1"], 0.0)
    return jax.nn.sigmoid(z @ params["post_w2"] + params["post_b2"])


# ----------------------------------------------------------------------------
# Deterministic synthetic parameters (mirrors nn.Module shapes; LSTM weights
# pre-transposed to (D, 4H)/(H, 4H), bias = b_ih + b_hh folded)
# ----------------------------------------------------------------------------
def init_params(key, dim_in=1, H=32, num_layers=2):
    keys = iter(jax.random.split(key, 32))
    s = 0.1

    def rnd(shape):
        return jax.random.normal(next(keys), shape, jnp.float32) * s

    p = {"H": H, "num_layers": num_layers}
    p["pre_w1"] = rnd((dim_in, H))
    p["pre_b1"] = rnd((1, H))
    p["pre_w2"] = rnd((H, H))
    p["pre_b2"] = rnd((1, H))
    p["lstm"] = []
    for l in range(num_layers):
        D = H if l == 0 else 2 * H
        layer = {}
        for d in ("fwd", "bwd"):
            layer[d] = (rnd((D, 4 * H)), rnd((H, 4 * H)), rnd((1, 4 * H)))
        p["lstm"].append(layer)
    p["post_w1"] = rnd((H, H))
    p["post_b1"] = rnd((1, H))
    p["post_w2"] = rnd((H, 1))
    p["post_b2"] = rnd((1, 1))
    return p


if __name__ == "__main__":
    B, T, DIM_IN, H, NUM_LAYERS = 2, 8, 1, 32, 2

    key = jax.random.PRNGKey(0)
    kx, kp = jax.random.split(key)
    x = jax.random.normal(kx, (B, T, DIM_IN), jnp.float32)
    params = init_params(kp, dim_in=DIM_IN, H=H, num_layers=NUM_LAYERS)

    out = bilstm_forward(x, params)
    out = jax.block_until_ready(out)

    ref = jax.block_until_ready(bilstm_forward_ref(x, params))
    assert out.shape == (B, 1), out.shape
    np.testing.assert_allclose(np.asarray(out), np.asarray(ref), rtol=1e-4, atol=1e-5)

    print("KERNEL_OK")
</pallas_src>

<mosaic_0001>
module attributes {stable_mosaic.version = 11 : i64} {
  func.func @_bilstm_fused_kernel(%arg0: memref<16x1xf32, #tpu.memory_space<vmem>>, %arg1: memref<1x32xf32, #tpu.memory_space<vmem>>, %arg2: memref<1x32xf32, #tpu.memory_space<vmem>>, %arg3: memref<32x32xf32, #tpu.memory_space<vmem>>, %arg4: memref<1x32xf32, #tpu.memory_space<vmem>>, %arg5: memref<32x128xf32, #tpu.memory_space<vmem>>, %arg6: memref<32x128xf32, #tpu.memory_space<vmem>>, %arg7: memref<1x128xf32, #tpu.memory_space<vmem>>, %arg8: memref<32x128xf32, #tpu.memory_space<vmem>>, %arg9: memref<32x128xf32, #tpu.memory_space<vmem>>, %arg10: memref<1x128xf32, #tpu.memory_space<vmem>>, %arg11: memref<64x128xf32, #tpu.memory_space<vmem>>, %arg12: memref<32x128xf32, #tpu.memory_space<vmem>>, %arg13: memref<1x128xf32, #tpu.memory_space<vmem>>, %arg14: memref<64x128xf32, #tpu.memory_space<vmem>>, %arg15: memref<32x128xf32, #tpu.memory_space<vmem>>, %arg16: memref<1x128xf32, #tpu.memory_space<vmem>>, %arg17: memref<32x32xf32, #tpu.memory_space<vmem>>, %arg18: memref<1x32xf32, #tpu.memory_space<vmem>>, %arg19: memref<32x1xf32, #tpu.memory_space<vmem>>, %arg20: memref<1x1xf32, #tpu.memory_space<vmem>>, %arg21: memref<2x1xf32, #tpu.memory_space<vmem>>, %arg22: memref<16x64xf32, #tpu.memory_space<vmem>>) attributes {dimension_semantics = [], scalar_prefetch = 0 : i64, scratch_operands = 1 : i64, tpu.core_type = #tpu.core_type<tc>} {
    %c0 = arith.constant 0 : index
    %c0_0 = arith.constant 0 : index
    %0 = vector.load %arg1[%c0, %c0_0] : memref<1x32xf32, #tpu.memory_space<vmem>>, vector<1x32xf32>
    %c0_1 = arith.constant 0 : index
    %c0_2 = arith.constant 0 : index
    %1 = vector.load %arg2[%c0_1, %c0_2] : memref<1x32xf32, #tpu.memory_space<vmem>>, vector<1x32xf32>
    %c0_3 = arith.constant 0 : index
    %c0_4 = arith.constant 0 : index
    %2 = vector.load %arg3[%c0_3, %c0_4] : memref<32x32xf32, #tpu.memory_space<vmem>>, vector<32x32xf32>
    %c0_5 = arith.constant 0 : index
    %c0_6 = arith.constant 0 : index
    %3 = vector.load %arg4[%c0_5, %c0_6] : memref<1x32xf32, #tpu.memory_space<vmem>>, vector<1x32xf32>
    %c0_7 = arith.constant 0 : index
    %c0_8 = arith.constant 0 : index
    %4 = vector.load %arg5[%c0_7, %c0_8] : memref<32x128xf32, #tpu.memory_space<vmem>>, vector<32x128xf32>
    %c0_9 = arith.constant 0 : index
    %c0_10 = arith.constant 0 : index
    %5 = vector.load %arg6[%c0_9, %c0_10] : memref<32x128xf32, #tpu.memory_space<vmem>>, vector<32x128xf32>
    %c0_11 = arith.constant 0 : index
    %c0_12 = arith.constant 0 : index
    %6 = vector.load %arg7[%c0_11, %c0_12] : memref<1x128xf32, #tpu.memory_space<vmem>>, vector<1x128xf32>
    %c0_13 = arith.constant 0 : index
    %c0_14 = arith.constant 0 : index
    %7 = vector.load %arg8[%c0_13, %c0_14] : memref<32x128xf32, #tpu.memory_space<vmem>>, vector<32x128xf32>
    %c0_15 = arith.constant 0 : index
    %c0_16 = arith.constant 0 : index
    %8 = vector.load %arg9[%c0_15, %c0_16] : memref<32x128xf32, #tpu.memory_space<vmem>>, vector<32x128xf32>
    %c0_17 = arith.constant 0 : index
    %c0_18 = arith.constant 0 : index
    %9 = vector.load %arg10[%c0_17, %c0_18] : memref<1x128xf32, #tpu.memory_space<vmem>>, vector<1x128xf32>
    %c0_19 = arith.constant 0 : index
    %c0_20 = arith.constant 0 : index
    %10 = vector.load %arg11[%c0_19, %c0_20] : memref<64x128xf32, #tpu.memory_space<vmem>>, vector<64x128xf32>
    %c0_21 = arith.constant 0 : index
    %c0_22 = arith.constant 0 : index
    %11 = vector.load %arg12[%c0_21, %c0_22] : memref<32x128xf32, #tpu.memory_space<vmem>>, vector<32x128xf32>
    %c0_23 = arith.constant 0 : index
    %c0_24 = arith.constant 0 : index
    %12 = vector.load %arg13[%c0_23, %c0_24] : memref<1x128xf32, #tpu.memory_space<vmem>>, vector<1x128xf32>
    %c0_25 = arith.constant 0 : index
    %c0_26 = arith.constant 0 : index
    %13 = vector.load %arg14[%c0_25, %c0_26] : memref<64x128xf32, #tpu.memory_space<vmem>>, vector<64x128xf32>
    %c0_27 = arith.constant 0 : index
    %c0_28 = arith.constant 0 : index
    %14 = vector.load %arg15[%c0_27, %c0_28] : memref<32x128xf32, #tpu.memory_space<vmem>>, vector<32x128xf32>
    %c0_29 = arith.constant 0 : index
    %c0_30 = arith.constant 0 : index
    %15 = vector.load %arg16[%c0_29, %c0_30] : memref<1x128xf32, #tpu.memory_space<vmem>>, vector<1x128xf32>
    %c0_31 = arith.constant 0 : index
    %c0_32 = arith.constant 0 : index
    %16 = vector.load %arg17[%c0_31, %c0_32] : memref<32x32xf32, #tpu.memory_space<vmem>>, vector<32x32xf32>
    %c0_33 = arith.constant 0 : index
    %c0_34 = arith.constant 0 : index
    %17 = vector.load %arg18[%c0_33, %c0_34] : memref<1x32xf32, #tpu.memory_space<vmem>>, vector<1x32xf32>
    %c0_35 = arith.constant 0 : index
    %c0_36 = arith.constant 0 : index
    %18 = vector.load %arg19[%c0_35, %c0_36] : memref<32x1xf32, #tpu.memory_space<vmem>>, vector<32x1xf32>
    %c0_37 = arith.constant 0 : index
    %c0_38 = arith.constant 0 : index
    %19 = vector.load %arg20[%c0_37, %c0_38] : memref<1x1xf32, #tpu.memory_space<vmem>>, vector<1x1xf32>
    %c0_39 = arith.constant 0 : index
    %c0_40 = arith.constant 0 : index
    %20 = vector.load %arg0[%c0_39, %c0_40] : memref<16x1xf32, #tpu.memory_space<vmem>>, vector<16x1xf32>
    %21 = vector.broadcast %20 : vector<16x1xf32> to vector<16x32xf32>
    %22 = vector.broadcast %0 : vector<1x32xf32> to vector<16x32xf32>
    %23 = arith.mulf %21, %22 : vector<16x32xf32>
    %24 = vector.broadcast %1 : vector<1x32xf32> to vector<16x32xf32>
    %25 = arith.addf %23, %24 : vector<16x32xf32>
    %cst = arith.constant 0.000000e+00 : f32
    %26 = vector.broadcast %cst : f32 to vector<16x32xf32>
    %27 = arith.maximumf %25, %26 : vector<16x32xf32>
    %cst_41 = arith.constant dense<0.000000e+00> : vector<16x32xf32>
    %28 = tpu.matmul %27, %2, %cst_41 {dimension_numbers = #tpu.dot_dimension_numbers<[1], [0], [0], [1], [0, 0, 1, 1], [], []>} : vector<16x32xf32>, vector<32x32xf32>, vector<16x32xf32> -> vector<16x32xf32>
    %29 = vector.broadcast %3 : vector<1x32xf32> to vector<16x32xf32>
    %30 = arith.addf %28, %29 : vector<16x32xf32>
    %cst_42 = arith.constant dense<0.000000e+00> : vector<16x128xf32>
    %31 = tpu.matmul %30, %4, %cst_42 {dimension_numbers = #tpu.dot_dimension_numbers<[1], [0], [0], [1], [0, 0, 1, 1], [], []>} : vector<16x32xf32>, vector<32x128xf32>, vector<16x128xf32> -> vector<16x128xf32>
    %32 = vector.broadcast %6 : vector<1x128xf32> to vector<16x128xf32>
    %33 = arith.addf %31, %32 : vector<16x128xf32>
    %cst_43 = arith.constant dense<0.000000e+00> : vector<16x128xf32>
    %34 = tpu.matmul %30, %7, %cst_43 {dimension_numbers = #tpu.dot_dimension_numbers<[1], [0], [0], [1], [0, 0, 1, 1], [], []>} : vector<16x32xf32>, vector<32x128xf32>, vector<16x128xf32> -> vector<16x128xf32>
    %35 = vector.broadcast %9 : vector<1x128xf32> to vector<16x128xf32>
    %36 = arith.addf %34, %35 : vector<16x128xf32>
    %cst_44 = arith.constant 0.000000e+00 : f32
    %37 = vector.broadcast %cst_44 : f32 to vector<2x32xf32>
    %38 = vector.extract_strided_slice %33 {offsets = [0, 0], sizes = [2, 128], strides = [1, 1]} : vector<16x128xf32> to vector<2x128xf32>
    %cst_45 = arith.constant dense<0.000000e+00> : vector<2x128xf32>
    %39 = tpu.matmul %37, %5, %cst_45 {dimension_numbers = #tpu.dot_dimension_numbers<[1], [0], [0], [1], [0, 0, 1, 1], [], []>} : vector<2x32xf32>, vector<32x128xf32>, vector<2x128xf32> -> vector<2x128xf32>
    %40 = arith.addf %38, %39 : vector<2x128xf32>
    %41 = vector.extract_strided_slice %36 {offsets = [14, 0], sizes = [2, 128], strides = [1, 1]} : vector<16x128xf32> to vector<2x128xf32>
    %cst_46 = arith.constant dense<0.000000e+00> : vector<2x128xf32>
    %42 = tpu.matmul %37, %8, %cst_46 {dimension_numbers = #tpu.dot_dimension_numbers<[1], [0], [0], [1], [0, 0, 1, 1], [], []>} : vector<2x32xf32>, vector<32x128xf32>, vector<2x128xf32> -> vector<2x128xf32>
    %43 = arith.addf %41, %42 : vector<2x128xf32>
    %44 = vector.extract_strided_slice %40 {offsets = [0, 0], sizes = [2, 32], strides = [1, 1]} : vector<2x128xf32> to vector<2x32xf32>
    %cst_47 = arith.constant 5.000000e-01 : f32
    %45 = vector.broadcast %cst_47 : f32 to vector<2x32xf32>
    %46 = arith.mulf %45, %44 : vector<2x32xf32>
    %47 = math.tanh %46 : vector<2x32xf32>
    %cst_48 = arith.constant 5.000000e-01 : f32
    %48 = vector.broadcast %cst_48 : f32 to vector<2x32xf32>
    %49 = arith.mulf %48, %47 : vector<2x32xf32>
    %cst_49 = arith.constant 5.000000e-01 : f32
    %50 = vector.broadcast %cst_49 : f32 to vector<2x32xf32>
    %51 = arith.addf %49, %50 : vector<2x32xf32>
    %52 = vector.extract_strided_slice %43 {offsets = [0, 0], sizes = [2, 32], strides = [1, 1]} : vector<2x128xf32> to vector<2x32xf32>
    %cst_50 = arith.constant 5.000000e-01 : f32
    %53 = vector.broadcast %cst_50 : f32 to vector<2x32xf32>
    %54 = arith.mulf %53, %52 : vector<2x32xf32>
    %55 = math.tanh %54 : vector<2x32xf32>
    %cst_51 = arith.constant 5.000000e-01 : f32
    %56 = vector.broadcast %cst_51 : f32 to vector<2x32xf32>
    %57 = arith.mulf %56, %55 : vector<2x32xf32>
    %cst_52 = arith.constant 5.000000e-01 : f32
    %58 = vector.broadcast %cst_52 : f32 to vector<2x32xf32>
    %59 = arith.addf %57, %58 : vector<2x32xf32>
    %60 = vector.extract_strided_slice %40 {offsets = [0, 32], sizes = [2, 32], strides = [1, 1]} : vector<2x128xf32> to vector<2x32xf32>
    %cst_53 = arith.constant 5.000000e-01 : f32
    %61 = vector.broadcast %cst_53 : f32 to vector<2x32xf32>
    %62 = arith.mulf %61, %60 : vector<2x32xf32>
    %63 = math.tanh %62 : vector<2x32xf32>
    %cst_54 = arith.constant 5.000000e-01 : f32
    %64 = vector.broadcast %cst_54 : f32 to vector<2x32xf32>
    %65 = arith.mulf %64, %63 : vector<2x32xf32>
    %cst_55 = arith.constant 5.000000e-01 : f32
    %66 = vector.broadcast %cst_55 : f32 to vector<2x32xf32>
    %67 = arith.addf %65, %66 : vector<2x32xf32>
    %68 = vector.extract_strided_slice %43 {offsets = [0, 32], sizes = [2, 32], strides = [1, 1]} : vector<2x128xf32> to vector<2x32xf32>
    %cst_56 = arith.constant 5.000000e-01 : f32
    %69 = vector.broadcast %cst_56 : f32 to vector<2x32xf32>
    %70 = arith.mulf %69, %68 : vector<2x32xf32>
    %71 = math.tanh %70 : vector<2x32xf32>
    %cst_57 = arith.constant 5.000000e-01 : f32
    %72 = vector.broadcast %cst_57 : f32 to vector<2x32xf32>
    %73 = arith.mulf %72, %71 : vector<2x32xf32>
    %cst_58 = arith.constant 5.000000e-01 : f32
    %74 = vector.broadcast %cst_58 : f32 to vector<2x32xf32>
    %75 = arith.addf %73, %74 : vector<2x32xf32>
    %76 = vector.extract_strided_slice %40 {offsets = [0, 64], sizes = [2, 32], strides = [1, 1]} : vector<2x128xf32> to vector<2x32xf32>
    %77 = math.tanh %76 : vector<2x32xf32>
    %78 = vector.extract_strided_slice %43 {offsets = [0, 64], sizes = [2, 32], strides = [1, 1]} : vector<2x128xf32> to vector<2x32xf32>
    %79 = math.tanh %78 : vector<2x32xf32>
    %80 = vector.extract_strided_slice %40 {offsets = [0, 96], sizes = [2, 32], strides = [1, 1]} : vector<2x128xf32> to vector<2x32xf32>
    %cst_59 = arith.constant 5.000000e-01 : f32
    %81 = vector.broadcast %cst_59 : f32 to vector<2x32xf32>
    %82 = arith.mulf %81, %80 : vector<2x32xf32>
    %83 = math.tanh %82 : vector<2x32xf32>
    %cst_60 = arith.constant 5.000000e-01 : f32
    %84 = vector.broadcast %cst_60 : f32 to vector<2x32xf32>
    %85 = arith.mulf %84, %83 : vector<2x32xf32>
    %cst_61 = arith.constant 5.000000e-01 : f32
    %86 = vector.broadcast %cst_61 : f32 to vector<2x32xf32>
    %87 = arith.addf %85, %86 : vector<2x32xf32>
    %88 = vector.extract_strided_slice %43 {offsets = [0, 96], sizes = [2, 32], strides = [1, 1]} : vector<2x128xf32> to vector<2x32xf32>
    %cst_62 = arith.constant 5.000000e-01 : f32
    %89 = vector.broadcast %cst_62 : f32 to vector<2x32xf32>
    %90 = arith.mulf %89, %88 : vector<2x32xf32>
    %91 = math.tanh %90 : vector<2x32xf32>
    %cst_63 = arith.constant 5.000000e-01 : f32
    %92 = vector.broadcast %cst_63 : f32 to vector<2x32xf32>
    %93 = arith.mulf %92, %91 : vector<2x32xf32>
    %cst_64 = arith.constant 5.000000e-01 : f32
    %94 = vector.broadcast %cst_64 : f32 to vector<2x32xf32>
    %95 = arith.addf %93, %94 : vector<2x32xf32>
    %96 = arith.mulf %67, %37 : vector<2x32xf32>
    %97 = arith.mulf %51, %77 : vector<2x32xf32>
    %98 = arith.addf %96, %97 : vector<2x32xf32>
    %99 = arith.mulf %75, %37 : vector<2x32xf32>
    %100 = arith.mulf %59, %79 : vector<2x32xf32>
    %101 = arith.addf %99, %100 : vector<2x32xf32>
    %102 = math.tanh %98 : vector<2x32xf32>
    %103 = arith.mulf %87, %102 : vector<2x32xf32>
    %104 = math.tanh %101 : vector<2x32xf32>
    %105 = arith.mulf %95, %104 : vector<2x32xf32>
    %c0_65 = arith.constant 0 : index
    %c0_66 = arith.constant 0 : index
    %106 = vector.load %arg22[%c0_65, %c0_66] : memref<16x64xf32, #tpu.memory_space<vmem>>, vector<2x32xf32>
    tpu.vector_store %arg22[%c0_65, %c0_66], %103 {strides = array<i32>} : memref<16x64xf32, #tpu.memory_space<vmem>>, vector<2x32xf32>,
    %c14 = arith.constant 14 : index
    %c32 = arith.constant 32 : index
    %107 = vector.load %arg22[%c14, %c32] : memref<16x64xf32, #tpu.memory_space<vmem>>, vector<2x32xf32>
    tpu.vector_store %arg22[%c14, %c32], %105 {strides = array<i32>} : memref<16x64xf32, #tpu.memory_space<vmem>>, vector<2x32xf32>,
    %108 = vector.extract_strided_slice %33 {offsets = [2, 0], sizes = [2, 128], strides = [1, 1]} : vector<16x128xf32> to vector<2x128xf32>
    %cst_67 = arith.constant dense<0.000000e+00> : vector<2x128xf32>
    %109 = tpu.matmul %103, %5, %cst_67 {dimension_numbers = #tpu.dot_dimension_numbers<[1], [0], [0], [1], [0, 0, 1, 1], [], []>} : vector<2x32xf32>, vector<32x128xf32>, vector<2x128xf32> -> vector<2x128xf32>
    %110 = arith.addf %108, %109 : vector<2x128xf32>
    %111 = vector.extract_strided_slice %36 {offsets = [12, 0], sizes = [2, 128], strides = [1, 1]} : vector<16x128xf32> to vector<2x128xf32>
    %cst_68 = arith.constant dense<0.000000e+00> : vector<2x128xf32>
    %112 = tpu.matmul %105, %8, %cst_68 {dimension_numbers = #tpu.dot_dimension_numbers<[1], [0], [0], [1], [0, 0, 1, 1], [], []>} : vector<2x32xf32>, vector<32x128xf32>, vector<2x128xf32> -> vector<2x128xf32>
    %113 = arith.addf %111, %112 : vector<2x128xf32>
    %114 = vector.extract_strided_slice %110 {offsets = [0, 0], sizes = [2, 32], strides = [1, 1]} : vector<2x128xf32> to vector<2x32xf32>
    %cst_69 = arith.constant 5.000000e-01 : f32
    %115 = vector.broadcast %cst_69 : f32 to vector<2x32xf32>
    %116 = arith.mulf %115, %114 : vector<2x32xf32>
    %117 = math.tanh %116 : vector<2x32xf32>
    %cst_70 = arith.constant 5.000000e-01 : f32
    %118 = vector.broadcast %cst_70 : f32 to vector<2x32xf32>
    %119 = arith.mulf %118, %117 : vector<2x32xf32>
    %cst_71 = arith.constant 5.000000e-01 : f32
    %120 = vector.broadcast %cst_71 : f32 to vector<2x32xf32>
    %121 = arith.addf %119, %120 : vector<2x32xf32>
    %122 = vector.extract_strided_slice %113 {offsets = [0, 0], sizes = [2, 32], strides = [1, 1]} : vector<2x128xf32> to vector<2x32xf32>
    %cst_72 = arith.constant 5.000000e-01 : f32
    %123 = vector.broadcast %cst_72 : f32 to vector<2x32xf32>
    %124 = arith.mulf %123, %122 : vector<2x32xf32>
    %125 = math.tanh %124 : vector<2x32xf32>
    %cst_73 = arith.constant 5.000000e-01 : f32
    %126 = vector.broadcast %cst_73 : f32 to vector<2x32xf32>
    %127 = arith.mulf %126, %125 : vector<2x32xf32>
    %cst_74 = arith.constant 5.000000e-01 : f32
    %128 = vector.broadcast %cst_74 : f32 to vector<2x32xf32>
    %129 = arith.addf %127, %128 : vector<2x32xf32>
    %130 = vector.extract_strided_slice %110 {offsets = [0, 32], sizes = [2, 32], strides = [1, 1]} : vector<2x128xf32> to vector<2x32xf32>
    %cst_75 = arith.constant 5.000000e-01 : f32
    %131 = vector.broadcast %cst_75 : f32 to vector<2x32xf32>
    %132 = arith.mulf %131, %130 : vector<2x32xf32>
    %133 = math.tanh %132 : vector<2x32xf32>
    %cst_76 = arith.constant 5.000000e-01 : f32
    %134 = vector.broadcast %cst_76 : f32 to vector<2x32xf32>
    %135 = arith.mulf %134, %133 : vector<2x32xf32>
    %cst_77 = arith.constant 5.000000e-01 : f32
    %136 = vector.broadcast %cst_77 : f32 to vector<2x32xf32>
    %137 = arith.addf %135, %136 : vector<2x32xf32>
    %138 = vector.extract_strided_slice %113 {offsets = [0, 32], sizes = [2, 32], strides = [1, 1]} : vector<2x128xf32> to vector<2x32xf32>
    %cst_78 = arith.constant 5.000000e-01 : f32
    %139 = vector.broadcast %cst_78 : f32 to vector<2x32xf32>
    %140 = arith.mulf %139, %138 : vector<2x32xf32>
    %141 = math.tanh %140 : vector<2x32xf32>
    %cst_79 = arith.constant 5.000000e-01 : f32
    %142 = vector.broadcast %cst_79 : f32 to vector<2x32xf32>
    %143 = arith.mulf %142, %141 : vector<2x32xf32>
    %cst_80 = arith.constant 5.000000e-01 : f32
    %144 = vector.broadcast %cst_80 : f32 to vector<2x32xf32>
    %145 = arith.addf %143, %144 : vector<2x32xf32>
    %146 = vector.extract_strided_slice %110 {offsets = [0, 64], sizes = [2, 32], strides = [1, 1]} : vector<2x128xf32> to vector<2x32xf32>
    %147 = math.tanh %146 : vector<2x32xf32>
    %148 = vector.extract_strided_slice %113 {offsets = [0, 64], sizes = [2, 32], strides = [1, 1]} : vector<2x128xf32> to vector<2x32xf32>
    %149 = math.tanh %148 : vector<2x32xf32>
    %150 = vector.extract_strided_slice %110 {offsets = [0, 96], sizes = [2, 32], strides = [1, 1]} : vector<2x128xf32> to vector<2x32xf32>
    %cst_81 = arith.constant 5.000000e-01 : f32
    %151 = vector.broadcast %cst_81 : f32 to vector<2x32xf32>
    %152 = arith.mulf %151, %150 : vector<2x32xf32>
    %153 = math.tanh %152 : vector<2x32xf32>
    %cst_82 = arith.constant 5.000000e-01 : f32
    %154 = vector.broadcast %cst_82 : f32 to vector<2x32xf32>
    %155 = arith.mulf %154, %153 : vector<2x32xf32>
    %cst_83 = arith.constant 5.000000e-01 : f32
    %156 = vector.broadcast %cst_83 : f32 to vector<2x32xf32>
    %157 = arith.addf %155, %156 : vector<2x32xf32>
    %158 = vector.extract_strided_slice %113 {offsets = [0, 96], sizes = [2, 32], strides = [1, 1]} : vector<2x128xf32> to vector<2x32xf32>
    %cst_84 = arith.constant 5.000000e-01 : f32
    %159 = vector.broadcast %cst_84 : f32 to vector<2x32xf32>
    %160 = arith.mulf %159, %158 : vector<2x32xf32>
    %161 = math.tanh %160 : vector<2x32xf32>
    %cst_85 = arith.constant 5.000000e-01 : f32
    %162 = vector.broadcast %cst_85 : f32 to vector<2x32xf32>
    %163 = arith.mulf %162, %161 : vector<2x32xf32>
    %cst_86 = arith.constant 5.000000e-01 : f32
    %164 = vector.broadcast %cst_86 : f32 to vector<2x32xf32>
    %165 = arith.addf %163, %164 : vector<2x32xf32>
    %166 = arith.mulf %137, %98 : vector<2x32xf32>
    %167 = arith.mulf %121, %147 : vector<2x32xf32>
    %168 = arith.addf %166, %167 : vector<2x32xf32>
    %169 = arith.mulf %145, %101 : vector<2x32xf32>
    %170 = arith.mulf %129, %149 : vector<2x32xf32>
    %171 = arith.addf %169, %170 : vector<2x32xf32>
    %172 = math.tanh %168 : vector<2x32xf32>
    %173 = arith.mulf %157, %172 : vector<2x32xf32>
    %174 = math.tanh %171 : vector<2x32xf32>
    %175 = arith.mulf %165, %174 : vector<2x32xf32>
    %c2 = arith.constant 2 : index
    %c0_87 = arith.constant 0 : index
    %176 = vector.load %arg22[%c2, %c0_87] : memref<16x64xf32, #tpu.memory_space<vmem>>, vector<2x32xf32>
    tpu.vector_store %arg22[%c2, %c0_87], %173 {strides = array<i32>} : memref<16x64xf32, #tpu.memory_space<vmem>>, vector<2x32xf32>,
    %c12 = arith.constant 12 : index
    %c32_88 = arith.constant 32 : index
    %177 = vector.load %arg22[%c12, %c32_88] : memref<16x64xf32, #tpu.memory_space<vmem>>, vector<2x32xf32>
    tpu.vector_store %arg22[%c12, %c32_88], %175 {strides = array<i32>} : memref<16x64xf32, #tpu.memory_space<vmem>>, vector<2x32xf32>,
    %178 = vector.extract_strided_slice %33 {offsets = [4, 0], sizes = [2, 128], strides = [1, 1]} : vector<16x128xf32> to vector<2x128xf32>
    %cst_89 = arith.constant dense<0.000000e+00> : vector<2x128xf32>
    %179 = tpu.matmul %173, %5, %cst_89 {dimension_numbers = #tpu.dot_dimension_numbers<[1], [0], [0], [1], [0, 0, 1, 1], [], []>} : vector<2x32xf32>, vector<32x128xf32>, vector<2x128xf32> -> vector<2x128xf32>
    %180 = arith.addf %178, %179 : vector<2x128xf32>
    %181 = vector.extract_strided_slice %36 {offsets = [10, 0], sizes = [2, 128], strides = [1, 1]} : vector<16x128xf32> to vector<2x128xf32>
    %cst_90 = arith.constant dense<0.000000e+00> : vector<2x128xf32>
    %182 = tpu.matmul %175, %8, %cst_90 {dimension_numbers = #tpu.dot_dimension_numbers<[1], [0], [0], [1], [0, 0, 1, 1], [], []>} : vector<2x32xf32>, vector<32x128xf32>, vector<2x128xf32> -> vector<2x128xf32>
    %183 = arith.addf %181, %182 : vector<2x128xf32>
    %184 = vector.extract_strided_slice %180 {offsets = [0, 0], sizes = [2, 32], strides = [1, 1]} : vector<2x128xf32> to vector<2x32xf32>
    %cst_91 = arith.constant 5.000000e-01 : f32
    %185 = vector.broadcast %cst_91 : f32 to vector<2x32xf32>
    %186 = arith.mulf %185, %184 : vector<2x32xf32>
    %187 = math.tanh %186 : vector<2x32xf32>
    %cst_92 = arith.constant 5.000000e-01 : f32
    %188 = vector.broadcast %cst_92 : f32 to vector<2x32xf32>
    %189 = arith.mulf %188, %187 : vector<2x32xf32>
    %cst_93 = arith.constant 5.000000e-01 : f32
    %190 = vector.broadcast %cst_93 : f32 to vector<2x32xf32>
    %191 = arith.addf %189, %190 : vector<2x32xf32>
    %192 = vector.extract_strided_slice %183 {offsets = [0, 0], sizes = [2, 32], strides = [1, 1]} : vector<2x128xf32> to vector<2x32xf32>
    %cst_94 = arith.constant 5.000000e-01 : f32
    %193 = vector.broadcast %cst_94 : f32 to vector<2x32xf32>
    %194 = arith.mulf %193, %192 : vector<2x32xf32>
    %195 = math.tanh %194 : vector<2x32xf32>
    %cst_95 = arith.constant 5.000000e-01 : f32
    %196 = vector.broadcast %cst_95 : f32 to vector<2x32xf32>
    %197 = arith.mulf %196, %195 : vector<2x32xf32>
    %cst_96 = arith.constant 5.000000e-01 : f32
    %198 = vector.broadcast %cst_96 : f32 to vector<2x32xf32>
    %199 = arith.addf %197, %198 : vector<2x32xf32>
    %200 = vector.extract_strided_slice %180 {offsets = [0, 32], sizes = [2, 32], strides = [1, 1]} : vector<2x128xf32> to vector<2x32xf32>
    %cst_97 = arith.constant 5.000000e-01 : f32
    %201 = vector.broadcast %cst_97 : f32 to vector<2x32xf32>
    %202 = arith.mulf %201, %200 : vector<2x32xf32>
    %203 = math.tanh %202 : vector<2x32xf32>
    %cst_98 = arith.constant 5.000000e-01 : f32
    %204 = vector.broadcast %cst_98 : f32 to vector<2x32xf32>
    %205 = arith.mulf %204, %203 : vector<2x32xf32>
    %cst_99 = arith.constant 5.000000e-01 : f32
    %206 = vector.broadcast %cst_99 : f32 to vector<2x32xf32>
    %207 = arith.addf %205, %206 : vector<2x32xf32>
    %208 = vector.extract_strided_slice %183 {offsets = [0, 32], sizes = [2, 32], strides = [1, 1]} : vector<2x128xf32> to vector<2x32xf32>
    %cst_100 = arith.constant 5.000000e-01 : f32
    %209 = vector.broadcast %cst_100 : f32 to vector<2x32xf32>
    %210 = arith.mulf %209, %208 : vector<2x32xf32>
    %211 = math.tanh %210 : vector<2x32xf32>
    %cst_101 = arith.constant 5.000000e-01 : f32
    %212 = vector.broadcast %cst_101 : f32 to vector<2x32xf32>
    %213 = arith.mulf %212, %211 : vector<2x32xf32>
    %cst_102 = arith.constant 5.000000e-01 : f32
    %214 = vector.broadcast %cst_102 : f32 to vector<2x32xf32>
    %215 = arith.addf %213, %214 : vector<2x32xf32>
    %216 = vector.extract_strided_slice %180 {offsets = [0, 64], sizes = [2, 32], strides = [1, 1]} : vector<2x128xf32> to vector<2x32xf32>
    %217 = math.tanh %216 : vector<2x32xf32>
    %218 = vector.extract_strided_slice %183 {offsets = [0, 64], sizes = [2, 32], strides = [1, 1]} : vector<2x128xf32> to vector<2x32xf32>
    %219 = math.tanh %218 : vector<2x32xf32>
    %220 = vector.extract_strided_slice %180 {offsets = [0, 96], sizes = [2, 32], strides = [1, 1]} : vector<2x128xf32> to vector<2x32xf32>
    %cst_103 = arith.constant 5.000000e-01 : f32
    %221 = vector.broadcast %cst_103 : f32 to vector<2x32xf32>
    %222 = arith.mulf %221, %220 : vector<2x32xf32>
    %223 = math.tanh %222 : vector<2x32xf32>
    %cst_104 = arith.constant 5.000000e-01 : f32
    %224 = vector.broadcast %cst_104 : f32 to vector<2x32xf32>
    %225 = arith.mulf %224, %223 : vector<2x32xf32>
    %cst_105 = arith.constant 5.000000e-01 : f32
    %226 = vector.broadcast %cst_105 : f32 to vector<2x32xf32>
    %227 = arith.addf %225, %226 : vector<2x32xf32>
    %228 = vector.extract_strided_slice %183 {offsets = [0, 96], sizes = [2, 32], strides = [1, 1]} : vector<2x128xf32> to vector<2x32xf32>
    %cst_106 = arith.constant 5.000000e-01 : f32
    %229 = vector.broadcast %cst_106 : f32 to vector<2x32xf32>
    %230 = arith.mulf %229, %228 : vector<2x32xf32>
    %231 = math.tanh %230 : vector<2x32xf32>
    %cst_107 = arith.constant 5.000000e-01 : f32
    %232 = vector.broadcast %cst_107 : f32 to vector<2x32xf32>
    %233 = arith.mulf %232, %231 : vector<2x32xf32>
    %cst_108 = arith.constant 5.000000e-01 : f32
    %234 = vector.broadcast %cst_108 : f32 to vector<2x32xf32>
    %235 = arith.addf %233, %234 : vector<2x32xf32>
    %236 = arith.mulf %207, %168 : vector<2x32xf32>
    %237 = arith.mulf %191, %217 : vector<2x32xf32>
    %238 = arith.addf %236, %237 : vector<2x32xf32>
    %239 = arith.mulf %215, %171 : vector<2x32xf32>
    %240 = arith.mulf %199, %219 : vector<2x32xf32>
    %241 = arith.addf %239, %240 : vector<2x32xf32>
    %242 = math.tanh %238 : vector<2x32xf32>
    %243 = arith.mulf %227, %242 : vector<2x32xf32>
    %244 = math.tanh %241 : vector<2x32xf32>
    %245 = arith.mulf %235, %244 : vector<2x32xf32>
    %c4 = arith.constant 4 : index
    %c0_109 = arith.constant 0 : index
    %246 = vector.load %arg22[%c4, %c0_109] : memref<16x64xf32, #tpu.memory_space<vmem>>, vector<2x32xf32>
    tpu.vector_store %arg22[%c4, %c0_109], %243 {strides = array<i32>} : memref<16x64xf32, #tpu.memory_space<vmem>>, vector<2x32xf32>,
    %c10 = arith.constant 10 : index
    %c32_110 = arith.constant 32 : index
    %247 = vector.load %arg22[%c10, %c32_110] : memref<16x64xf32, #tpu.memory_space<vmem>>, vector<2x32xf32>
    tpu.vector_store %arg22[%c10, %c32_110], %245 {strides = array<i32>} : memref<16x64xf32, #tpu.memory_space<vmem>>, vector<2x32xf32>,
    %248 = vector.extract_strided_slice %33 {offsets = [6, 0], sizes = [2, 128], strides = [1, 1]} : vector<16x128xf32> to vector<2x128xf32>
    %cst_111 = arith.constant dense<0.000000e+00> : vector<2x128xf32>
    %249 = tpu.matmul %243, %5, %cst_111 {dimension_numbers = #tpu.dot_dimension_numbers<[1], [0], [0], [1], [0, 0, 1, 1], [], []>} : vector<2x32xf32>, vector<32x128xf32>, vector<2x128xf32> -> vector<2x128xf32>
    %250 = arith.addf %248, %249 : vector<2x128xf32>
    %251 = vector.extract_strided_slice %36 {offsets = [8, 0], sizes = [2, 128], strides = [1, 1]} : vector<16x128xf32> to vector<2x128xf32>
    %cst_112 = arith.constant dense<0.000000e+00> : vector<2x128xf32>
    %252 = tpu.matmul %245, %8, %cst_112 {dimension_numbers = #tpu.dot_dimension_numbers<[1], [0], [0], [1], [0, 0, 1, 1], [], []>} : vector<2x32xf32>, vector<32x128xf32>, vector<2x128xf32> -> vector<2x128xf32>
    %253 = arith.addf %251, %252 : vector<2x128xf32>
    %254 = vector.extract_strided_slice %250 {offsets = [0, 0], sizes = [2, 32], strides = [1, 1]} : vector<2x128xf32> to vector<2x32xf32>
    %cst_113 = arith.constant 5.000000e-01 : f32
    %255 = vector.broadcast %cst_113 : f32 to vector<2x32xf32>
    %256 = arith.mulf %255, %254 : vector<2x32xf32>
    %257 = math.tanh %256 : vector<2x32xf32>
    %cst_114 = arith.constant 5.000000e-01 : f32
    %258 = vector.broadcast %cst_114 : f32 to vector<2x32xf32>
    %259 = arith.mulf %258, %257 : vector<2x32xf32>
    %cst_115 = arith.constant 5.000000e-01 : f32
    %260 = vector.broadcast %cst_115 : f32 to vector<2x32xf32>
    %261 = arith.addf %259, %260 : vector<2x32xf32>
    %262 = vector.extract_strided_slice %253 {offsets = [0, 0], sizes = [2, 32], strides = [1, 1]} : vector<2x128xf32> to vector<2x32xf32>
    %cst_116 = arith.constant 5.000000e-01 : f32
    %263 = vector.broadcast %cst_116 : f32 to vector<2x32xf32>
    %264 = arith.mulf %263, %262 : vector<2x32xf32>
    %265 = math.tanh %264 : vector<2x32xf32>
    %cst_117 = arith.constant 5.000000e-01 : f32
    %266 = vector.broadcast %cst_117 : f32 to vector<2x32xf32>
    %267 = arith.mulf %266, %265 : vector<2x32xf32>
    %cst_118 = arith.constant 5.000000e-01 : f32
    %268 = vector.broadcast %cst_118 : f32 to vector<2x32xf32>
    %269 = arith.addf %267, %268 : vector<2x32xf32>
    %270 = vector.extract_strided_slice %250 {offsets = [0, 32], sizes = [2, 32], strides = [1, 1]} : vector<2x128xf32> to vector<2x32xf32>
    %cst_119 = arith.constant 5.000000e-01 : f32
    %271 = vector.broadcast %cst_119 : f32 to vector<2x32xf32>
    %272 = arith.mulf %271, %270 : vector<2x32xf32>
    %273 = math.tanh %272 : vector<2x32xf32>
    %cst_120 = arith.constant 5.000000e-01 : f32
    %274 = vector.broadcast %cst_120 : f32 to vector<2x32xf32>
    %275 = arith.mulf %274, %273 : vector<2x32xf32>
    %cst_121 = arith.constant 5.000000e-01 : f32
    %276 = vector.broadcast %cst_121 : f32 to vector<2x32xf32>
    %277 = arith.addf %275, %276 : vector<2x32xf32>
    %278 = vector.extract_strided_slice %253 {offsets = [0, 32], sizes = [2, 32], strides = [1, 1]} : vector<2x128xf32> to vector<2x32xf32>
    %cst_122 = arith.constant 5.000000e-01 : f32
    %279 = vector.broadcast %cst_122 : f32 to vector<2x32xf32>
    %280 = arith.mulf %279, %278 : vector<2x32xf32>
    %281 = math.tanh %280 : vector<2x32xf32>
    %cst_123 = arith.constant 5.000000e-01 : f32
    %282 = vector.broadcast %cst_123 : f32 to vector<2x32xf32>
    %283 = arith.mulf %282, %281 : vector<2x32xf32>
    %cst_124 = arith.constant 5.000000e-01 : f32
    %284 = vector.broadcast %cst_124 : f32 to vector<2x32xf32>
    %285 = arith.addf %283, %284 : vector<2x32xf32>
    %286 = vector.extract_strided_slice %250 {offsets = [0, 64], sizes = [2, 32], strides = [1, 1]} : vector<2x128xf32> to vector<2x32xf32>
    %287 = math.tanh %286 : vector<2x32xf32>
    %288 = vector.extract_strided_slice %253 {offsets = [0, 64], sizes = [2, 32], strides = [1, 1]} : vector<2x128xf32> to vector<2x32xf32>
    %289 = math.tanh %288 : vector<2x32xf32>
    %290 = vector.extract_strided_slice %250 {offsets = [0, 96], sizes = [2, 32], strides = [1, 1]} : vector<2x128xf32> to vector<2x32xf32>
    %cst_125 = arith.constant 5.000000e-01 : f32
    %291 = vector.broadcast %cst_125 : f32 to vector<2x32xf32>
    %292 = arith.mulf %291, %290 : vector<2x32xf32>
    %293 = math.tanh %292 : vector<2x32xf32>
    %cst_126 = arith.constant 5.000000e-01 : f32
    %294 = vector.broadcast %cst_126 : f32 to vector<2x32xf32>
    %295 = arith.mulf %294, %293 : vector<2x32xf32>
    %cst_127 = arith.constant 5.000000e-01 : f32
    %296 = vector.broadcast %cst_127 : f32 to vector<2x32xf32>
    %297 = arith.addf %295, %296 : vector<2x32xf32>
    %298 = vector.extract_strided_slice %253 {offsets = [0, 96], sizes = [2, 32], strides = [1, 1]} : vector<2x128xf32> to vector<2x32xf32>
    %cst_128 = arith.constant 5.000000e-01 : f32
    %299 = vector.broadcast %cst_128 : f32 to vector<2x32xf32>
    %300 = arith.mulf %299, %298 : vector<2x32xf32>
    %301 = math.tanh %300 : vector<2x32xf32>
    %cst_129 = arith.constant 5.000000e-01 : f32
    %302 = vector.broadcast %cst_129 : f32 to vector<2x32xf32>
    %303 = arith.mulf %302, %301 : vector<2x32xf32>
    %cst_130 = arith.constant 5.000000e-01 : f32
    %304 = vector.broadcast %cst_130 : f32 to vector<2x32xf32>
    %305 = arith.addf %303, %304 : vector<2x32xf32>
    %306 = arith.mulf %277, %238 : vector<2x32xf32>
    %307 = arith.mulf %261, %287 : vector<2x32xf32>
    %308 = arith.addf %306, %307 : vector<2x32xf32>
    %309 = arith.mulf %285, %241 : vector<2x32xf32>
    %310 = arith.mulf %269, %289 : vector<2x32xf32>
    %311 = arith.addf %309, %310 : vector<2x32xf32>
    %312 = math.tanh %308 : vector<2x32xf32>
    %313 = arith.mulf %297, %312 : vector<2x32xf32>
    %314 = math.tanh %311 : vector<2x32xf32>
    %315 = arith.mulf %305, %314 : vector<2x32xf32>
    %c6 = arith.constant 6 : index
    %c0_131 = arith.constant 0 : index
    %316 = vector.load %arg22[%c6, %c0_131] : memref<16x64xf32, #tpu.memory_space<vmem>>, vector<2x32xf32>
    tpu.vector_store %arg22[%c6, %c0_131], %313 {strides = array<i32>} : memref<16x64xf32, #tpu.memory_space<vmem>>, vector<2x32xf32>,
    %c8 = arith.constant 8 : index
    %c32_132 = arith.constant 32 : index
    %317 = vector.load %arg22[%c8, %c32_132] : memref<16x64xf32, #tpu.memory_space<vmem>>, vector<2x32xf32>
    tpu.vector_store %arg22[%c8, %c32_132], %315 {strides = array<i32>} : memref<16x64xf32, #tpu.memory_space<vmem>>, vector<2x32xf32>,
    %318 = vector.extract_strided_slice %33 {offsets = [8, 0], sizes = [2, 128], strides = [1, 1]} : vector<16x128xf32> to vector<2x128xf32>
    %cst_133 = arith.constant dense<0.000000e+00> : vector<2x128xf32>
    %319 = tpu.matmul %313, %5, %cst_133 {dimension_numbers = #tpu.dot_dimension_numbers<[1], [0], [0], [1], [0, 0, 1, 1], [], []>} : vector<2x32xf32>, vector<32x128xf32>, vector<2x128xf32> -> vector<2x128xf32>
    %320 = arith.addf %318, %319 : vector<2x128xf32>
    %321 = vector.extract_strided_slice %36 {offsets = [6, 0], sizes = [2, 128], strides = [1, 1]} : vector<16x128xf32> to vector<2x128xf32>
    %cst_134 = arith.constant dense<0.000000e+00> : vector<2x128xf32>
    %322 = tpu.matmul %315, %8, %cst_134 {dimension_numbers = #tpu.dot_dimension_numbers<[1], [0], [0], [1], [0, 0, 1, 1], [], []>} : vector<2x32xf32>, vector<32x128xf32>, vector<2x128xf32> -> vector<2x128xf32>
    %323 = arith.addf %321, %322 : vector<2x128xf32>
    %324 = vector.extract_strided_slice %320 {offsets = [0, 0], sizes = [2, 32], strides = [1, 1]} : vector<2x128xf32> to vector<2x32xf32>
    %cst_135 = arith.constant 5.000000e-01 : f32
    %325 = vector.broadcast %cst_135 : f32 to vector<2x32xf32>
    %326 = arith.mulf %325, %324 : vector<2x32xf32>
    %327 = math.tanh %326 : vector<2x32xf32>
    %cst_136 = arith.constant 5.000000e-01 : f32
    %328 = vector.broadcast %cst_136 : f32 to vector<2x32xf32>
    %329 = arith.mulf %328, %327 : vector<2x32xf32>
    %cst_137 = arith.constant 5.000000e-01 : f32
    %330 = vector.broadcast %cst_137 : f32 to vector<2x32xf32>
    %331 = arith.addf %329, %330 : vector<2x32xf32>
    %332 = vector.extract_strided_slice %323 {offsets = [0, 0], sizes = [2, 32], strides = [1, 1]} : vector<2x128xf32> to vector<2x32xf32>
    %cst_138 = arith.constant 5.000000e-01 : f32
    %333 = vector.broadcast %cst_138 : f32 to vector<2x32xf32>
    %334 = arith.mulf %333, %332 : vector<2x32xf32>
    %335 = math.tanh %334 : vector<2x32xf32>
    %cst_139 = arith.constant 5.000000e-01 : f32
    %336 = vector.broadcast %cst_139 : f32 to vector<2x32xf32>
    %337 = arith.mulf %336, %335 : vector<2x32xf32>
    %cst_140 = arith.constant 5.000000e-01 : f32
    %338 = vector.broadcast %cst_140 : f32 to vector<2x32xf32>
    %339 = arith.addf %337, %338 : vector<2x32xf32>
    %340 = vector.extract_strided_slice %320 {offsets = [0, 32], sizes = [2, 32], strides = [1, 1]} : vector<2x128xf32> to vector<2x32xf32>
    %cst_141 = arith.constant 5.000000e-01 : f32
    %341 = vector.broadcast %cst_141 : f32 to vector<2x32xf32>
    %342 = arith.mulf %341, %340 : vector<2x32xf32>
    %343 = math.tanh %342 : vector<2x32xf32>
    %cst_142 = arith.constant 5.000000e-01 : f32
    %344 = vector.broadcast %cst_142 : f32 to vector<2x32xf32>
    %345 = arith.mulf %344, %343 : vector<2x32xf32>
    %cst_143 = arith.constant 5.000000e-01 : f32
    %346 = vector.broadcast %cst_143 : f32 to vector<2x32xf32>
    %347 = arith.addf %345, %346 : vector<2x32xf32>
    %348 = vector.extract_strided_slice %323 {offsets = [0, 32], sizes = [2, 32], strides = [1, 1]} : vector<2x128xf32> to vector<2x32xf32>
    %cst_144 = arith.constant 5.000000e-01 : f32
    %349 = vector.broadcast %cst_144 : f32 to vector<2x32xf32>
    %350 = arith.mulf %349, %348 : vector<2x32xf32>
    %351 = math.tanh %350 : vector<2x32xf32>
    %cst_145 = arith.constant 5.000000e-01 : f32
    %352 = vector.broadcast %cst_145 : f32 to vector<2x32xf32>
    %353 = arith.mulf %352, %351 : vector<2x32xf32>
    %cst_146 = arith.constant 5.000000e-01 : f32
    %354 = vector.broadcast %cst_146 : f32 to vector<2x32xf32>
    %355 = arith.addf %353, %354 : vector<2x32xf32>
    %356 = vector.extract_strided_slice %320 {offsets = [0, 64], sizes = [2, 32], strides = [1, 1]} : vector<2x128xf32> to vector<2x32xf32>
    %357 = math.tanh %356 : vector<2x32xf32>
    %358 = vector.extract_strided_slice %323 {offsets = [0, 64], sizes = [2, 32], strides = [1, 1]} : vector<2x128xf32> to vector<2x32xf32>
    %359 = math.tanh %358 : vector<2x32xf32>
    %360 = vector.extract_strided_slice %320 {offsets = [0, 96], sizes = [2, 32], strides = [1, 1]} : vector<2x128xf32> to vector<2x32xf32>
    %cst_147 = arith.constant 5.000000e-01 : f32
    %361 = vector.broadcast %cst_147 : f32 to vector<2x32xf32>
    %362 = arith.mulf %361, %360 : vector<2x32xf32>
    %363 = math.tanh %362 : vector<2x32xf32>
    %cst_148 = arith.constant 5.000000e-01 : f32
    %364 = vector.broadcast %cst_148 : f32 to vector<2x32xf32>
    %365 = arith.mulf %364, %363 : vector<2x32xf32>
    %cst_149 = arith.constant 5.000000e-01 : f32
    %366 = vector.broadcast %cst_149 : f32 to vector<2x32xf32>
    %367 = arith.addf %365, %366 : vector<2x32xf32>
    %368 = vector.extract_strided_slice %323 {offsets = [0, 96], sizes = [2, 32], strides = [1, 1]} : vector<2x128xf32> to vector<2x32xf32>
    %cst_150 = arith.constant 5.000000e-01 : f32
    %369 = vector.broadcast %cst_150 : f32 to vector<2x32xf32>
    %370 = arith.mulf %369, %368 : vector<2x32xf32>
    %371 = math.tanh %370 : vector<2x32xf32>
    %cst_151 = arith.constant 5.000000e-01 : f32
    %372 = vector.broadcast %cst_151 : f32 to vector<2x32xf32>
    %373 = arith.mulf %372, %371 : vector<2x32xf32>
    %cst_152 = arith.constant 5.000000e-01 : f32
    %374 = vector.broadcast %cst_152 : f32 to vector<2x32xf32>
    %375 = arith.addf %373, %374 : vector<2x32xf32>
    %376 = arith.mulf %347, %308 : vector<2x32xf32>
    %377 = arith.mulf %331, %357 : vector<2x32xf32>
    %378 = arith.addf %376, %377 : vector<2x32xf32>
    %379 = arith.mulf %355, %311 : vector<2x32xf32>
    %380 = arith.mulf %339, %359 : vector<2x32xf32>
    %381 = arith.addf %379, %380 : vector<2x32xf32>
    %382 = math.tanh %378 : vector<2x32xf32>
    %383 = arith.mulf %367, %382 : vector<2x32xf32>
    %384 = math.tanh %381 : vector<2x32xf32>
    %385 = arith.mulf %375, %384 : vector<2x32xf32>
    %c8_153 = arith.constant 8 : index
    %c0_154 = arith.constant 0 : index
    %386 = vector.load %arg22[%c8_153, %c0_154] : memref<16x64xf32, #tpu.memory_space<vmem>>, vector<2x32xf32>
    tpu.vector_store %arg22[%c8_153, %c0_154], %383 {strides = array<i32>} : memref<16x64xf32, #tpu.memory_space<vmem>>, vector<2x32xf32>,
    %c6_155 = arith.constant 6 : index
    %c32_156 = arith.constant 32 : index
    %387 = vector.load %arg22[%c6_155, %c32_156] : memref<16x64xf32, #tpu.memory_space<vmem>>, vector<2x32xf32>
    tpu.vector_store %arg22[%c6_155, %c32_156], %385 {strides = array<i32>} : memref<16x64xf32, #tpu.memory_space<vmem>>, vector<2x32xf32>,
    %388 = vector.extract_strided_slice %33 {offsets = [10, 0], sizes = [2, 128], strides = [1, 1]} : vector<16x128xf32> to vector<2x128xf32>
    %cst_157 = arith.constant dense<0.000000e+00> : vector<2x128xf32>
    %389 = tpu.matmul %383, %5, %cst_157 {dimension_numbers = #tpu.dot_dimension_numbers<[1], [0], [0], [1], [0, 0, 1, 1], [], []>} : vector<2x32xf32>, vector<32x128xf32>, vector<2x128xf32> -> vector<2x128xf32>
    %390 = arith.addf %388, %389 : vector<2x128xf32>
    %391 = vector.extract_strided_slice %36 {offsets = [4, 0], sizes = [2, 128], strides = [1, 1]} : vector<16x128xf32> to vector<2x128xf32>
    %cst_158 = arith.constant dense<0.000000e+00> : vector<2x128xf32>
    %392 = tpu.matmul %385, %8, %cst_158 {dimension_numbers = #tpu.dot_dimension_numbers<[1], [0], [0], [1], [0, 0, 1, 1], [], []>} : vector<2x32xf32>, vector<32x128xf32>, vector<2x128xf32> -> vector<2x128xf32>
    %393 = arith.addf %391, %392 : vector<2x128xf32>
    %394 = vector.extract_strided_slice %390 {offsets = [0, 0], sizes = [2, 32], strides = [1, 1]} : vector<2x128xf32> to vector<2x32xf32>
    %cst_159 = arith.constant 5.000000e-01 : f32
    %395 = vector.broadcast %cst_159 : f32 to vector<2x32xf32>
    %396 = arith.mulf %395, %394 : vector<2x32xf32>
    %397 = math.tanh %396 : vector<2x32xf32>
    %cst_160 = arith.constant 5.000000e-01 : f32
    %398 = vector.broadcast %cst_160 : f32 to vector<2x32xf32>
    %399 = arith.mulf %398, %397 : vector<2x32xf32>
    %cst_161 = arith.constant 5.000000e-01 : f32
    %400 = vector.broadcast %cst_161 : f32 to vector<2x32xf32>
    %401 = arith.addf %399, %400 : vector<2x32xf32>
    %402 = vector.extract_strided_slice %393 {offsets = [0, 0], sizes = [2, 32], strides = [1, 1]} : vector<2x128xf32> to vector<2x32xf32>
    %cst_162 = arith.constant 5.000000e-01 : f32
    %403 = vector.broadcast %cst_162 : f32 to vector<2x32xf32>
    %404 = arith.mulf %403, %402 : vector<2x32xf32>
    %405 = math.tanh %404 : vector<2x32xf32>
    %cst_163 = arith.constant 5.000000e-01 : f32
    %406 = vector.broadcast %cst_163 : f32 to vector<2x32xf32>
    %407 = arith.mulf %406, %405 : vector<2x32xf32>
    %cst_164 = arith.constant 5.000000e-01 : f32
    %408 = vector.broadcast %cst_164 : f32 to vector<2x32xf32>
    %409 = arith.addf %407, %408 : vector<2x32xf32>
    %410 = vector.extract_strided_slice %390 {offsets = [0, 32], sizes = [2, 32], strides = [1, 1]} : vector<2x128xf32> to vector<2x32xf32>
    %cst_165 = arith.constant 5.000000e-01 : f32
    %411 = vector.broadcast %cst_165 : f32 to vector<2x32xf32>
    %412 = arith.mulf %411, %410 : vector<2x32xf32>
    %413 = math.tanh %412 : vector<2x32xf32>
    %cst_166 = arith.constant 5.000000e-01 : f32
    %414 = vector.broadcast %cst_166 : f32 to vector<2x32xf32>
    %415 = arith.mulf %414, %413 : vector<2x32xf32>
    %cst_167 = arith.constant 5.000000e-01 : f32
    %416 = vector.broadcast %cst_167 : f32 to vector<2x32xf32>
    %417 = arith.addf %415, %416 : vector<2x32xf32>
    %418 = vector.extract_strided_slice %393 {offsets = [0, 32], sizes = [2, 32], strides = [1, 1]} : vector<2x128xf32> to vector<2x32xf32>
    %cst_168 = arith.constant 5.000000e-01 : f32
    %419 = vector.broadcast %cst_168 : f32 to vector<2x32xf32>
    %420 = arith.mulf %419, %418 : vector<2x32xf32>
    %421 = math.tanh %420 : vector<2x32xf32>
    %cst_169 = arith.constant 5.000000e-01 : f32
    %422 = vector.broadcast %cst_169 : f32 to vector<2x32xf32>
    %423 = arith.mulf %422, %421 : vector<2x32xf32>
    %cst_170 = arith.constant 5.000000e-01 : f32
    %424 = vector.broadcast %cst_170 : f32 to vector<2x32xf32>
    %425 = arith.addf %423, %424 : vector<2x32xf32>
    %426 = vector.extract_strided_slice %390 {offsets = [0, 64], sizes = [2, 32], strides = [1, 1]} : vector<2x128xf32> to vector<2x32xf32>
    %427 = math.tanh %426 : vector<2x32xf32>
    %428 = vector.extract_strided_slice %393 {offsets = [0, 64], sizes = [2, 32], strides = [1, 1]} : vector<2x128xf32> to vector<2x32xf32>
    %429 = math.tanh %428 : vector<2x32xf32>
    %430 = vector.extract_strided_slice %390 {offsets = [0, 96], sizes = [2, 32], strides = [1, 1]} : vector<2x128xf32> to vector<2x32xf32>
    %cst_171 = arith.constant 5.000000e-01 : f32
    %431 = vector.broadcast %cst_171 : f32 to vector<2x32xf32>
    %432 = arith.mulf %431, %430 : vector<2x32xf32>
    %433 = math.tanh %432 : vector<2x32xf32>
    %cst_172 = arith.constant 5.000000e-01 : f32
    %434 = vector.broadcast %cst_172 : f32 to vector<2x32xf32>
    %435 = arith.mulf %434, %433 : vector<2x32xf32>
    %cst_173 = arith.constant 5.000000e-01 : f32
    %436 = vector.broadcast %cst_173 : f32 to vector<2x32xf32>
    %437 = arith.addf %435, %436 : vector<2x32xf32>
    %438 = vector.extract_strided_slice %393 {offsets = [0, 96], sizes = [2, 32], strides = [1, 1]} : vector<2x128xf32> to vector<2x32xf32>
    %cst_174 = arith.constant 5.000000e-01 : f32
    %439 = vector.broadcast %cst_174 : f32 to vector<2x32xf32>
    %440 = arith.mulf %439, %438 : vector<2x32xf32>
    %441 = math.tanh %440 : vector<2x32xf32>
    %cst_175 = arith.constant 5.000000e-01 : f32
    %442 = vector.broadcast %cst_175 : f32 to vector<2x32xf32>
    %443 = arith.mulf %442, %441 : vector<2x32xf32>
    %cst_176 = arith.constant 5.000000e-01 : f32
    %444 = vector.broadcast %cst_176 : f32 to vector<2x32xf32>
    %445 = arith.addf %443, %444 : vector<2x32xf32>
    %446 = arith.mulf %417, %378 : vector<2x32xf32>
    %447 = arith.mulf %401, %427 : vector<2x32xf32>
    %448 = arith.addf %446, %447 : vector<2x32xf32>
    %449 = arith.mulf %425, %381 : vector<2x32xf32>
    %450 = arith.mulf %409, %429 : vector<2x32xf32>
    %451 = arith.addf %449, %450 : vector<2x32xf32>
    %452 = math.tanh %448 : vector<2x32xf32>
    %453 = arith.mulf %437, %452 : vector<2x32xf32>
    %454 = math.tanh %451 : vector<2x32xf32>
    %455 = arith.mulf %445, %454 : vector<2x32xf32>
    %c10_177 = arith.constant 10 : index
    %c0_178 = arith.constant 0 : index
    %456 = vector.load %arg22[%c10_177, %c0_178] : memref<16x64xf32, #tpu.memory_space<vmem>>, vector<2x32xf32>
    tpu.vector_store %arg22[%c10_177, %c0_178], %453 {strides = array<i32>} : memref<16x64xf32, #tpu.memory_space<vmem>>, vector<2x32xf32>,
    %c4_179 = arith.constant 4 : index
    %c32_180 = arith.constant 32 : index
    %457 = vector.load %arg22[%c4_179, %c32_180] : memref<16x64xf32, #tpu.memory_space<vmem>>, vector<2x32xf32>
    tpu.vector_store %arg22[%c4_179, %c32_180], %455 {strides = array<i32>} : memref<16x64xf32, #tpu.memory_space<vmem>>, vector<2x32xf32>,
    %458 = vector.extract_strided_slice %33 {offsets = [12, 0], sizes = [2, 128], strides = [1, 1]} : vector<16x128xf32> to vector<2x128xf32>
    %cst_181 = arith.constant dense<0.000000e+00> : vector<2x128xf32>
    %459 = tpu.matmul %453, %5, %cst_181 {dimension_numbers = #tpu.dot_dimension_numbers<[1], [0], [0], [1], [0, 0, 1, 1], [], []>} : vector<2x32xf32>, vector<32x128xf32>, vector<2x128xf32> -> vector<2x128xf32>
    %460 = arith.addf %458, %459 : vector<2x128xf32>
    %461 = vector.extract_strided_slice %36 {offsets = [2, 0], sizes = [2, 128], strides = [1, 1]} : vector<16x128xf32> to vector<2x128xf32>
    %cst_182 = arith.constant dense<0.000000e+00> : vector<2x128xf32>
    %462 = tpu.matmul %455, %8, %cst_182 {dimension_numbers = #tpu.dot_dimension_numbers<[1], [0], [0], [1], [0, 0, 1, 1], [], []>} : vector<2x32xf32>, vector<32x128xf32>, vector<2x128xf32> -> vector<2x128xf32>
    %463 = arith.addf %461, %462 : vector<2x128xf32>
    %464 = vector.extract_strided_slice %460 {offsets = [0, 0], sizes = [2, 32], strides = [1, 1]} : vector<2x128xf32> to vector<2x32xf32>
    %cst_183 = arith.constant 5.000000e-01 : f32
    %465 = vector.broadcast %cst_183 : f32 to vector<2x32xf32>
    %466 = arith.mulf %465, %464 : vector<2x32xf32>
    %467 = math.tanh %466 : vector<2x32xf32>
    %cst_184 = arith.constant 5.000000e-01 : f32
    %468 = vector.broadcast %cst_184 : f32 to vector<2x32xf32>
    %469 = arith.mulf %468, %467 : vector<2x32xf32>
    %cst_185 = arith.constant 5.000000e-01 : f32
    %470 = vector.broadcast %cst_185 : f32 to vector<2x32xf32>
    %471 = arith.addf %469, %470 : vector<2x32xf32>
    %472 = vector.extract_strided_slice %463 {offsets = [0, 0], sizes = [2, 32], strides = [1, 1]} : vector<2x128xf32> to vector<2x32xf32>
    %cst_186 = arith.constant 5.000000e-01 : f32
    %473 = vector.broadcast %cst_186 : f32 to vector<2x32xf32>
    %474 = arith.mulf %473, %472 : vector<2x32xf32>
    %475 = math.tanh %474 : vector<2x32xf32>
    %cst_187 = arith.constant 5.000000e-01 : f32
    %476 = vector.broadcast %cst_187 : f32 to vector<2x32xf32>
    %477 = arith.mulf %476, %475 : vector<2x32xf32>
    %cst_188 = arith.constant 5.000000e-01 : f32
    %478 = vector.broadcast %cst_188 : f32 to vector<2x32xf32>
    %479 = arith.addf %477, %478 : vector<2x32xf32>
    %480 = vector.extract_strided_slice %460 {offsets = [0, 32], sizes = [2, 32], strides = [1, 1]} : vector<2x128xf32> to vector<2x32xf32>
    %cst_189 = arith.constant 5.000000e-01 : f32
    %481 = vector.broadcast %cst_189 : f32 to vector<2x32xf32>
    %482 = arith.mulf %481, %480 : vector<2x32xf32>
    %483 = math.tanh %482 : vector<2x32xf32>
    %cst_190 = arith.constant 5.000000e-01 : f32
    %484 = vector.broadcast %cst_190 : f32 to vector<2x32xf32>
    %485 = arith.mulf %484, %483 : vector<2x32xf32>
    %cst_191 = arith.constant 5.000000e-01 : f32
    %486 = vector.broadcast %cst_191 : f32 to vector<2x32xf32>
    %487 = arith.addf %485, %486 : vector<2x32xf32>
    %488 = vector.extract_strided_slice %463 {offsets = [0, 32], sizes = [2, 32], strides = [1, 1]} : vector<2x128xf32> to vector<2x32xf32>
    %cst_192 = arith.constant 5.000000e-01 : f32
    %489 = vector.broadcast %cst_192 : f32 to vector<2x32xf32>
    %490 = arith.mulf %489, %488 : vector<2x32xf32>
    %491 = math.tanh %490 : vector<2x32xf32>
    %cst_193 = arith.constant 5.000000e-01 : f32
    %492 = vector.broadcast %cst_193 : f32 to vector<2x32xf32>
    %493 = arith.mulf %492, %491 : vector<2x32xf32>
    %cst_194 = arith.constant 5.000000e-01 : f32
    %494 = vector.broadcast %cst_194 : f32 to vector<2x32xf32>
    %495 = arith.addf %493, %494 : vector<2x32xf32>
    %496 = vector.extract_strided_slice %460 {offsets = [0, 64], sizes = [2, 32], strides = [1, 1]} : vector<2x128xf32> to vector<2x32xf32>
    %497 = math.tanh %496 : vector<2x32xf32>
    %498 = vector.extract_strided_slice %463 {offsets = [0, 64], sizes = [2, 32], strides = [1, 1]} : vector<2x128xf32> to vector<2x32xf32>
    %499 = math.tanh %498 : vector<2x32xf32>
    %500 = vector.extract_strided_slice %460 {offsets = [0, 96], sizes = [2, 32], strides = [1, 1]} : vector<2x128xf32> to vector<2x32xf32>
    %cst_195 = arith.constant 5.000000e-01 : f32
    %501 = vector.broadcast %cst_195 : f32 to vector<2x32xf32>
    %502 = arith.mulf %501, %500 : vector<2x32xf32>
    %503 = math.tanh %502 : vector<2x32xf32>
    %cst_196 = arith.constant 5.000000e-01 : f32
    %504 = vector.broadcast %cst_196 : f32 to vector<2x32xf32>
    %505 = arith.mulf %504, %503 : vector<2x32xf32>
    %cst_197 = arith.constant 5.000000e-01 : f32
    %506 = vector.broadcast %cst_197 : f32 to vector<2x32xf32>
    %507 = arith.addf %505, %506 : vector<2x32xf32>
    %508 = vector.extract_strided_slice %463 {offsets = [0, 96], sizes = [2, 32], strides = [1, 1]} : vector<2x128xf32> to vector<2x32xf32>
    %cst_198 = arith.constant 5.000000e-01 : f32
    %509 = vector.broadcast %cst_198 : f32 to vector<2x32xf32>
    %510 = arith.mulf %509, %508 : vector<2x32xf32>
    %511 = math.tanh %510 : vector<2x32xf32>
    %cst_199 = arith.constant 5.000000e-01 : f32
    %512 = vector.broadcast %cst_199 : f32 to vector<2x32xf32>
    %513 = arith.mulf %512, %511 : vector<2x32xf32>
    %cst_200 = arith.constant 5.000000e-01 : f32
    %514 = vector.broadcast %cst_200 : f32 to vector<2x32xf32>
    %515 = arith.addf %513, %514 : vector<2x32xf32>
    %516 = arith.mulf %487, %448 : vector<2x32xf32>
    %517 = arith.mulf %471, %497 : vector<2x32xf32>
    %518 = arith.addf %516, %517 : vector<2x32xf32>
    %519 = arith.mulf %495, %451 : vector<2x32xf32>
    %520 = arith.mulf %479, %499 : vector<2x32xf32>
    %521 = arith.addf %519, %520 : vector<2x32xf32>
    %522 = math.tanh %518 : vector<2x32xf32>
    %523 = arith.mulf %507, %522 : vector<2x32xf32>
    %524 = math.tanh %521 : vector<2x32xf32>
    %525 = arith.mulf %515, %524 : vector<2x32xf32>
    %c12_201 = arith.constant 12 : index
    %c0_202 = arith.constant 0 : index
    %526 = vector.load %arg22[%c12_201, %c0_202] : memref<16x64xf32, #tpu.memory_space<vmem>>, vector<2x32xf32>
    tpu.vector_store %arg22[%c12_201, %c0_202], %523 {strides = array<i32>} : memref<16x64xf32, #tpu.memory_space<vmem>>, vector<2x32xf32>,
    %c2_203 = arith.constant 2 : index
    %c32_204 = arith.constant 32 : index
    %527 = vector.load %arg22[%c2_203, %c32_204] : memref<16x64xf32, #tpu.memory_space<vmem>>, vector<2x32xf32>
    tpu.vector_store %arg22[%c2_203, %c32_204], %525 {strides = array<i32>} : memref<16x64xf32, #tpu.memory_space<vmem>>, vector<2x32xf32>,
    %528 = vector.extract_strided_slice %33 {offsets = [14, 0], sizes = [2, 128], strides = [1, 1]} : vector<16x128xf32> to vector<2x128xf32>
    %cst_205 = arith.constant dense<0.000000e+00> : vector<2x128xf32>
    %529 = tpu.matmul %523, %5, %cst_205 {dimension_numbers = #tpu.dot_dimension_numbers<[1], [0], [0], [1], [0, 0, 1, 1], [], []>} : vector<2x32xf32>, vector<32x128xf32>, vector<2x128xf32> -> vector<2x128xf32>
    %530 = arith.addf %528, %529 : vector<2x128xf32>
    %531 = vector.extract_strided_slice %36 {offsets = [0, 0], sizes = [2, 128], strides = [1, 1]} : vector<16x128xf32> to vector<2x128xf32>
    %cst_206 = arith.constant dense<0.000000e+00> : vector<2x128xf32>
    %532 = tpu.matmul %525, %8, %cst_206 {dimension_numbers = #tpu.dot_dimension_numbers<[1], [0], [0], [1], [0, 0, 1, 1], [], []>} : vector<2x32xf32>, vector<32x128xf32>, vector<2x128xf32> -> vector<2x128xf32>
    %533 = arith.addf %531, %532 : vector<2x128xf32>
    %534 = vector.extract_strided_slice %530 {offsets = [0, 0], sizes = [2, 32], strides = [1, 1]} : vector<2x128xf32> to vector<2x32xf32>
    %cst_207 = arith.constant 5.000000e-01 : f32
    %535 = vector.broadcast %cst_207 : f32 to vector<2x32xf32>
    %536 = arith.mulf %535, %534 : vector<2x32xf32>
    %537 = math.tanh %536 : vector<2x32xf32>
    %cst_208 = arith.constant 5.000000e-01 : f32
    %538 = vector.broadcast %cst_208 : f32 to vector<2x32xf32>
    %539 = arith.mulf %538, %537 : vector<2x32xf32>
    %cst_209 = arith.constant 5.000000e-01 : f32
    %540 = vector.broadcast %cst_209 : f32 to vector<2x32xf32>
    %541 = arith.addf %539, %540 : vector<2x32xf32>
    %542 = vector.extract_strided_slice %533 {offsets = [0, 0], sizes = [2, 32], strides = [1, 1]} : vector<2x128xf32> to vector<2x32xf32>
    %cst_210 = arith.constant 5.000000e-01 : f32
    %543 = vector.broadcast %cst_210 : f32 to vector<2x32xf32>
    %544 = arith.mulf %543, %542 : vector<2x32xf32>
    %545 = math.tanh %544 : vector<2x32xf32>
    %cst_211 = arith.constant 5.000000e-01 : f32
    %546 = vector.broadcast %cst_211 : f32 to vector<2x32xf32>
    %547 = arith.mulf %546, %545 : vector<2x32xf32>
    %cst_212 = arith.constant 5.000000e-01 : f32
    %548 = vector.broadcast %cst_212 : f32 to vector<2x32xf32>
    %549 = arith.addf %547, %548 : vector<2x32xf32>
    %550 = vector.extract_strided_slice %530 {offsets = [0, 32], sizes = [2, 32], strides = [1, 1]} : vector<2x128xf32> to vector<2x32xf32>
    %cst_213 = arith.constant 5.000000e-01 : f32
    %551 = vector.broadcast %cst_213 : f32 to vector<2x32xf32>
    %552 = arith.mulf %551, %550 : vector<2x32xf32>
    %553 = math.tanh %552 : vector<2x32xf32>
    %cst_214 = arith.constant 5.000000e-01 : f32
    %554 = vector.broadcast %cst_214 : f32 to vector<2x32xf32>
    %555 = arith.mulf %554, %553 : vector<2x32xf32>
    %cst_215 = arith.constant 5.000000e-01 : f32
    %556 = vector.broadcast %cst_215 : f32 to vector<2x32xf32>
    %557 = arith.addf %555, %556 : vector<2x32xf32>
    %558 = vector.extract_strided_slice %533 {offsets = [0, 32], sizes = [2, 32], strides = [1, 1]} : vector<2x128xf32> to vector<2x32xf32>
    %cst_216 = arith.constant 5.000000e-01 : f32
    %559 = vector.broadcast %cst_216 : f32 to vector<2x32xf32>
    %560 = arith.mulf %559, %558 : vector<2x32xf32>
    %561 = math.tanh %560 : vector<2x32xf32>
    %cst_217 = arith.constant 5.000000e-01 : f32
    %562 = vector.broadcast %cst_217 : f32 to vector<2x32xf32>
    %563 = arith.mulf %562, %561 : vector<2x32xf32>
    %cst_218 = arith.constant 5.000000e-01 : f32
    %564 = vector.broadcast %cst_218 : f32 to vector<2x32xf32>
    %565 = arith.addf %563, %564 : vector<2x32xf32>
    %566 = vector.extract_strided_slice %530 {offsets = [0, 64], sizes = [2, 32], strides = [1, 1]} : vector<2x128xf32> to vector<2x32xf32>
    %567 = math.tanh %566 : vector<2x32xf32>
    %568 = vector.extract_strided_slice %533 {offsets = [0, 64], sizes = [2, 32], strides = [1, 1]} : vector<2x128xf32> to vector<2x32xf32>
    %569 = math.tanh %568 : vector<2x32xf32>
    %570 = vector.extract_strided_slice %530 {offsets = [0, 96], sizes = [2, 32], strides = [1, 1]} : vector<2x128xf32> to vector<2x32xf32>
    %cst_219 = arith.constant 5.000000e-01 : f32
    %571 = vector.broadcast %cst_219 : f32 to vector<2x32xf32>
    %572 = arith.mulf %571, %570 : vector<2x32xf32>
    %573 = math.tanh %572 : vector<2x32xf32>
    %cst_220 = arith.constant 5.000000e-01 : f32
    %574 = vector.broadcast %cst_220 : f32 to vector<2x32xf32>
    %575 = arith.mulf %574, %573 : vector<2x32xf32>
    %cst_221 = arith.constant 5.000000e-01 : f32
    %576 = vector.broadcast %cst_221 : f32 to vector<2x32xf32>
    %577 = arith.addf %575, %576 : vector<2x32xf32>
    %578 = vector.extract_strided_slice %533 {offsets = [0, 96], sizes = [2, 32], strides = [1, 1]} : vector<2x128xf32> to vector<2x32xf32>
    %cst_222 = arith.constant 5.000000e-01 : f32
    %579 = vector.broadcast %cst_222 : f32 to vector<2x32xf32>
    %580 = arith.mulf %579, %578 : vector<2x32xf32>
    %581 = math.tanh %580 : vector<2x32xf32>
    %cst_223 = arith.constant 5.000000e-01 : f32
    %582 = vector.broadcast %cst_223 : f32 to vector<2x32xf32>
    %583 = arith.mulf %582, %581 : vector<2x32xf32>
    %cst_224 = arith.constant 5.000000e-01 : f32
    %584 = vector.broadcast %cst_224 : f32 to vector<2x32xf32>
    %585 = arith.addf %583, %584 : vector<2x32xf32>
    %586 = arith.mulf %557, %518 : vector<2x32xf32>
    %587 = arith.mulf %541, %567 : vector<2x32xf32>
    %588 = arith.addf %586, %587 : vector<2x32xf32>
    %589 = arith.mulf %565, %521 : vector<2x32xf32>
    %590 = arith.mulf %549, %569 : vector<2x32xf32>
    %591 = arith.addf %589, %590 : vector<2x32xf32>
    %592 = math.tanh %588 : vector<2x32xf32>
    %593 = arith.mulf %577, %592 : vector<2x32xf32>
    %594 = math.tanh %591 : vector<2x32xf32>
    %595 = arith.mulf %585, %594 : vector<2x32xf32>
    %c14_225 = arith.constant 14 : index
    %c0_226 = arith.constant 0 : index
    %596 = vector.load %arg22[%c14_225, %c0_226] : memref<16x64xf32, #tpu.memory_space<vmem>>, vector<2x32xf32>
    tpu.vector_store %arg22[%c14_225, %c0_226], %593 {strides = array<i32>} : memref<16x64xf32, #tpu.memory_space<vmem>>, vector<2x32xf32>,
    %c0_227 = arith.constant 0 : index
    %c32_228 = arith.constant 32 : index
    %597 = vector.load %arg22[%c0_227, %c32_228] : memref<16x64xf32, #tpu.memory_space<vmem>>, vector<2x32xf32>
    tpu.vector_store %arg22[%c0_227, %c32_228], %595 {strides = array<i32>} : memref<16x64xf32, #tpu.memory_space<vmem>>, vector<2x32xf32>,
    %c0_229 = arith.constant 0 : index
    %c0_230 = arith.constant 0 : index
    %598 = vector.load %arg22[%c0_229, %c0_230] : memref<16x64xf32, #tpu.memory_space<vmem>>, vector<16x64xf32>
    %cst_231 = arith.constant dense<0.000000e+00> : vector<16x128xf32>
    %599 = tpu.matmul %598, %10, %cst_231 {dimension_numbers = #tpu.dot_dimension_numbers<[1], [0], [0], [1], [0, 0, 1, 1], [], []>} : vector<16x64xf32>, vector<64x128xf32>, vector<16x128xf32> -> vector<16x128xf32>
    %600 = vector.broadcast %12 : vector<1x128xf32> to vector<16x128xf32>
    %601 = arith.addf %599, %600 : vector<16x128xf32>
    %cst_232 = arith.constant dense<0.000000e+00> : vector<16x128xf32>
    %602 = tpu.matmul %598, %13, %cst_232 {dimension_numbers = #tpu.dot_dimension_numbers<[1], [0], [0], [1], [0, 0, 1, 1], [], []>} : vector<16x64xf32>, vector<64x128xf32>, vector<16x128xf32> -> vector<16x128xf32>
    %603 = vector.broadcast %15 : vector<1x128xf32> to vector<16x128xf32>
    %604 = arith.addf %602, %603 : vector<16x128xf32>
    %cst_233 = arith.constant 0.000000e+00 : f32
    %605 = vector.broadcast %cst_233 : f32 to vector<2x32xf32>
    %606 = vector.extract_strided_slice %601 {offsets = [0, 0], sizes = [2, 128], strides = [1, 1]} : vector<16x128xf32> to vector<2x128xf32>
    %cst_234 = arith.constant dense<0.000000e+00> : vector<2x128xf32>
    %607 = tpu.matmul %605, %11, %cst_234 {dimension_numbers = #tpu.dot_dimension_numbers<[1], [0], [0], [1], [0, 0, 1, 1], [], []>} : vector<2x32xf32>, vector<32x128xf32>, vector<2x128xf32> -> vector<2x128xf32>
    %608 = arith.addf %606, %607 : vector<2x128xf32>
    %609 = vector.extract_strided_slice %604 {offsets = [14, 0], sizes = [2, 128], strides = [1, 1]} : vector<16x128xf32> to vector<2x128xf32>
    %cst_235 = arith.constant dense<0.000000e+00> : vector<2x128xf32>
    %610 = tpu.matmul %605, %14, %cst_235 {dimension_numbers = #tpu.dot_dimension_numbers<[1], [0], [0], [1], [0, 0, 1, 1], [], []>} : vector<2x32xf32>, vector<32x128xf32>, vector<2x128xf32> -> vector<2x128xf32>
    %611 = arith.addf %609, %610 : vector<2x128xf32>
    %612 = vector.extract_strided_slice %608 {offsets = [0, 0], sizes = [2, 32], strides = [1, 1]} : vector<2x128xf32> to vector<2x32xf32>
    %cst_236 = arith.constant 5.000000e-01 : f32
    %613 = vector.broadcast %cst_236 : f32 to vector<2x32xf32>
    %614 = arith.mulf %613, %612 : vector<2x32xf32>
    %615 = math.tanh %614 : vector<2x32xf32>
    %cst_237 = arith.constant 5.000000e-01 : f32
    %616 = vector.broadcast %cst_237 : f32 to vector<2x32xf32>
    %617 = arith.mulf %616, %615 : vector<2x32xf32>
    %cst_238 = arith.constant 5.000000e-01 : f32
    %618 = vector.broadcast %cst_238 : f32 to vector<2x32xf32>
    %619 = arith.addf %617, %618 : vector<2x32xf32>
    %620 = vector.extract_strided_slice %611 {offsets = [0, 0], sizes = [2, 32], strides = [1, 1]} : vector<2x128xf32> to vector<2x32xf32>
    %cst_239 = arith.constant 5.000000e-01 : f32
    %621 = vector.broadcast %cst_239 : f32 to vector<2x32xf32>
    %622 = arith.mulf %621, %620 : vector<2x32xf32>
    %623 = math.tanh %622 : vector<2x32xf32>
    %cst_240 = arith.constant 5.000000e-01 : f32
    %624 = vector.broadcast %cst_240 : f32 to vector<2x32xf32>
    %625 = arith.mulf %624, %623 : vector<2x32xf32>
    %cst_241 = arith.constant 5.000000e-01 : f32
    %626 = vector.broadcast %cst_241 : f32 to vector<2x32xf32>
    %627 = arith.addf %625, %626 : vector<2x32xf32>
    %628 = vector.extract_strided_slice %608 {offsets = [0, 32], sizes = [2, 32], strides = [1, 1]} : vector<2x128xf32> to vector<2x32xf32>
    %cst_242 = arith.constant 5.000000e-01 : f32
    %629 = vector.broadcast %cst_242 : f32 to vector<2x32xf32>
    %630 = arith.mulf %629, %628 : vector<2x32xf32>
    %631 = math.tanh %630 : vector<2x32xf32>
    %cst_243 = arith.constant 5.000000e-01 : f32
    %632 = vector.broadcast %cst_243 : f32 to vector<2x32xf32>
    %633 = arith.mulf %632, %631 : vector<2x32xf32>
    %cst_244 = arith.constant 5.000000e-01 : f32
    %634 = vector.broadcast %cst_244 : f32 to vector<2x32xf32>
    %635 = arith.addf %633, %634 : vector<2x32xf32>
    %636 = vector.extract_strided_slice %611 {offsets = [0, 32], sizes = [2, 32], strides = [1, 1]} : vector<2x128xf32> to vector<2x32xf32>
    %cst_245 = arith.constant 5.000000e-01 : f32
    %637 = vector.broadcast %cst_245 : f32 to vector<2x32xf32>
    %638 = arith.mulf %637, %636 : vector<2x32xf32>
    %639 = math.tanh %638 : vector<2x32xf32>
    %cst_246 = arith.constant 5.000000e-01 : f32
    %640 = vector.broadcast %cst_246 : f32 to vector<2x32xf32>
    %641 = arith.mulf %640, %639 : vector<2x32xf32>
    %cst_247 = arith.constant 5.000000e-01 : f32
    %642 = vector.broadcast %cst_247 : f32 to vector<2x32xf32>
    %643 = arith.addf %641, %642 : vector<2x32xf32>
    %644 = vector.extract_strided_slice %608 {offsets = [0, 64], sizes = [2, 32], strides = [1, 1]} : vector<2x128xf32> to vector<2x32xf32>
    %645 = math.tanh %644 : vector<2x32xf32>
    %646 = vector.extract_strided_slice %611 {offsets = [0, 64], sizes = [2, 32], strides = [1, 1]} : vector<2x128xf32> to vector<2x32xf32>
    %647 = math.tanh %646 : vector<2x32xf32>
    %648 = vector.extract_strided_slice %608 {offsets = [0, 96], sizes = [2, 32], strides = [1, 1]} : vector<2x128xf32> to vector<2x32xf32>
    %cst_248 = arith.constant 5.000000e-01 : f32
    %649 = vector.broadcast %cst_248 : f32 to vector<2x32xf32>
    %650 = arith.mulf %649, %648 : vector<2x32xf32>
    %651 = math.tanh %650 : vector<2x32xf32>
    %cst_249 = arith.constant 5.000000e-01 : f32
    %652 = vector.broadcast %cst_249 : f32 to vector<2x32xf32>
    %653 = arith.mulf %652, %651 : vector<2x32xf32>
    %cst_250 = arith.constant 5.000000e-01 : f32
    %654 = vector.broadcast %cst_250 : f32 to vector<2x32xf32>
    %655 = arith.addf %653, %654 : vector<2x32xf32>
    %656 = vector.extract_strided_slice %611 {offsets = [0, 96], sizes = [2, 32], strides = [1, 1]} : vector<2x128xf32> to vector<2x32xf32>
    %cst_251 = arith.constant 5.000000e-01 : f32
    %657 = vector.broadcast %cst_251 : f32 to vector<2x32xf32>
    %658 = arith.mulf %657, %656 : vector<2x32xf32>
    %659 = math.tanh %658 : vector<2x32xf32>
    %cst_252 = arith.constant 5.000000e-01 : f32
    %660 = vector.broadcast %cst_252 : f32 to vector<2x32xf32>
    %661 = arith.mulf %660, %659 : vector<2x32xf32>
    %cst_253 = arith.constant 5.000000e-01 : f32
    %662 = vector.broadcast %cst_253 : f32 to vector<2x32xf32>
    %663 = arith.addf %661, %662 : vector<2x32xf32>
    %664 = arith.mulf %635, %605 : vector<2x32xf32>
    %665 = arith.mulf %619, %645 : vector<2x32xf32>
    %666 = arith.addf %664, %665 : vector<2x32xf32>
    %667 = arith.mulf %643, %605 : vector<2x32xf32>
    %668 = arith.mulf %627, %647 : vector<2x32xf32>
    %669 = arith.addf %667, %668 : vector<2x32xf32>
    %670 = math.tanh %666 : vector<2x32xf32>
    %671 = arith.mulf %655, %670 : vector<2x32xf32>
    %672 = math.tanh %669 : vector<2x32xf32>
    %673 = arith.mulf %663, %672 : vector<2x32xf32>
    %674 = arith.addf %605, %671 : vector<2x32xf32>
    %675 = arith.addf %674, %673 : vector<2x32xf32>
    %676 = vector.extract_strided_slice %601 {offsets = [2, 0], sizes = [2, 128], strides = [1, 1]} : vector<16x128xf32> to vector<2x128xf32>
    %cst_254 = arith.constant dense<0.000000e+00> : vector<2x128xf32>
    %677 = tpu.matmul %671, %11, %cst_254 {dimension_numbers = #tpu.dot_dimension_numbers<[1], [0], [0], [1], [0, 0, 1, 1], [], []>} : vector<2x32xf32>, vector<32x128xf32>, vector<2x128xf32> -> vector<2x128xf32>
    %678 = arith.addf %676, %677 : vector<2x128xf32>
    %679 = vector.extract_strided_slice %604 {offsets = [12, 0], sizes = [2, 128], strides = [1, 1]} : vector<16x128xf32> to vector<2x128xf32>
    %cst_255 = arith.constant dense<0.000000e+00> : vector<2x128xf32>
    %680 = tpu.matmul %673, %14, %cst_255 {dimension_numbers = #tpu.dot_dimension_numbers<[1], [0], [0], [1], [0, 0, 1, 1], [], []>} : vector<2x32xf32>, vector<32x128xf32>, vector<2x128xf32> -> vector<2x128xf32>
    %681 = arith.addf %679, %680 : vector<2x128xf32>
    %682 = vector.extract_strided_slice %678 {offsets = [0, 0], sizes = [2, 32], strides = [1, 1]} : vector<2x128xf32> to vector<2x32xf32>
    %cst_256 = arith.constant 5.000000e-01 : f32
    %683 = vector.broadcast %cst_256 : f32 to vector<2x32xf32>
    %684 = arith.mulf %683, %682 : vector<2x32xf32>
    %685 = math.tanh %684 : vector<2x32xf32>
    %cst_257 = arith.constant 5.000000e-01 : f32
    %686 = vector.broadcast %cst_257 : f32 to vector<2x32xf32>
    %687 = arith.mulf %686, %685 : vector<2x32xf32>
    %cst_258 = arith.constant 5.000000e-01 : f32
    %688 = vector.broadcast %cst_258 : f32 to vector<2x32xf32>
    %689 = arith.addf %687, %688 : vector<2x32xf32>
    %690 = vector.extract_strided_slice %681 {offsets = [0, 0], sizes = [2, 32], strides = [1, 1]} : vector<2x128xf32> to vector<2x32xf32>
    %cst_259 = arith.constant 5.000000e-01 : f32
    %691 = vector.broadcast %cst_259 : f32 to vector<2x32xf32>
    %692 = arith.mulf %691, %690 : vector<2x32xf32>
    %693 = math.tanh %692 : vector<2x32xf32>
    %cst_260 = arith.constant 5.000000e-01 : f32
    %694 = vector.broadcast %cst_260 : f32 to vector<2x32xf32>
    %695 = arith.mulf %694, %693 : vector<2x32xf32>
    %cst_261 = arith.constant 5.000000e-01 : f32
    %696 = vector.broadcast %cst_261 : f32 to vector<2x32xf32>
    %697 = arith.addf %695, %696 : vector<2x32xf32>
    %698 = vector.extract_strided_slice %678 {offsets = [0, 32], sizes = [2, 32], strides = [1, 1]} : vector<2x128xf32> to vector<2x32xf32>
    %cst_262 = arith.constant 5.000000e-01 : f32
    %699 = vector.broadcast %cst_262 : f32 to vector<2x32xf32>
    %700 = arith.mulf %699, %698 : vector<2x32xf32>
    %701 = math.tanh %700 : vector<2x32xf32>
    %cst_263 = arith.constant 5.000000e-01 : f32
    %702 = vector.broadcast %cst_263 : f32 to vector<2x32xf32>
    %703 = arith.mulf %702, %701 : vector<2x32xf32>
    %cst_264 = arith.constant 5.000000e-01 : f32
    %704 = vector.broadcast %cst_264 : f32 to vector<2x32xf32>
    %705 = arith.addf %703, %704 : vector<2x32xf32>
    %706 = vector.extract_strided_slice %681 {offsets = [0, 32], sizes = [2, 32], strides = [1, 1]} : vector<2x128xf32> to vector<2x32xf32>
    %cst_265 = arith.constant 5.000000e-01 : f32
    %707 = vector.broadcast %cst_265 : f32 to vector<2x32xf32>
    %708 = arith.mulf %707, %706 : vector<2x32xf32>
    %709 = math.tanh %708 : vector<2x32xf32>
    %cst_266 = arith.constant 5.000000e-01 : f32
    %710 = vector.broadcast %cst_266 : f32 to vector<2x32xf32>
    %711 = arith.mulf %710, %709 : vector<2x32xf32>
    %cst_267 = arith.constant 5.000000e-01 : f32
    %712 = vector.broadcast %cst_267 : f32 to vector<2x32xf32>
    %713 = arith.addf %711, %712 : vector<2x32xf32>
    %714 = vector.extract_strided_slice %678 {offsets = [0, 64], sizes = [2, 32], strides = [1, 1]} : vector<2x128xf32> to vector<2x32xf32>
    %715 = math.tanh %714 : vector<2x32xf32>
    %716 = vector.extract_strided_slice %681 {offsets = [0, 64], sizes = [2, 32], strides = [1, 1]} : vector<2x128xf32> to vector<2x32xf32>
    %717 = math.tanh %716 : vector<2x32xf32>
    %718 = vector.extract_strided_slice %678 {offsets = [0, 96], sizes = [2, 32], strides = [1, 1]} : vector<2x128xf32> to vector<2x32xf32>
    %cst_268 = arith.constant 5.000000e-01 : f32
    %719 = vector.broadcast %cst_268 : f32 to vector<2x32xf32>
    %720 = arith.mulf %719, %718 : vector<2x32xf32>
    %721 = math.tanh %720 : vector<2x32xf32>
    %cst_269 = arith.constant 5.000000e-01 : f32
    %722 = vector.broadcast %cst_269 : f32 to vector<2x32xf32>
    %723 = arith.mulf %722, %721 : vector<2x32xf32>
    %cst_270 = arith.constant 5.000000e-01 : f32
    %724 = vector.broadcast %cst_270 : f32 to vector<2x32xf32>
    %725 = arith.addf %723, %724 : vector<2x32xf32>
    %726 = vector.extract_strided_slice %681 {offsets = [0, 96], sizes = [2, 32], strides = [1, 1]} : vector<2x128xf32> to vector<2x32xf32>
    %cst_271 = arith.constant 5.000000e-01 : f32
    %727 = vector.broadcast %cst_271 : f32 to vector<2x32xf32>
    %728 = arith.mulf %727, %726 : vector<2x32xf32>
    %729 = math.tanh %728 : vector<2x32xf32>
    %cst_272 = arith.constant 5.000000e-01 : f32
    %730 = vector.broadcast %cst_272 : f32 to vector<2x32xf32>
    %731 = arith.mulf %730, %729 : vector<2x32xf32>
    %cst_273 = arith.constant 5.000000e-01 : f32
    %732 = vector.broadcast %cst_273 : f32 to vector<2x32xf32>
    %733 = arith.addf %731, %732 : vector<2x32xf32>
    %734 = arith.mulf %705, %666 : vector<2x32xf32>
    %735 = arith.mulf %689, %715 : vector<2x32xf32>
    %736 = arith.addf %734, %735 : vector<2x32xf32>
    %737 = arith.mulf %713, %669 : vector<2x32xf32>
    %738 = arith.mulf %697, %717 : vector<2x32xf32>
    %739 = arith.addf %737, %738 : vector<2x32xf32>
    %740 = math.tanh %736 : vector<2x32xf32>
    %741 = arith.mulf %725, %740 : vector<2x32xf32>
    %742 = math.tanh %739 : vector<2x32xf32>
    %743 = arith.mulf %733, %742 : vector<2x32xf32>
    %744 = arith.addf %675, %741 : vector<2x32xf32>
    %745 = arith.addf %744, %743 : vector<2x32xf32>
    %746 = vector.extract_strided_slice %601 {offsets = [4, 0], sizes = [2, 128], strides = [1, 1]} : vector<16x128xf32> to vector<2x128xf32>
    %cst_274 = arith.constant dense<0.000000e+00> : vector<2x128xf32>
    %747 = tpu.matmul %741, %11, %cst_274 {dimension_numbers = #tpu.dot_dimension_numbers<[1], [0], [0], [1], [0, 0, 1, 1], [], []>} : vector<2x32xf32>, vector<32x128xf32>, vector<2x128xf32> -> vector<2x128xf32>
    %748 = arith.addf %746, %747 : vector<2x128xf32>
    %749 = vector.extract_strided_slice %604 {offsets = [10, 0], sizes = [2, 128], strides = [1, 1]} : vector<16x128xf32> to vector<2x128xf32>
    %cst_275 = arith.constant dense<0.000000e+00> : vector<2x128xf32>
    %750 = tpu.matmul %743, %14, %cst_275 {dimension_numbers = #tpu.dot_dimension_numbers<[1], [0], [0], [1], [0, 0, 1, 1], [], []>} : vector<2x32xf32>, vector<32x128xf32>, vector<2x128xf32> -> vector<2x128xf32>
    %751 = arith.addf %749, %750 : vector<2x128xf32>
    %752 = vector.extract_strided_slice %748 {offsets = [0, 0], sizes = [2, 32], strides = [1, 1]} : vector<2x128xf32> to vector<2x32xf32>
    %cst_276 = arith.constant 5.000000e-01 : f32
    %753 = vector.broadcast %cst_276 : f32 to vector<2x32xf32>
    %754 = arith.mulf %753, %752 : vector<2x32xf32>
    %755 = math.tanh %754 : vector<2x32xf32>
    %cst_277 = arith.constant 5.000000e-01 : f32
    %756 = vector.broadcast %cst_277 : f32 to vector<2x32xf32>
    %757 = arith.mulf %756, %755 : vector<2x32xf32>
    %cst_278 = arith.constant 5.000000e-01 : f32
    %758 = vector.broadcast %cst_278 : f32 to vector<2x32xf32>
    %759 = arith.addf %757, %758 : vector<2x32xf32>
    %760 = vector.extract_strided_slice %751 {offsets = [0, 0], sizes = [2, 32], strides = [1, 1]} : vector<2x128xf32> to vector<2x32xf32>
    %cst_279 = arith.constant 5.000000e-01 : f32
    %761 = vector.broadcast %cst_279 : f32 to vector<2x32xf32>
    %762 = arith.mulf %761, %760 : vector<2x32xf32>
    %763 = math.tanh %762 : vector<2x32xf32>
    %cst_280 = arith.constant 5.000000e-01 : f32
    %764 = vector.broadcast %cst_280 : f32 to vector<2x32xf32>
    %765 = arith.mulf %764, %763 : vector<2x32xf32>
    %cst_281 = arith.constant 5.000000e-01 : f32
    %766 = vector.broadcast %cst_281 : f32 to vector<2x32xf32>
    %767 = arith.addf %765, %766 : vector<2x32xf32>
    %768 = vector.extract_strided_slice %748 {offsets = [0, 32], sizes = [2, 32], strides = [1, 1]} : vector<2x128xf32> to vector<2x32xf32>
    %cst_282 = arith.constant 5.000000e-01 : f32
    %769 = vector.broadcast %cst_282 : f32 to vector<2x32xf32>
    %770 = arith.mulf %769, %768 : vector<2x32xf32>
    %771 = math.tanh %770 : vector<2x32xf32>
    %cst_283 = arith.constant 5.000000e-01 : f32
    %772 = vector.broadcast %cst_283 : f32 to vector<2x32xf32>
    %773 = arith.mulf %772, %771 : vector<2x32xf32>
    %cst_284 = arith.constant 5.000000e-01 : f32
    %774 = vector.broadcast %cst_284 : f32 to vector<2x32xf32>
    %775 = arith.addf %773, %774 : vector<2x32xf32>
    %776 = vector.extract_strided_slice %751 {offsets = [0, 32], sizes = [2, 32], strides = [1, 1]} : vector<2x128xf32> to vector<2x32xf32>
    %cst_285 = arith.constant 5.000000e-01 : f32
    %777 = vector.broadcast %cst_285 : f32 to vector<2x32xf32>
    %778 = arith.mulf %777, %776 : vector<2x32xf32>
    %779 = math.tanh %778 : vector<2x32xf32>
    %cst_286 = arith.constant 5.000000e-01 : f32
    %780 = vector.broadcast %cst_286 : f32 to vector<2x32xf32>
    %781 = arith.mulf %780, %779 : vector<2x32xf32>
    %cst_287 = arith.constant 5.000000e-01 : f32
    %782 = vector.broadcast %cst_287 : f32 to vector<2x32xf32>
    %783 = arith.addf %781, %782 : vector<2x32xf32>
    %784 = vector.extract_strided_slice %748 {offsets = [0, 64], sizes = [2, 32], strides = [1, 1]} : vector<2x128xf32> to vector<2x32xf32>
    %785 = math.tanh %784 : vector<2x32xf32>
    %786 = vector.extract_strided_slice %751 {offsets = [0, 64], sizes = [2, 32], strides = [1, 1]} : vector<2x128xf32> to vector<2x32xf32>
    %787 = math.tanh %786 : vector<2x32xf32>
    %788 = vector.extract_strided_slice %748 {offsets = [0, 96], sizes = [2, 32], strides = [1, 1]} : vector<2x128xf32> to vector<2x32xf32>
    %cst_288 = arith.constant 5.000000e-01 : f32
    %789 = vector.broadcast %cst_288 : f32 to vector<2x32xf32>
    %790 = arith.mulf %789, %788 : vector<2x32xf32>
    %791 = math.tanh %790 : vector<2x32xf32>
    %cst_289 = arith.constant 5.000000e-01 : f32
    %792 = vector.broadcast %cst_289 : f32 to vector<2x32xf32>
    %793 = arith.mulf %792, %791 : vector<2x32xf32>
    %cst_290 = arith.constant 5.000000e-01 : f32
    %794 = vector.broadcast %cst_290 : f32 to vector<2x32xf32>
    %795 = arith.addf %793, %794 : vector<2x32xf32>
    %796 = vector.extract_strided_slice %751 {offsets = [0, 96], sizes = [2, 32], strides = [1, 1]} : vector<2x128xf32> to vector<2x32xf32>
    %cst_291 = arith.constant 5.000000e-01 : f32
    %797 = vector.broadcast %cst_291 : f32 to vector<2x32xf32>
    %798 = arith.mulf %797, %796 : vector<2x32xf32>
    %799 = math.tanh %798 : vector<2x32xf32>
    %cst_292 = arith.constant 5.000000e-01 : f32
    %800 = vector.broadcast %cst_292 : f32 to vector<2x32xf32>
    %801 = arith.mulf %800, %799 : vector<2x32xf32>
    %cst_293 = arith.constant 5.000000e-01 : f32
    %802 = vector.broadcast %cst_293 : f32 to vector<2x32xf32>
    %803 = arith.addf %801, %802 : vector<2x32xf32>
    %804 = arith.mulf %775, %736 : vector<2x32xf32>
    %805 = arith.mulf %759, %785 : vector<2x32xf32>
    %806 = arith.addf %804, %805 : vector<2x32xf32>
    %807 = arith.mulf %783, %739 : vector<2x32xf32>
    %808 = arith.mulf %767, %787 : vector<2x32xf32>
    %809 = arith.addf %807, %808 : vector<2x32xf32>
    %810 = math.tanh %806 : vector<2x32xf32>
    %811 = arith.mulf %795, %810 : vector<2x32xf32>
    %812 = math.tanh %809 : vector<2x32xf32>
    %813 = arith.mulf %803, %812 : vector<2x32xf32>
    %814 = arith.addf %745, %811 : vector<2x32xf32>
    %815 = arith.addf %814, %813 : vector<2x32xf32>
    %816 = vector.extract_strided_slice %601 {offsets = [6, 0], sizes = [2, 128], strides = [1, 1]} : vector<16x128xf32> to vector<2x128xf32>
    %cst_294 = arith.constant dense<0.000000e+00> : vector<2x128xf32>
    %817 = tpu.matmul %811, %11, %cst_294 {dimension_numbers = #tpu.dot_dimension_numbers<[1], [0], [0], [1], [0, 0, 1, 1], [], []>} : vector<2x32xf32>, vector<32x128xf32>, vector<2x128xf32> -> vector<2x128xf32>
    %818 = arith.addf %816, %817 : vector<2x128xf32>
    %819 = vector.extract_strided_slice %604 {offsets = [8, 0], sizes = [2, 128], strides = [1, 1]} : vector<16x128xf32> to vector<2x128xf32>
    %cst_295 = arith.constant dense<0.000000e+00> : vector<2x128xf32>
    %820 = tpu.matmul %813, %14, %cst_295 {dimension_numbers = #tpu.dot_dimension_numbers<[1], [0], [0], [1], [0, 0, 1, 1], [], []>} : vector<2x32xf32>, vector<32x128xf32>, vector<2x128xf32> -> vector<2x128xf32>
    %821 = arith.addf %819, %820 : vector<2x128xf32>
    %822 = vector.extract_strided_slice %818 {offsets = [0, 0], sizes = [2, 32], strides = [1, 1]} : vector<2x128xf32> to vector<2x32xf32>
    %cst_296 = arith.constant 5.000000e-01 : f32
    %823 = vector.broadcast %cst_296 : f32 to vector<2x32xf32>
    %824 = arith.mulf %823, %822 : vector<2x32xf32>
    %825 = math.tanh %824 : vector<2x32xf32>
    %cst_297 = arith.constant 5.000000e-01 : f32
    %826 = vector.broadcast %cst_297 : f32 to vector<2x32xf32>
    %827 = arith.mulf %826, %825 : vector<2x32xf32>
    %cst_298 = arith.constant 5.000000e-01 : f32
    %828 = vector.broadcast %cst_298 : f32 to vector<2x32xf32>
    %829 = arith.addf %827, %828 : vector<2x32xf32>
    %830 = vector.extract_strided_slice %821 {offsets = [0, 0], sizes = [2, 32], strides = [1, 1]} : vector<2x128xf32> to vector<2x32xf32>
    %cst_299 = arith.constant 5.000000e-01 : f32
    %831 = vector.broadcast %cst_299 : f32 to vector<2x32xf32>
    %832 = arith.mulf %831, %830 : vector<2x32xf32>
    %833 = math.tanh %832 : vector<2x32xf32>
    %cst_300 = arith.constant 5.000000e-01 : f32
    %834 = vector.broadcast %cst_300 : f32 to vector<2x32xf32>
    %835 = arith.mulf %834, %833 : vector<2x32xf32>
    %cst_301 = arith.constant 5.000000e-01 : f32
    %836 = vector.broadcast %cst_301 : f32 to vector<2x32xf32>
    %837 = arith.addf %835, %836 : vector<2x32xf32>
    %838 = vector.extract_strided_slice %818 {offsets = [0, 32], sizes = [2, 32], strides = [1, 1]} : vector<2x128xf32> to vector<2x32xf32>
    %cst_302 = arith.constant 5.000000e-01 : f32
    %839 = vector.broadcast %cst_302 : f32 to vector<2x32xf32>
    %840 = arith.mulf %839, %838 : vector<2x32xf32>
    %841 = math.tanh %840 : vector<2x32xf32>
    %cst_303 = arith.constant 5.000000e-01 : f32
    %842 = vector.broadcast %cst_303 : f32 to vector<2x32xf32>
    %843 = arith.mulf %842, %841 : vector<2x32xf32>
    %cst_304 = arith.constant 5.000000e-01 : f32
    %844 = vector.broadcast %cst_304 : f32 to vector<2x32xf32>
    %845 = arith.addf %843, %844 : vector<2x32xf32>
    %846 = vector.extract_strided_slice %821 {offsets = [0, 32], sizes = [2, 32], strides = [1, 1]} : vector<2x128xf32> to vector<2x32xf32>
    %cst_305 = arith.constant 5.000000e-01 : f32
    %847 = vector.broadcast %cst_305 : f32 to vector<2x32xf32>
    %848 = arith.mulf %847, %846 : vector<2x32xf32>
    %849 = math.tanh %848 : vector<2x32xf32>
    %cst_306 = arith.constant 5.000000e-01 : f32
    %850 = vector.broadcast %cst_306 : f32 to vector<2x32xf32>
    %851 = arith.mulf %850, %849 : vector<2x32xf32>
    %cst_307 = arith.constant 5.000000e-01 : f32
    %852 = vector.broadcast %cst_307 : f32 to vector<2x32xf32>
    %853 = arith.addf %851, %852 : vector<2x32xf32>
    %854 = vector.extract_strided_slice %818 {offsets = [0, 64], sizes = [2, 32], strides = [1, 1]} : vector<2x128xf32> to vector<2x32xf32>
    %855 = math.tanh %854 : vector<2x32xf32>
    %856 = vector.extract_strided_slice %821 {offsets = [0, 64], sizes = [2, 32], strides = [1, 1]} : vector<2x128xf32> to vector<2x32xf32>
    %857 = math.tanh %856 : vector<2x32xf32>
    %858 = vector.extract_strided_slice %818 {offsets = [0, 96], sizes = [2, 32], strides = [1, 1]} : vector<2x128xf32> to vector<2x32xf32>
    %cst_308 = arith.constant 5.000000e-01 : f32
    %859 = vector.broadcast %cst_308 : f32 to vector<2x32xf32>
    %860 = arith.mulf %859, %858 : vector<2x32xf32>
    %861 = math.tanh %860 : vector<2x32xf32>
    %cst_309 = arith.constant 5.000000e-01 : f32
    %862 = vector.broadcast %cst_309 : f32 to vector<2x32xf32>
    %863 = arith.mulf %862, %861 : vector<2x32xf32>
    %cst_310 = arith.constant 5.000000e-01 : f32
    %864 = vector.broadcast %cst_310 : f32 to vector<2x32xf32>
    %865 = arith.addf %863, %864 : vector<2x32xf32>
    %866 = vector.extract_strided_slice %821 {offsets = [0, 96], sizes = [2, 32], strides = [1, 1]} : vector<2x128xf32> to vector<2x32xf32>
    %cst_311 = arith.constant 5.000000e-01 : f32
    %867 = vector.broadcast %cst_311 : f32 to vector<2x32xf32>
    %868 = arith.mulf %867, %866 : vector<2x32xf32>
    %869 = math.tanh %868 : vector<2x32xf32>
    %cst_312 = arith.constant 5.000000e-01 : f32
    %870 = vector.broadcast %cst_312 : f32 to vector<2x32xf32>
    %871 = arith.mulf %870, %869 : vector<2x32xf32>
    %cst_313 = arith.constant 5.000000e-01 : f32
    %872 = vector.broadcast %cst_313 : f32 to vector<2x32xf32>
    %873 = arith.addf %871, %872 : vector<2x32xf32>
    %874 = arith.mulf %845, %806 : vector<2x32xf32>
    %875 = arith.mulf %829, %855 : vector<2x32xf32>
    %876 = arith.addf %874, %875 : vector<2x32xf32>
    %877 = arith.mulf %853, %809 : vector<2x32xf32>
    %878 = arith.mulf %837, %857 : vector<2x32xf32>
    %879 = arith.addf %877, %878 : vector<2x32xf32>
    %880 = math.tanh %876 : vector<2x32xf32>
    %881 = arith.mulf %865, %880 : vector<2x32xf32>
    %882 = math.tanh %879 : vector<2x32xf32>
    %883 = arith.mulf %873, %882 : vector<2x32xf32>
    %884 = arith.addf %815, %881 : vector<2x32xf32>
    %885 = arith.addf %884, %883 : vector<2x32xf32>
    %886 = vector.extract_strided_slice %601 {offsets = [8, 0], sizes = [2, 128], strides = [1, 1]} : vector<16x128xf32> to vector<2x128xf32>
    %cst_314 = arith.constant dense<0.000000e+00> : vector<2x128xf32>
    %887 = tpu.matmul %881, %11, %cst_314 {dimension_numbers = #tpu.dot_dimension_numbers<[1], [0], [0], [1], [0, 0, 1, 1], [], []>} : vector<2x32xf32>, vector<32x128xf32>, vector<2x128xf32> -> vector<2x128xf32>
    %888 = arith.addf %886, %887 : vector<2x128xf32>
    %889 = vector.extract_strided_slice %604 {offsets = [6, 0], sizes = [2, 128], strides = [1, 1]} : vector<16x128xf32> to vector<2x128xf32>
    %cst_315 = arith.constant dense<0.000000e+00> : vector<2x128xf32>
    %890 = tpu.matmul %883, %14, %cst_315 {dimension_numbers = #tpu.dot_dimension_numbers<[1], [0], [0], [1], [0, 0, 1, 1], [], []>} : vector<2x32xf32>, vector<32x128xf32>, vector<2x128xf32> -> vector<2x128xf32>
    %891 = arith.addf %889, %890 : vector<2x128xf32>
    %892 = vector.extract_strided_slice %888 {offsets = [0, 0], sizes = [2, 32], strides = [1, 1]} : vector<2x128xf32> to vector<2x32xf32>
    %cst_316 = arith.constant 5.000000e-01 : f32
    %893 = vector.broadcast %cst_316 : f32 to vector<2x32xf32>
    %894 = arith.mulf %893, %892 : vector<2x32xf32>
    %895 = math.tanh %894 : vector<2x32xf32>
    %cst_317 = arith.constant 5.000000e-01 : f32
    %896 = vector.broadcast %cst_317 : f32 to vector<2x32xf32>
    %897 = arith.mulf %896, %895 : vector<2x32xf32>
    %cst_318 = arith.constant 5.000000e-01 : f32
    %898 = vector.broadcast %cst_318 : f32 to vector<2x32xf32>
    %899 = arith.addf %897, %898 : vector<2x32xf32>
    %900 = vector.extract_strided_slice %891 {offsets = [0, 0], sizes = [2, 32], strides = [1, 1]} : vector<2x128xf32> to vector<2x32xf32>
    %cst_319 = arith.constant 5.000000e-01 : f32
    %901 = vector.broadcast %cst_319 : f32 to vector<2x32xf32>
    %902 = arith.mulf %901, %900 : vector<2x32xf32>
    %903 = math.tanh %902 : vector<2x32xf32>
    %cst_320 = arith.constant 5.000000e-01 : f32
    %904 = vector.broadcast %cst_320 : f32 to vector<2x32xf32>
    %905 = arith.mulf %904, %903 : vector<2x32xf32>
    %cst_321 = arith.constant 5.000000e-01 : f32
    %906 = vector.broadcast %cst_321 : f32 to vector<2x32xf32>
    %907 = arith.addf %905, %906 : vector<2x32xf32>
    %908 = vector.extract_strided_slice %888 {offsets = [0, 32], sizes = [2, 32], strides = [1, 1]} : vector<2x128xf32> to vector<2x32xf32>
    %cst_322 = arith.constant 5.000000e-01 : f32
    %909 = vector.broadcast %cst_322 : f32 to vector<2x32xf32>
    %910 = arith.mulf %909, %908 : vector<2x32xf32>
    %911 = math.tanh %910 : vector<2x32xf32>
    %cst_323 = arith.constant 5.000000e-01 : f32
    %912 = vector.broadcast %cst_323 : f32 to vector<2x32xf32>
    %913 = arith.mulf %912, %911 : vector<2x32xf32>
    %cst_324 = arith.constant 5.000000e-01 : f32
    %914 = vector.broadcast %cst_324 : f32 to vector<2x32xf32>
    %915 = arith.addf %913, %914 : vector<2x32xf32>
    %916 = vector.extract_strided_slice %891 {offsets = [0, 32], sizes = [2, 32], strides = [1, 1]} : vector<2x128xf32> to vector<2x32xf32>
    %cst_325 = arith.constant 5.000000e-01 : f32
    %917 = vector.broadcast %cst_325 : f32 to vector<2x32xf32>
    %918 = arith.mulf %917, %916 : vector<2x32xf32>
    %919 = math.tanh %918 : vector<2x32xf32>
    %cst_326 = arith.constant 5.000000e-01 : f32
    %920 = vector.broadcast %cst_326 : f32 to vector<2x32xf32>
    %921 = arith.mulf %920, %919 : vector<2x32xf32>
    %cst_327 = arith.constant 5.000000e-01 : f32
    %922 = vector.broadcast %cst_327 : f32 to vector<2x32xf32>
    %923 = arith.addf %921, %922 : vector<2x32xf32>
    %924 = vector.extract_strided_slice %888 {offsets = [0, 64], sizes = [2, 32], strides = [1, 1]} : vector<2x128xf32> to vector<2x32xf32>
    %925 = math.tanh %924 : vector<2x32xf32>
    %926 = vector.extract_strided_slice %891 {offsets = [0, 64], sizes = [2, 32], strides = [1, 1]} : vector<2x128xf32> to vector<2x32xf32>
    %927 = math.tanh %926 : vector<2x32xf32>
    %928 = vector.extract_strided_slice %888 {offsets = [0, 96], sizes = [2, 32], strides = [1, 1]} : vector<2x128xf32> to vector<2x32xf32>
    %cst_328 = arith.constant 5.000000e-01 : f32
    %929 = vector.broadcast %cst_328 : f32 to vector<2x32xf32>
    %930 = arith.mulf %929, %928 : vector<2x32xf32>
    %931 = math.tanh %930 : vector<2x32xf32>
    %cst_329 = arith.constant 5.000000e-01 : f32
    %932 = vector.broadcast %cst_329 : f32 to vector<2x32xf32>
    %933 = arith.mulf %932, %931 : vector<2x32xf32>
    %cst_330 = arith.constant 5.000000e-01 : f32
    %934 = vector.broadcast %cst_330 : f32 to vector<2x32xf32>
    %935 = arith.addf %933, %934 : vector<2x32xf32>
    %936 = vector.extract_strided_slice %891 {offsets = [0, 96], sizes = [2, 32], strides = [1, 1]} : vector<2x128xf32> to vector<2x32xf32>
    %cst_331 = arith.constant 5.000000e-01 : f32
    %937 = vector.broadcast %cst_331 : f32 to vector<2x32xf32>
    %938 = arith.mulf %937, %936 : vector<2x32xf32>
    %939 = math.tanh %938 : vector<2x32xf32>
    %cst_332 = arith.constant 5.000000e-01 : f32
    %940 = vector.broadcast %cst_332 : f32 to vector<2x32xf32>
    %941 = arith.mulf %940, %939 : vector<2x32xf32>
    %cst_333 = arith.constant 5.000000e-01 : f32
    %942 = vector.broadcast %cst_333 : f32 to vector<2x32xf32>
    %943 = arith.addf %941, %942 : vector<2x32xf32>
    %944 = arith.mulf %915, %876 : vector<2x32xf32>
    %945 = arith.mulf %899, %925 : vector<2x32xf32>
    %946 = arith.addf %944, %945 : vector<2x32xf32>
    %947 = arith.mulf %923, %879 : vector<2x32xf32>
    %948 = arith.mulf %907, %927 : vector<2x32xf32>
    %949 = arith.addf %947, %948 : vector<2x32xf32>
    %950 = math.tanh %946 : vector<2x32xf32>
    %951 = arith.mulf %935, %950 : vector<2x32xf32>
    %952 = math.tanh %949 : vector<2x32xf32>
    %953 = arith.mulf %943, %952 : vector<2x32xf32>
    %954 = arith.addf %885, %951 : vector<2x32xf32>
    %955 = arith.addf %954, %953 : vector<2x32xf32>
    %956 = vector.extract_strided_slice %601 {offsets = [10, 0], sizes = [2, 128], strides = [1, 1]} : vector<16x128xf32> to vector<2x128xf32>
    %cst_334 = arith.constant dense<0.000000e+00> : vector<2x128xf32>
    %957 = tpu.matmul %951, %11, %cst_334 {dimension_numbers = #tpu.dot_dimension_numbers<[1], [0], [0], [1], [0, 0, 1, 1], [], []>} : vector<2x32xf32>, vector<32x128xf32>, vector<2x128xf32> -> vector<2x128xf32>
    %958 = arith.addf %956, %957 : vector<2x128xf32>
    %959 = vector.extract_strided_slice %604 {offsets = [4, 0], sizes = [2, 128], strides = [1, 1]} : vector<16x128xf32> to vector<2x128xf32>
    %cst_335 = arith.constant dense<0.000000e+00> : vector<2x128xf32>
    %960 = tpu.matmul %953, %14, %cst_335 {dimension_numbers = #tpu.dot_dimension_numbers<[1], [0], [0], [1], [0, 0, 1, 1], [], []>} : vector<2x32xf32>, vector<32x128xf32>, vector<2x128xf32> -> vector<2x128xf32>
    %961 = arith.addf %959, %960 : vector<2x128xf32>
    %962 = vector.extract_strided_slice %958 {offsets = [0, 0], sizes = [2, 32], strides = [1, 1]} : vector<2x128xf32> to vector<2x32xf32>
    %cst_336 = arith.constant 5.000000e-01 : f32
    %963 = vector.broadcast %cst_336 : f32 to vector<2x32xf32>
    %964 = arith.mulf %963, %962 : vector<2x32xf32>
    %965 = math.tanh %964 : vector<2x32xf32>
    %cst_337 = arith.constant 5.000000e-01 : f32
    %966 = vector.broadcast %cst_337 : f32 to vector<2x32xf32>
    %967 = arith.mulf %966, %965 : vector<2x32xf32>
    %cst_338 = arith.constant 5.000000e-01 : f32
    %968 = vector.broadcast %cst_338 : f32 to vector<2x32xf32>
    %969 = arith.addf %967, %968 : vector<2x32xf32>
    %970 = vector.extract_strided_slice %961 {offsets = [0, 0], sizes = [2, 32], strides = [1, 1]} : vector<2x128xf32> to vector<2x32xf32>
    %cst_339 = arith.constant 5.000000e-01 : f32
    %971 = vector.broadcast %cst_339 : f32 to vector<2x32xf32>
    %972 = arith.mulf %971, %970 : vector<2x32xf32>
    %973 = math.tanh %972 : vector<2x32xf32>
    %cst_340 = arith.constant 5.000000e-01 : f32
    %974 = vector.broadcast %cst_340 : f32 to vector<2x32xf32>
    %975 = arith.mulf %974, %973 : vector<2x32xf32>
    %cst_341 = arith.constant 5.000000e-01 : f32
    %976 = vector.broadcast %cst_341 : f32 to vector<2x32xf32>
    %977 = arith.addf %975, %976 : vector<2x32xf32>
    %978 = vector.extract_strided_slice %958 {offsets = [0, 32], sizes = [2, 32], strides = [1, 1]} : vector<2x128xf32> to vector<2x32xf32>
    %cst_342 = arith.constant 5.000000e-01 : f32
    %979 = vector.broadcast %cst_342 : f32 to vector<2x32xf32>
    %980 = arith.mulf %979, %978 : vector<2x32xf32>
    %981 = math.tanh %980 : vector<2x32xf32>
    %cst_343 = arith.constant 5.000000e-01 : f32
    %982 = vector.broadcast %cst_343 : f32 to vector<2x32xf32>
    %983 = arith.mulf %982, %981 : vector<2x32xf32>
    %cst_344 = arith.constant 5.000000e-01 : f32
    %984 = vector.broadcast %cst_344 : f32 to vector<2x32xf32>
    %985 = arith.addf %983, %984 : vector<2x32xf32>
    %986 = vector.extract_strided_slice %961 {offsets = [0, 32], sizes = [2, 32], strides = [1, 1]} : vector<2x128xf32> to vector<2x32xf32>
    %cst_345 = arith.constant 5.000000e-01 : f32
    %987 = vector.broadcast %cst_345 : f32 to vector<2x32xf32>
    %988 = arith.mulf %987, %986 : vector<2x32xf32>
    %989 = math.tanh %988 : vector<2x32xf32>
    %cst_346 = arith.constant 5.000000e-01 : f32
    %990 = vector.broadcast %cst_346 : f32 to vector<2x32xf32>
    %991 = arith.mulf %990, %989 : vector<2x32xf32>
    %cst_347 = arith.constant 5.000000e-01 : f32
    %992 = vector.broadcast %cst_347 : f32 to vector<2x32xf32>
    %993 = arith.addf %991, %992 : vector<2x32xf32>
    %994 = vector.extract_strided_slice %958 {offsets = [0, 64], sizes = [2, 32], strides = [1, 1]} : vector<2x128xf32> to vector<2x32xf32>
    %995 = math.tanh %994 : vector<2x32xf32>
    %996 = vector.extract_strided_slice %961 {offsets = [0, 64], sizes = [2, 32], strides = [1, 1]} : vector<2x128xf32> to vector<2x32xf32>
    %997 = math.tanh %996 : vector<2x32xf32>
    %998 = vector.extract_strided_slice %958 {offsets = [0, 96], sizes = [2, 32], strides = [1, 1]} : vector<2x128xf32> to vector<2x32xf32>
    %cst_348 = arith.constant 5.000000e-01 : f32
    %999 = vector.broadcast %cst_348 : f32 to vector<2x32xf32>
    %1000 = arith.mulf %999, %998 : vector<2x32xf32>
    %1001 = math.tanh %1000 : vector<2x32xf32>
    %cst_349 = arith.constant 5.000000e-01 : f32
    %1002 = vector.broadcast %cst_349 : f32 to vector<2x32xf32>
    %1003 = arith.mulf %1002, %1001 : vector<2x32xf32>
    %cst_350 = arith.constant 5.000000e-01 : f32
    %1004 = vector.broadcast %cst_350 : f32 to vector<2x32xf32>
    %1005 = arith.addf %1003, %1004 : vector<2x32xf32>
    %1006 = vector.extract_strided_slice %961 {offsets = [0, 96], sizes = [2, 32], strides = [1, 1]} : vector<2x128xf32> to vector<2x32xf32>
    %cst_351 = arith.constant 5.000000e-01 : f32
    %1007 = vector.broadcast %cst_351 : f32 to vector<2x32xf32>
    %1008 = arith.mulf %1007, %1006 : vector<2x32xf32>
    %1009 = math.tanh %1008 : vector<2x32xf32>
    %cst_352 = arith.constant 5.000000e-01 : f32
    %1010 = vector.broadcast %cst_352 : f32 to vector<2x32xf32>
    %1011 = arith.mulf %1010, %1009 : vector<2x32xf32>
    %cst_353 = arith.constant 5.000000e-01 : f32
    %1012 = vector.broadcast %cst_353 : f32 to vector<2x32xf32>
    %1013 = arith.addf %1011, %1012 : vector<2x32xf32>
    %1014 = arith.mulf %985, %946 : vector<2x32xf32>
    %1015 = arith.mulf %969, %995 : vector<2x32xf32>
    %1016 = arith.addf %1014, %1015 : vector<2x32xf32>
    %1017 = arith.mulf %993, %949 : vector<2x32xf32>
    %1018 = arith.mulf %977, %997 : vector<2x32xf32>
    %1019 = arith.addf %1017, %1018 : vector<2x32xf32>
    %1020 = math.tanh %1016 : vector<2x32xf32>
    %1021 = arith.mulf %1005, %1020 : vector<2x32xf32>
    %1022 = math.tanh %1019 : vector<2x32xf32>
    %1023 = arith.mulf %1013, %1022 : vector<2x32xf32>
    %1024 = arith.addf %955, %1021 : vector<2x32xf32>
    %1025 = arith.addf %1024, %1023 : vector<2x32xf32>
    %1026 = vector.extract_strided_slice %601 {offsets = [12, 0], sizes = [2, 128], strides = [1, 1]} : vector<16x128xf32> to vector<2x128xf32>
    %cst_354 = arith.constant dense<0.000000e+00> : vector<2x128xf32>
    %1027 = tpu.matmul %1021, %11, %cst_354 {dimension_numbers = #tpu.dot_dimension_numbers<[1], [0], [0], [1], [0, 0, 1, 1], [], []>} : vector<2x32xf32>, vector<32x128xf32>, vector<2x128xf32> -> vector<2x128xf32>
    %1028 = arith.addf %1026, %1027 : vector<2x128xf32>
    %1029 = vector.extract_strided_slice %604 {offsets = [2, 0], sizes = [2, 128], strides = [1, 1]} : vector<16x128xf32> to vector<2x128xf32>
    %cst_355 = arith.constant dense<0.000000e+00> : vector<2x128xf32>
    %1030 = tpu.matmul %1023, %14, %cst_355 {dimension_numbers = #tpu.dot_dimension_numbers<[1], [0], [0], [1], [0, 0, 1, 1], [], []>} : vector<2x32xf32>, vector<32x128xf32>, vector<2x128xf32> -> vector<2x128xf32>
    %1031 = arith.addf %1029, %1030 : vector<2x128xf32>
    %1032 = vector.extract_strided_slice %1028 {offsets = [0, 0], sizes = [2, 32], strides = [1, 1]} : vector<2x128xf32> to vector<2x32xf32>
    %cst_356 = arith.constant 5.000000e-01 : f32
    %1033 = vector.broadcast %cst_356 : f32 to vector<2x32xf32>
    %1034 = arith.mulf %1033, %1032 : vector<2x32xf32>
    %1035 = math.tanh %1034 : vector<2x32xf32>
    %cst_357 = arith.constant 5.000000e-01 : f32
    %1036 = vector.broadcast %cst_357 : f32 to vector<2x32xf32>
    %1037 = arith.mulf %1036, %1035 : vector<2x32xf32>
    %cst_358 = arith.constant 5.000000e-01 : f32
    %1038 = vector.broadcast %cst_358 : f32 to vector<2x32xf32>
    %1039 = arith.addf %1037, %1038 : vector<2x32xf32>
    %1040 = vector.extract_strided_slice %1031 {offsets = [0, 0], sizes = [2, 32], strides = [1, 1]} : vector<2x128xf32> to vector<2x32xf32>
    %cst_359 = arith.constant 5.000000e-01 : f32
    %1041 = vector.broadcast %cst_359 : f32 to vector<2x32xf32>
    %1042 = arith.mulf %1041, %1040 : vector<2x32xf32>
    %1043 = math.tanh %1042 : vector<2x32xf32>
    %cst_360 = arith.constant 5.000000e-01 : f32
    %1044 = vector.broadcast %cst_360 : f32 to vector<2x32xf32>
    %1045 = arith.mulf %1044, %1043 : vector<2x32xf32>
    %cst_361 = arith.constant 5.000000e-01 : f32
    %1046 = vector.broadcast %cst_361 : f32 to vector<2x32xf32>
    %1047 = arith.addf %1045, %1046 : vector<2x32xf32>
    %1048 = vector.extract_strided_slice %1028 {offsets = [0, 32], sizes = [2, 32], strides = [1, 1]} : vector<2x128xf32> to vector<2x32xf32>
    %cst_362 = arith.constant 5.000000e-01 : f32
    %1049 = vector.broadcast %cst_362 : f32 to vector<2x32xf32>
    %1050 = arith.mulf %1049, %1048 : vector<2x32xf32>
    %1051 = math.tanh %1050 : vector<2x32xf32>
    %cst_363 = arith.constant 5.000000e-01 : f32
    %1052 = vector.broadcast %cst_363 : f32 to vector<2x32xf32>
    %1053 = arith.mulf %1052, %1051 : vector<2x32xf32>
    %cst_364 = arith.constant 5.000000e-01 : f32
    %1054 = vector.broadcast %cst_364 : f32 to vector<2x32xf32>
    %1055 = arith.addf %1053, %1054 : vector<2x32xf32>
    %1056 = vector.extract_strided_slice %1031 {offsets = [0, 32], sizes = [2, 32], strides = [1, 1]} : vector<2x128xf32> to vector<2x32xf32>
    %cst_365 = arith.constant 5.000000e-01 : f32
    %1057 = vector.broadcast %cst_365 : f32 to vector<2x32xf32>
    %1058 = arith.mulf %1057, %1056 : vector<2x32xf32>
    %1059 = math.tanh %1058 : vector<2x32xf32>
    %cst_366 = arith.constant 5.000000e-01 : f32
    %1060 = vector.broadcast %cst_366 : f32 to vector<2x32xf32>
    %1061 = arith.mulf %1060, %1059 : vector<2x32xf32>
    %cst_367 = arith.constant 5.000000e-01 : f32
    %1062 = vector.broadcast %cst_367 : f32 to vector<2x32xf32>
    %1063 = arith.addf %1061, %1062 : vector<2x32xf32>
    %1064 = vector.extract_strided_slice %1028 {offsets = [0, 64], sizes = [2, 32], strides = [1, 1]} : vector<2x128xf32> to vector<2x32xf32>
    %1065 = math.tanh %1064 : vector<2x32xf32>
    %1066 = vector.extract_strided_slice %1031 {offsets = [0, 64], sizes = [2, 32], strides = [1, 1]} : vector<2x128xf32> to vector<2x32xf32>
    %1067 = math.tanh %1066 : vector<2x32xf32>
    %1068 = vector.extract_strided_slice %1028 {offsets = [0, 96], sizes = [2, 32], strides = [1, 1]} : vector<2x128xf32> to vector<2x32xf32>
    %cst_368 = arith.constant 5.000000e-01 : f32
    %1069 = vector.broadcast %cst_368 : f32 to vector<2x32xf32>
    %1070 = arith.mulf %1069, %1068 : vector<2x32xf32>
    %1071 = math.tanh %1070 : vector<2x32xf32>
    %cst_369 = arith.constant 5.000000e-01 : f32
    %1072 = vector.broadcast %cst_369 : f32 to vector<2x32xf32>
    %1073 = arith.mulf %1072, %1071 : vector<2x32xf32>
    %cst_370 = arith.constant 5.000000e-01 : f32
    %1074 = vector.broadcast %cst_370 : f32 to vector<2x32xf32>
    %1075 = arith.addf %1073, %1074 : vector<2x32xf32>
    %1076 = vector.extract_strided_slice %1031 {offsets = [0, 96], sizes = [2, 32], strides = [1, 1]} : vector<2x128xf32> to vector<2x32xf32>
    %cst_371 = arith.constant 5.000000e-01 : f32
    %1077 = vector.broadcast %cst_371 : f32 to vector<2x32xf32>
    %1078 = arith.mulf %1077, %1076 : vector<2x32xf32>
    %1079 = math.tanh %1078 : vector<2x32xf32>
    %cst_372 = arith.constant 5.000000e-01 : f32
    %1080 = vector.broadcast %cst_372 : f32 to vector<2x32xf32>
    %1081 = arith.mulf %1080, %1079 : vector<2x32xf32>
    %cst_373 = arith.constant 5.000000e-01 : f32
    %1082 = vector.broadcast %cst_373 : f32 to vector<2x32xf32>
    %1083 = arith.addf %1081, %1082 : vector<2x32xf32>
    %1084 = arith.mulf %1055, %1016 : vector<2x32xf32>
    %1085 = arith.mulf %1039, %1065 : vector<2x32xf32>
    %1086 = arith.addf %1084, %1085 : vector<2x32xf32>
    %1087 = arith.mulf %1063, %1019 : vector<2x32xf32>
    %1088 = arith.mulf %1047, %1067 : vector<2x32xf32>
    %1089 = arith.addf %1087, %1088 : vector<2x32xf32>
    %1090 = math.tanh %1086 : vector<2x32xf32>
    %1091 = arith.mulf %1075, %1090 : vector<2x32xf32>
    %1092 = math.tanh %1089 : vector<2x32xf32>
    %1093 = arith.mulf %1083, %1092 : vector<2x32xf32>
    %1094 = arith.addf %1025, %1091 : vector<2x32xf32>
    %1095 = arith.addf %1094, %1093 : vector<2x32xf32>
    %1096 = vector.extract_strided_slice %601 {offsets = [14, 0], sizes = [2, 128], strides = [1, 1]} : vector<16x128xf32> to vector<2x128xf32>
    %cst_374 = arith.constant dense<0.000000e+00> : vector<2x128xf32>
    %1097 = tpu.matmul %1091, %11, %cst_374 {dimension_numbers = #tpu.dot_dimension_numbers<[1], [0], [0], [1], [0, 0, 1, 1], [], []>} : vector<2x32xf32>, vector<32x128xf32>, vector<2x128xf32> -> vector<2x128xf32>
    %1098 = arith.addf %1096, %1097 : vector<2x128xf32>
    %1099 = vector.extract_strided_slice %604 {offsets = [0, 0], sizes = [2, 128], strides = [1, 1]} : vector<16x128xf32> to vector<2x128xf32>
    %cst_375 = arith.constant dense<0.000000e+00> : vector<2x128xf32>
    %1100 = tpu.matmul %1093, %14, %cst_375 {dimension_numbers = #tpu.dot_dimension_numbers<[1], [0], [0], [1], [0, 0, 1, 1], [], []>} : vector<2x32xf32>, vector<32x128xf32>, vector<2x128xf32> -> vector<2x128xf32>
    %1101 = arith.addf %1099, %1100 : vector<2x128xf32>
    %1102 = vector.extract_strided_slice %1098 {offsets = [0, 0], sizes = [2, 32], strides = [1, 1]} : vector<2x128xf32> to vector<2x32xf32>
    %cst_376 = arith.constant 5.000000e-01 : f32
    %1103 = vector.broadcast %cst_376 : f32 to vector<2x32xf32>
    %1104 = arith.mulf %1103, %1102 : vector<2x32xf32>
    %1105 = math.tanh %1104 : vector<2x32xf32>
    %cst_377 = arith.constant 5.000000e-01 : f32
    %1106 = vector.broadcast %cst_377 : f32 to vector<2x32xf32>
    %1107 = arith.mulf %1106, %1105 : vector<2x32xf32>
    %cst_378 = arith.constant 5.000000e-01 : f32
    %1108 = vector.broadcast %cst_378 : f32 to vector<2x32xf32>
    %1109 = arith.addf %1107, %1108 : vector<2x32xf32>
    %1110 = vector.extract_strided_slice %1101 {offsets = [0, 0], sizes = [2, 32], strides = [1, 1]} : vector<2x128xf32> to vector<2x32xf32>
    %cst_379 = arith.constant 5.000000e-01 : f32
    %1111 = vector.broadcast %cst_379 : f32 to vector<2x32xf32>
    %1112 = arith.mulf %1111, %1110 : vector<2x32xf32>
    %1113 = math.tanh %1112 : vector<2x32xf32>
    %cst_380 = arith.constant 5.000000e-01 : f32
    %1114 = vector.broadcast %cst_380 : f32 to vector<2x32xf32>
    %1115 = arith.mulf %1114, %1113 : vector<2x32xf32>
    %cst_381 = arith.constant 5.000000e-01 : f32
    %1116 = vector.broadcast %cst_381 : f32 to vector<2x32xf32>
    %1117 = arith.addf %1115, %1116 : vector<2x32xf32>
    %1118 = vector.extract_strided_slice %1098 {offsets = [0, 32], sizes = [2, 32], strides = [1, 1]} : vector<2x128xf32> to vector<2x32xf32>
    %cst_382 = arith.constant 5.000000e-01 : f32
    %1119 = vector.broadcast %cst_382 : f32 to vector<2x32xf32>
    %1120 = arith.mulf %1119, %1118 : vector<2x32xf32>
    %1121 = math.tanh %1120 : vector<2x32xf32>
    %cst_383 = arith.constant 5.000000e-01 : f32
    %1122 = vector.broadcast %cst_383 : f32 to vector<2x32xf32>
    %1123 = arith.mulf %1122, %1121 : vector<2x32xf32>
    %cst_384 = arith.constant 5.000000e-01 : f32
    %1124 = vector.broadcast %cst_384 : f32 to vector<2x32xf32>
    %1125 = arith.addf %1123, %1124 : vector<2x32xf32>
    %1126 = vector.extract_strided_slice %1101 {offsets = [0, 32], sizes = [2, 32], strides = [1, 1]} : vector<2x128xf32> to vector<2x32xf32>
    %cst_385 = arith.constant 5.000000e-01 : f32
    %1127 = vector.broadcast %cst_385 : f32 to vector<2x32xf32>
    %1128 = arith.mulf %1127, %1126 : vector<2x32xf32>
    %1129 = math.tanh %1128 : vector<2x32xf32>
    %cst_386 = arith.constant 5.000000e-01 : f32
    %1130 = vector.broadcast %cst_386 : f32 to vector<2x32xf32>
    %1131 = arith.mulf %1130, %1129 : vector<2x32xf32>
    %cst_387 = arith.constant 5.000000e-01 : f32
    %1132 = vector.broadcast %cst_387 : f32 to vector<2x32xf32>
    %1133 = arith.addf %1131, %1132 : vector<2x32xf32>
    %1134 = vector.extract_strided_slice %1098 {offsets = [0, 64], sizes = [2, 32], strides = [1, 1]} : vector<2x128xf32> to vector<2x32xf32>
    %1135 = math.tanh %1134 : vector<2x32xf32>
    %1136 = vector.extract_strided_slice %1101 {offsets = [0, 64], sizes = [2, 32], strides = [1, 1]} : vector<2x128xf32> to vector<2x32xf32>
    %1137 = math.tanh %1136 : vector<2x32xf32>
    %1138 = vector.extract_strided_slice %1098 {offsets = [0, 96], sizes = [2, 32], strides = [1, 1]} : vector<2x128xf32> to vector<2x32xf32>
    %cst_388 = arith.constant 5.000000e-01 : f32
    %1139 = vector.broadcast %cst_388 : f32 to vector<2x32xf32>
    %1140 = arith.mulf %1139, %1138 : vector<2x32xf32>
    %1141 = math.tanh %1140 : vector<2x32xf32>
    %cst_389 = arith.constant 5.000000e-01 : f32
    %1142 = vector.broadcast %cst_389 : f32 to vector<2x32xf32>
    %1143 = arith.mulf %1142, %1141 : vector<2x32xf32>
    %cst_390 = arith.constant 5.000000e-01 : f32
    %1144 = vector.broadcast %cst_390 : f32 to vector<2x32xf32>
    %1145 = arith.addf %1143, %1144 : vector<2x32xf32>
    %1146 = vector.extract_strided_slice %1101 {offsets = [0, 96], sizes = [2, 32], strides = [1, 1]} : vector<2x128xf32> to vector<2x32xf32>
    %cst_391 = arith.constant 5.000000e-01 : f32
    %1147 = vector.broadcast %cst_391 : f32 to vector<2x32xf32>
    %1148 = arith.mulf %1147, %1146 : vector<2x32xf32>
    %1149 = math.tanh %1148 : vector<2x32xf32>
    %cst_392 = arith.constant 5.000000e-01 : f32
    %1150 = vector.broadcast %cst_392 : f32 to vector<2x32xf32>
    %1151 = arith.mulf %1150, %1149 : vector<2x32xf32>
    %cst_393 = arith.constant 5.000000e-01 : f32
    %1152 = vector.broadcast %cst_393 : f32 to vector<2x32xf32>
    %1153 = arith.addf %1151, %1152 : vector<2x32xf32>
    %1154 = arith.mulf %1125, %1086 : vector<2x32xf32>
    %1155 = arith.mulf %1109, %1135 : vector<2x32xf32>
    %1156 = arith.addf %1154, %1155 : vector<2x32xf32>
    %1157 = arith.mulf %1133, %1089 : vector<2x32xf32>
    %1158 = arith.mulf %1117, %1137 : vector<2x32xf32>
    %1159 = arith.addf %1157, %1158 : vector<2x32xf32>
    %1160 = math.tanh %1156 : vector<2x32xf32>
    %1161 = arith.mulf %1145, %1160 : vector<2x32xf32>
    %1162 = math.tanh %1159 : vector<2x32xf32>
    %1163 = arith.mulf %1153, %1162 : vector<2x32xf32>
    %1164 = arith.addf %1095, %1161 : vector<2x32xf32>
    %1165 = arith.addf %1164, %1163 : vector<2x32xf32>
    %cst_394 = arith.constant 6.250000e-02 : f32
    %1166 = vector.broadcast %cst_394 : f32 to vector<2x32xf32>
    %1167 = arith.mulf %1165, %1166 : vector<2x32xf32>
    %cst_395 = arith.constant dense<0.000000e+00> : vector<2x32xf32>
    %1168 = tpu.matmul %1167, %16, %cst_395 {dimension_numbers = #tpu.dot_dimension_numbers<[1], [0], [0], [1], [0, 0, 1, 1], [], []>} : vector<2x32xf32>, vector<32x32xf32>, vector<2x32xf32> -> vector<2x32xf32>
    %1169 = vector.broadcast %17 : vector<1x32xf32> to vector<2x32xf32>
    %1170 = arith.addf %1168, %1169 : vector<2x32xf32>
    %cst_396 = arith.constant 0.000000e+00 : f32
    %1171 = vector.broadcast %cst_396 : f32 to vector<2x32xf32>
    %1172 = arith.maximumf %1170, %1171 : vector<2x32xf32>
    %cst_397 = arith.constant dense<0.000000e+00> : vector<2x1xf32>
    %1173 = tpu.matmul %1172, %18, %cst_397 {dimension_numbers = #tpu.dot_dimension_numbers<[1], [0], [0], [1], [0, 0, 1, 1], [], []>} : vector<2x32xf32>, vector<32x1xf32>, vector<2x1xf32> -> vector<2x1xf32>
    %1174 = vector.broadcast %19 : vector<1x1xf32> to vector<2x1xf32>
    %1175 = arith.addf %1173, %1174 : vector<2x1xf32>
    %cst_398 = arith.constant 5.000000e-01 : f32
    %1176 = vector.broadcast %cst_398 : f32 to vector<2x1xf32>
    %1177 = arith.mulf %1176, %1175 : vector<2x1xf32>
    %1178 = math.tanh %1177 : vector<2x1xf32>
    %cst_399 = arith.constant 5.000000e-01 : f32
    %1179 = vector.broadcast %cst_399 : f32 to vector<2x1xf32>
    %1180 = arith.mulf %1179, %1178 : vector<2x1xf32>
    %cst_400 = arith.constant 5.000000e-01 : f32
    %1181 = vector.broadcast %cst_400 : f32 to vector<2x1xf32>
    %1182 = arith.addf %1180, %1181 : vector<2x1xf32>
    %c0_401 = arith.constant 0 : index
    %c0_402 = arith.constant 0 : index
    %1183 = vector.load %arg21[%c0_401, %c0_402] : memref<2x1xf32, #tpu.memory_space<vmem>>, vector<2x1xf32>
    tpu.vector_store %arg21[%c0_401, %c0_402], %1182 {strides = array<i32>} : memref<2x1xf32, #tpu.memory_space<vmem>>, vector<2x1xf32>,
    return
  }
}

</mosaic_0001>

<llo_original>
// kernel: tpu_custom_call.1
$region0: #{tpu_custom_call.1}
  #allocation0 [shape = 'u32[]', space=smem, size = 0x4, offset = 0x4, fixed_abs, tag = 'smem constant byte address 0x4 - core index']
  #allocation1 [shape = 'u32[144,128]{1,0:T(1,128)}', space=vmem, size = 0x12000, scoped, tag = 'internal scratch']
  #allocation2 [shape = 'f32[16,64]{1,0:T(8,128)}', space=vmem, size = 0x2000, scoped, tag = 'scratch operand']
  #allocation3 [shape = 'f32[1,1]{1,0:T(1,128)S(1)}', space=vmem, size = 0x200, scoped, tag = 'scoped memory for tpu_custom_call.1']
  %s0 = inlined_call_operand.vmem [shape: f32[16,1], index: 0, kind: input, shape index: {}]
  %s1 = inlined_call_operand.vmem [shape: f32[1,32], index: 1, kind: input, shape index: {}]
  %s2 = inlined_call_operand.vmem [shape: f32[1,32], index: 2, kind: input, shape index: {}]
  %s3 = inlined_call_operand.hbm [shape: f32[32,32], index: 3, kind: input, shape index: {}]
  %s4 = inlined_call_operand.vmem [shape: f32[1,32], index: 4, kind: input, shape index: {}]
  %s5 = inlined_call_operand.hbm [shape: f32[32,128], index: 5, kind: input, shape index: {}]
  %s6 = inlined_call_operand.hbm [shape: f32[32,128], index: 6, kind: input, shape index: {}]
  %s7 = inlined_call_operand.hbm [shape: f32[1,128], index: 7, kind: input, shape index: {}]
  %s8 = inlined_call_operand.hbm [shape: f32[32,128], index: 8, kind: input, shape index: {}]
  %s9 = inlined_call_operand.hbm [shape: f32[32,128], index: 9, kind: input, shape index: {}]
  %s10 = inlined_call_operand.hbm [shape: f32[1,128], index: 10, kind: input, shape index: {}]
  %s11 = inlined_call_operand.vmem [shape: f32[64,128], index: 11, kind: input, shape index: {}]
  %s12 = inlined_call_operand.vmem [shape: f32[32,128], index: 12, kind: input, shape index: {}]
  %s13 = inlined_call_operand.vmem [shape: f32[1,128], index: 13, kind: input, shape index: {}]
  %s14 = inlined_call_operand.hbm [shape: f32[64,128], index: 14, kind: input, shape index: {}]
  %s15 = inlined_call_operand.hbm [shape: f32[32,128], index: 15, kind: input, shape index: {}]
  %s16 = inlined_call_operand.vmem [shape: f32[1,128], index: 16, kind: input, shape index: {}]
  %s17 = inlined_call_operand.hbm [shape: f32[32,32], index: 17, kind: input, shape index: {}]
  %s18 = inlined_call_operand.vmem [shape: f32[1,32], index: 18, kind: input, shape index: {}]
  %s19 = inlined_call_operand.vmem [shape: f32[32,1], index: 19, kind: input, shape index: {}]
  %s20 = inlined_call_operand.<no memory space> [shape: f32[1,1], index: 20, kind: input, shape index: {}]
  %s21 = inlined_call_operand.vmem [shape: f32[2,1], index: 21, kind: output, shape index: {}]
  %s22 = sld [smem:[#allocation0]]
  $region134: #{tpu_custom_call.1} parent=0
    _
  %s24 = ssub.s32 1, %s22
  %s25 = scalar_select 0, %s24, %s22
  %v26 = vstv %s20
  %27 = vst [vmem:[#allocation3] sm:$0x1] %v26
  $region1: #{tpu_custom_call.1} parent=0
    #allocation4 [shape = 'u8[16384]{0}', space=vmem, size = 0x4000, scoped, tag = 'input window, operand 3, single buffered']
    #allocation5 [shape = 's32[1]{0}', space=sflag, size = 0x4, scoped, tag = 'scoped memory for tpu_custom_call.1']
    #allocation6 [shape = 'u8[16384]{0}', space=vmem, size = 0x4000, scoped, tag = 'input window, operand 5, single buffered']
    #allocation7 [shape = 's32[1]{0}', space=sflag, size = 0x4, scoped, tag = 'scoped memory for tpu_custom_call.1']
    #allocation8 [shape = 'u8[16384]{0}', space=vmem, size = 0x4000, scoped, tag = 'input window, operand 6, single buffered']
    #allocation9 [shape = 'u8[512]{0}', space=vmem, size = 0x400, scoped, tag = 'input window, operand 7, single buffered']
    #allocation10 [shape = 's32[1]{0}', space=sflag, size = 0x4, scoped, tag = 'scoped memory for tpu_custom_call.1']
    #allocation11 [shape = 'u8[16384]{0}', space=vmem, size = 0x4000, scoped, tag = 'input window, operand 8, single buffered']
    #allocation12 [shape = 'u8[16384]{0}', space=vmem, size = 0x4000, scoped, tag = 'input window, operand 9, single buffered']
    #allocation13 [shape = 's32[1]{0}', space=sflag, size = 0x4, scoped, tag = 'scoped memory for tpu_custom_call.1']
    #allocation14 [shape = 'u8[512]{0}', space=vmem, size = 0x400, scoped, tag = 'input window, operand 10, single buffered']
    #allocation15 [shape = 'u8[32768]{0}', space=vmem, size = 0x8000, scoped, tag = 'input window, operand 14, single buffered']
    #allocation16 [shape = 's32[1]{0}', space=sflag, size = 0x4, scoped, tag = 'scoped memory for tpu_custom_call.1']
    #allocation17 [shape = 'u8[16384]{0}', space=vmem, size = 0x4000, scoped, tag = 'input window, operand 15, single buffered']
    #allocation18 [shape = 'u8[16384]{0}', space=vmem, size = 0x4000, scoped, tag = 'input window, operand 17, single buffered']
    #allocation19 [shape = 's32[1]{0}', space=sflag, size = 0x4, scoped, tag = 'scoped memory for tpu_custom_call.1']
    %28 = vsyncpa [#allocation5], 0
    %29 = vsyncpa [#allocation7], 0
    %30 = vsyncpa [#allocation10], 0
    %31 = vsyncpa [#allocation13], 0
    %32 = vsyncpa [#allocation16], 0
    %33 = vsyncpa [#allocation19], 0
    // Predicated region
    $region2: #{tpu_custom_call.1} parent=1 // pred_check
      _
    $region3: #{tpu_custom_call.1} parent=1 // pred_check_branch
      %35 = sbr.rel (0) target = $region5
    $region4: #{tpu_custom_call.1} parent=1 // pred_region
      _
    $region5: #{tpu_custom_call.1} parent=1 // pred_fallthru
      _
    // Predicated region
    $region6: #{tpu_custom_call.1} parent=1 // pred_check
      _
    $region7: #{tpu_custom_call.1} parent=1 // pred_check_branch
      %37 = sbr.rel (0) target = $region9
    $region8: #{tpu_custom_call.1} parent=1 // pred_region
      _
    $region9: #{tpu_custom_call.1} parent=1 // pred_fallthru
      _
    // Predicated region
    $region10: #{tpu_custom_call.1} parent=1 // pred_check
      _
    $region11: #{tpu_custom_call.1} parent=1 // pred_check_branch
      %39 = sbr.rel (0) target = $region13
    $region12: #{tpu_custom_call.1} parent=1 // pred_region
      _
    $region13: #{tpu_custom_call.1} parent=1 // pred_fallthru
      _
    // Predicated region
    $region14: #{tpu_custom_call.1} parent=1 // pred_check
      _
    $region15: #{tpu_custom_call.1} parent=1 // pred_check_branch
      %41 = sbr.rel (0) target = $region17
    $region16: #{tpu_custom_call.1} parent=1 // pred_region
      %s43 = ssub.s32 512, 512
      %44 = vsyncadd [#allocation5], %s43
      %s45 = sshll.u32 [#allocation4], 4
      %s46 = int_to_ptr.vmem [resolvable:$true] %s45
      %51 = dma.hbm_to_vmem [thread:$0]  %s3, 512, %s46, [#allocation5], 128, 128, 8
    $region17: #{tpu_custom_call.1} parent=1 // pred_fallthru
      _
    // Predicated region
    $region18: #{tpu_custom_call.1} parent=1 // pred_check
      _
    $region19: #{tpu_custom_call.1} parent=1 // pred_check_branch
      %53 = sbr.rel (0) target = $region21
    $region20: #{tpu_custom_call.1} parent=1 // pred_region
      _
    $region21: #{tpu_custom_call.1} parent=1 // pred_fallthru
      _
    // Predicated region
    $region22: #{tpu_custom_call.1} parent=1 // pred_check
      _
    $region23: #{tpu_custom_call.1} parent=1 // pred_check_branch
      %55 = sbr.rel (0) target = $region25
    $region24: #{tpu_custom_call.1} parent=1 // pred_region
      %s57 = ssub.s32 512, 512
      %58 = vsyncadd [#allocation7], %s57
      %s59 = sshll.u32 [#allocation6], 4
      %s60 = int_to_ptr.vmem [resolvable:$true] %s59
      %65 = dma.hbm_to_vmem [thread:$0]  %s5, 512, %s60, [#allocation7], 128, 128, 8
    $region25: #{tpu_custom_call.1} parent=1 // pred_fallthru
      _
    // Predicated region
    $region26: #{tpu_custom_call.1} parent=1 // pred_check
      _
    $region27: #{tpu_custom_call.1} parent=1 // pred_check_branch
      %67 = sbr.rel (0) target = $region29
    $region28: #{tpu_custom_call.1} parent=1 // pred_region
      %s69 = ssub.s32 512, 512
      %70 = vsyncadd [#allocation7], %s69
      %s71 = sshll.u32 [#allocation8], 4
      %s72 = int_to_ptr.vmem [resolvable:$true] %s71
      %77 = dma.hbm_to_vmem [thread:$0]  %s6, 512, %s72, [#allocation7], 128, 128, 8
    $region29: #{tpu_custom_call.1} parent=1 // pred_fallthru
      _
    // Predicated region
    $region30: #{tpu_custom_call.1} parent=1 // pred_check
      _
    $region31: #{tpu_custom_call.1} parent=1 // pred_check_branch
      %79 = sbr.rel (0) target = $region33
    $region32: #{tpu_custom_call.1} parent=1 // pred_region
      %s81 = ssub.s32 16, 16
      %82 = vsyncadd [#allocation10], %s81
      %s84 = sshll.u32 [#allocation9], 4
      %s85 = int_to_ptr.vmem [resolvable:$true] %s84
      %87 = dma.hbm_to_vmem [thread:$0]  %s7, 16, %s85, [#allocation10]
    $region33: #{tpu_custom_call.1} parent=1 // pred_fallthru
      _
    // Predicated region
    $region34: #{tpu_custom_call.1} parent=1 // pred_check
      _
    $region35: #{tpu_custom_call.1} parent=1 // pred_check_branch
      %89 = sbr.rel (0) target = $region37
    $region36: #{tpu_custom_call.1} parent=1 // pred_region
      %s91 = ssub.s32 512, 512
      %92 = vsyncadd [#allocation10], %s91
      %s93 = sshll.u32 [#allocation11], 4
      %s94 = int_to_ptr.vmem [resolvable:$true] %s93
      %99 = dma.hbm_to_vmem [thread:$0]  %s8, 512, %s94, [#allocation10], 128, 128, 8
    $region37: #{tpu_custom_call.1} parent=1 // pred_fallthru
      _
    // Predicated region
    $region38: #{tpu_custom_call.1} parent=1 // pred_check
      _
    $region39: #{tpu_custom_call.1} parent=1 // pred_check_branch
      %101 = sbr.rel (0) target = $region41
    $region40: #{tpu_custom_call.1} parent=1 // pred_region
      %s103 = ssub.s32 512, 512
      %104 = vsyncadd [#allocation13], %s103
      %s105 = sshll.u32 [#allocation12], 4
      %s106 = int_to_ptr.vmem [resolvable:$true] %s105
      %111 = dma.hbm_to_vmem [thread:$0]  %s9, 512, %s106, [#allocation13], 128, 128, 8
    $region41: #{tpu_custom_call.1} parent=1 // pred_fallthru
      _
    // Predicated region
    $region42: #{tpu_custom_call.1} parent=1 // pred_check
      _
    $region43: #{tpu_custom_call.1} parent=1 // pred_check_branch
      %113 = sbr.rel (0) target = $region45
    $region44: #{tpu_custom_call.1} parent=1 // pred_region
      %s115 = ssub.s32 16, 16
      %116 = vsyncadd [#allocation13], %s115
      %s118 = sshll.u32 [#allocation14], 4
      %s119 = int_to_ptr.vmem [resolvable:$true] %s118
      %121 = dma.hbm_to_vmem [thread:$0]  %s10, 16, %s119, [#allocation13]
    $region45: #{tpu_custom_call.1} parent=1 // pred_fallthru
      _
    // Predicated region
    $region46: #{tpu_custom_call.1} parent=1 // pred_check
      _
    $region47: #{tpu_custom_call.1} parent=1 // pred_check_branch
      %123 = sbr.rel (0) target = $region49
    $region48: #{tpu_custom_call.1} parent=1 // pred_region
      _
    $region49: #{tpu_custom_call.1} parent=1 // pred_fallthru
      _
    // Predicated region
    $region50: #{tpu_custom_call.1} parent=1 // pred_check
      _
    $region51: #{tpu_custom_call.1} parent=1 // pred_check_branch
      %125 = sbr.rel (0) target = $region53
    $region52: #{tpu_custom_call.1} parent=1 // pred_region
      _
    $region53: #{tpu_custom_call.1} parent=1 // pred_fallthru
      _
    // Predicated region
    $region54: #{tpu_custom_call.1} parent=1 // pred_check
      _
    $region55: #{tpu_custom_call.1} parent=1 // pred_check_branch
      %127 = sbr.rel (0) target = $region57
    $region56: #{tpu_custom_call.1} parent=1 // pred_region
      _
    $region57: #{tpu_custom_call.1} parent=1 // pred_fallthru
      _
    // Predicated region
    $region58: #{tpu_custom_call.1} parent=1 // pred_check
      _
    $region59: #{tpu_custom_call.1} parent=1 // pred_check_branch
      %129 = sbr.rel (0) target = $region61
    $region60: #{tpu_custom_call.1} parent=1 // pred_region
      %s131 = ssub.s32 1024, 1024
      %132 = vsyncadd [#allocation16], %s131
      %s133 = sshll.u32 [#allocation15], 4
      %s134 = int_to_ptr.vmem [resolvable:$true] %s133
      %139 = dma.hbm_to_vmem [thread:$0]  %s14, 1024, %s134, [#allocation16], 128, 128, 8
    $region61: #{tpu_custom_call.1} parent=1 // pred_fallthru
      _
    // Predicated region
    $region62: #{tpu_custom_call.1} parent=1 // pred_check
      _
    $region63: #{tpu_custom_call.1} parent=1 // pred_check_branch
      %141 = sbr.rel (0) target = $region65
    $region64: #{tpu_custom_call.1} parent=1 // pred_region
      %s143 = ssub.s32 512, 512
      %144 = vsyncadd [#allocation16], %s143
      %s145 = sshll.u32 [#allocation17], 4
      %s146 = int_to_ptr.vmem [resolvable:$true] %s145
      %151 = dma.hbm_to_vmem [thread:$0]  %s15, 512, %s146, [#allocation16], 128, 128, 8
    $region65: #{tpu_custom_call.1} parent=1 // pred_fallthru
      _
    // Predicated region
    $region66: #{tpu_custom_call.1} parent=1 // pred_check
      _
    $region67: #{tpu_custom_call.1} parent=1 // pred_check_branch
      %153 = sbr.rel (0) target = $region69
    $region68: #{tpu_custom_call.1} parent=1 // pred_region
      _
    $region69: #{tpu_custom_call.1} parent=1 // pred_fallthru
      _
    // Predicated region
    $region70: #{tpu_custom_call.1} parent=1 // pred_check
      _
    $region71: #{tpu_custom_call.1} parent=1 // pred_check_branch
      %155 = sbr.rel (0) target = $region73
    $region72: #{tpu_custom_call.1} parent=1 // pred_region
      %s157 = ssub.s32 512, 512
      %158 = vsyncadd [#allocation19], %s157
      %s159 = sshll.u32 [#allocation18], 4
      %s160 = int_to_ptr.vmem [resolvable:$true] %s159
      %165 = dma.hbm_to_vmem [thread:$0]  %s17, 512, %s160, [#allocation19], 128, 128, 8
    $region73: #{tpu_custom_call.1} parent=1 // pred_fallthru
      _
    // Predicated region
    $region74: #{tpu_custom_call.1} parent=1 // pred_check
      _
    $region75: #{tpu_custom_call.1} parent=1 // pred_check_branch
      %167 = sbr.rel (0) target = $region77
    $region76: #{tpu_custom_call.1} parent=1 // pred_region
      _
    $region77: #{tpu_custom_call.1} parent=1 // pred_fallthru
      _
    // Predicated region
    $region78: #{tpu_custom_call.1} parent=1 // pred_check
      _
    $region79: #{tpu_custom_call.1} parent=1 // pred_check_branch
      %169 = sbr.rel (0) target = $region81
    $region80: #{tpu_custom_call.1} parent=1 // pred_region
      _
    $region81: #{tpu_custom_call.1} parent=1 // pred_fallthru
      _
    // Predicated region
    $region82: #{tpu_custom_call.1} parent=1 // pred_check
      _
    $region83: #{tpu_custom_call.1} parent=1 // pred_check_branch
      %171 = sbr.rel (0) target = $region85
    $region84: #{tpu_custom_call.1} parent=1 // pred_region
      _
    $region85: #{tpu_custom_call.1} parent=1 // pred_fallthru
      _
    // Predicated region
    $region86: #{tpu_custom_call.1} parent=1 // pred_check
      _
    $region87: #{tpu_custom_call.1} parent=1 // pred_check_branch
      %173 = sbr.rel (0) target = $region89
    $region88: #{tpu_custom_call.1} parent=1 // pred_region
      %174 = dma.done [#allocation5], 512
    $region89: #{tpu_custom_call.1} parent=1 // pred_fallthru
      _
    // Predicated region
    $region90: #{tpu_custom_call.1} parent=1 // pred_check
      _
    $region91: #{tpu_custom_call.1} parent=1 // pred_check_branch
      %176 = sbr.rel (0) target = $region93
    $region92: #{tpu_custom_call.1} parent=1 // pred_region
      %177 = dma.done [#allocation7], 512
    $region93: #{tpu_custom_call.1} parent=1 // pred_fallthru
      _
    // Predicated region
    $region94: #{tpu_custom_call.1} parent=1 // pred_check
      _
    $region95: #{tpu_custom_call.1} parent=1 // pred_check_branch
      %179 = sbr.rel (0) target = $region97
    $region96: #{tpu_custom_call.1} parent=1 // pred_region
      %180 = dma.done [#allocation7], 512
    $region97: #{tpu_custom_call.1} parent=1 // pred_fallthru
      _
    // Predicated region
    $region98: #{tpu_custom_call.1} parent=1 // pred_check
      _
    $region99: #{tpu_custom_call.1} parent=1 // pred_check_branch
      %182 = sbr.rel (0) target = $region101
    $region100: #{tpu_custom_call.1} parent=1 // pred_region
      %183 = dma.done [#allocation10], 16
    $region101: #{tpu_custom_call.1} parent=1 // pred_fallthru
      _
    // Predicated region
    $region102: #{tpu_custom_call.1} parent=1 // pred_check
      _
    $region103: #{tpu_custom_call.1} parent=1 // pred_check_branch
      %185 = sbr.rel (0) target = $region105
    $region104: #{tpu_custom_call.1} parent=1 // pred_region
      %186 = dma.done [#allocation10], 512
    $region105: #{tpu_custom_call.1} parent=1 // pred_fallthru
      _
    // Predicated region
    $region106: #{tpu_custom_call.1} parent=1 // pred_check
      _
    $region107: #{tpu_custom_call.1} parent=1 // pred_check_branch
      %188 = sbr.rel (0) target = $region109
    $region108: #{tpu_custom_call.1} parent=1 // pred_region
      %189 = dma.done [#allocation13], 512
    $region109: #{tpu_custom_call.1} parent=1 // pred_fallthru
      _
    // Predicated region
    $region110: #{tpu_custom_call.1} parent=1 // pred_check
      _
    $region111: #{tpu_custom_call.1} parent=1 // pred_check_branch
      %191 = sbr.rel (0) target = $region113
    $region112: #{tpu_custom_call.1} parent=1 // pred_region
      %192 = dma.done [#allocation13], 16
    $region113: #{tpu_custom_call.1} parent=1 // pred_fallthru
      _
    // Predicated region
    $region114: #{tpu_custom_call.1} parent=1 // pred_check
      _
    $region115: #{tpu_custom_call.1} parent=1 // pred_check_branch
      %194 = sbr.rel (0) target = $region117
    $region116: #{tpu_custom_call.1} parent=1 // pred_region
      %195 = dma.done [#allocation16], 1024
    $region117: #{tpu_custom_call.1} parent=1 // pred_fallthru
      _
    // Predicated region
    $region118: #{tpu_custom_call.1} parent=1 // pred_check
      _
    $region119: #{tpu_custom_call.1} parent=1 // pred_check_branch
      %197 = sbr.rel (0) target = $region121
    $region120: #{tpu_custom_call.1} parent=1 // pred_region
      %198 = dma.done [#allocation16], 512
    $region121: #{tpu_custom_call.1} parent=1 // pred_fallthru
      _
    // Predicated region
    $region122: #{tpu_custom_call.1} parent=1 // pred_check
      _
    $region123: #{tpu_custom_call.1} parent=1 // pred_check_branch
      %200 = sbr.rel (0) target = $region125
    $region124: #{tpu_custom_call.1} parent=1 // pred_region
      %201 = dma.done [#allocation19], 512
    $region125: #{tpu_custom_call.1} parent=1 // pred_fallthru
      _
    %v202 = vld [vmem:[%s1] sm:$0x1]
    %v203 = vld [vmem:[%s2] sm:$0x1]
    %v204 = vld [vmem:[#allocation4] sm:$0xff]
    %v205 = vld [vmem:[#allocation4 + $0x8] sm:$0xff]
    %v206 = vld [vmem:[#allocation4 + $0x10] sm:$0xff]
    %v207 = vld [vmem:[#allocation4 + $0x18] sm:$0xff]
    %v208 = vld [vmem:[%s4] sm:$0x1]
    %v209 = vld [vmem:[#allocation6] sm:$0xff]
    %v210 = vld [vmem:[#allocation6 + $0x8] sm:$0xff]
    %v211 = vld [vmem:[#allocation6 + $0x10] sm:$0xff]
    %v212 = vld [vmem:[#allocation6 + $0x18] sm:$0xff]
    %v213 = vld [vmem:[#allocation8] sm:$0xff]
    %v214 = vld [vmem:[#allocation8 + $0x8] sm:$0xff]
    %v215 = vld [vmem:[#allocation8 + $0x10] sm:$0xff]
    %v216 = vld [vmem:[#allocation8 + $0x18] sm:$0xff]
    %v217 = vld [vmem:[#allocation9] sm:$0x1]
    %v218 = vld [vmem:[#allocation11] sm:$0xff]
    %v219 = vld [vmem:[#allocation11 + $0x8] sm:$0xff]
    %v220 = vld [vmem:[#allocation11 + $0x10] sm:$0xff]
    %v221 = vld [vmem:[#allocation11 + $0x18] sm:$0xff]
    %v222 = vld [vmem:[#allocation12] sm:$0xff]
    %v223 = vld [vmem:[#allocation12 + $0x8] sm:$0xff]
    %v224 = vld [vmem:[#allocation12 + $0x10] sm:$0xff]
    %v225 = vld [vmem:[#allocation12 + $0x18] sm:$0xff]
    %v226 = vld [vmem:[#allocation14] sm:$0x1]
    %v227 = vld [vmem:[%s11] sm:$0xff]
    %v228 = vld [vmem:[%s11 + $0x8] sm:$0xff]
    %v229 = vld [vmem:[%s11 + $0x10] sm:$0xff]
    %v230 = vld [vmem:[%s11 + $0x18] sm:$0xff]
    %v231 = vld [vmem:[%s11 + $0x20] sm:$0xff]
    %v232 = vld [vmem:[%s11 + $0x28] sm:$0xff]
    %v233 = vld [vmem:[%s11 + $0x30] sm:$0xff]
    %v234 = vld [vmem:[%s11 + $0x38] sm:$0xff]
    %v235 = vld [vmem:[%s12] sm:$0xff]
    %v236 = vld [vmem:[%s12 + $0x8] sm:$0xff]
    %v237 = vld [vmem:[%s12 + $0x10] sm:$0xff]
    %v238 = vld [vmem:[%s12 + $0x18] sm:$0xff]
    %v239 = vld [vmem:[%s13] sm:$0x1]
    %v240 = vld [vmem:[#allocation15] sm:$0xff]
    %v241 = vld [vmem:[#allocation15 + $0x8] sm:$0xff]
    %v242 = vld [vmem:[#allocation15 + $0x10] sm:$0xff]
    %v243 = vld [vmem:[#allocation15 + $0x18] sm:$0xff]
    %v244 = vld [vmem:[#allocation15 + $0x20] sm:$0xff]
    %v245 = vld [vmem:[#allocation15 + $0x28] sm:$0xff]
    %v246 = vld [vmem:[#allocation15 + $0x30] sm:$0xff]
    %v247 = vld [vmem:[#allocation15 + $0x38] sm:$0xff]
    %v248 = vld [vmem:[#allocation17] sm:$0xff]
    %v249 = vld [vmem:[#allocation17 + $0x8] sm:$0xff]
    %v250 = vld [vmem:[#allocation17 + $0x10] sm:$0xff]
    %v251 = vld [vmem:[#allocation17 + $0x18] sm:$0xff]
    %v252 = vld [vmem:[%s16] sm:$0x1]
    %v253 = vld [vmem:[#allocation18] sm:$0xff]
    %v254 = vld [vmem:[#allocation18 + $0x8] sm:$0xff]
    %v255 = vld [vmem:[#allocation18 + $0x10] sm:$0xff]
    %v256 = vld [vmem:[#allocation18 + $0x18] sm:$0xff]
    %v257 = vld [vmem:[%s18] sm:$0x1]
    %v258 = vld [vmem:[%s19] sm:$0xff]
    %v259 = vld [vmem:[%s19 + $0x8] sm:$0xff]
    %v260 = vld [vmem:[%s19 + $0x10] sm:$0xff]
    %v261 = vld [vmem:[%s19 + $0x18] sm:$0xff]
    %v262 = vld [vmem:[#allocation3] sm:$0x1]
    %v263 = vld [vmem:[%s0] sm:$0xff]
    %v264 = vld [vmem:[%s0 + $0x8] sm:$0xff]
    %266 = vset.pattern.permute.xlu0 0
    %267 = vperm.xlu0 %266, %v263
    %v268 = vpop.permute.xlu0 %267
    %271 = vset.pattern.permute.xlu0 0
    %272 = vperm.xlu0 %271, %v264
    %v273 = vpop.permute.xlu0 %272
    %v276 = vlaneseq
    %v277 = vshrl.u32 %v276, 7
    %v278 = vsub.s32 0, %v277
    %v279 = vrot.slane %v202, %v278
    %v281 = vmul.f32 %v268, %v279
    %v282 = vmul.f32 %v273, %v279
    %v284 = vlaneseq
    %v285 = vshrl.u32 %v284, 7
    %v286 = vsub.s32 0, %v285
    %v287 = vrot.slane %v203, %v286
    %v289 = vadd.f32 %v281, %v287
    %v290 = vadd.f32 %v282, %v287
    %v291 = vmax.f32 %v289, 0.0
    %v292 = vmax.f32 %v290, 0.0
    %v294 = vlaneseq
    %v295 = vshrl.u32 %v294, 7
    %v296 = vsub.s32 0, %v295
    %v297 = vrot.slane %v208, %v296
    %vm299 = vcmask 261120
    %v301 = vsel %vm299, %v291, 0
    %v304 = vsel %vm299, %v292, 0
    %306 = vmatprep.subr.mxu0 0.0
    %307 = vmatpush1.msra.mxu0 %v204
    %308 = vmatprep.subr.mxu0 0.0
    %309 = vmatpush1.msra.mxu0 %v205
    %310 = vmatprep.subr.mxu0 0.0
    %311 = vmatpush1.msra.mxu0 %v206
    %312 = vmatprep.subr.mxu0 0.0
    %313 = vmatpush1.msra.mxu0 %v207
    %314 = vmatprep.subr.mxu0 0.0
    %315 = vmatpush1.msra.mxu0 0.0
    %316 = vmatprep.subr.mxu0 0.0
    %317 = vmatpush1.msra.mxu0 0.0
    %318 = vmatprep.subr.mxu0 0.0
    %319 = vmatpush1.msra.mxu0 0.0
    %320 = vmatprep.subr.mxu0 0.0
    %321 = vmatpush1.msra.mxu0 0.0
    %322 = vmatprep.subr.mxu0 0.0
    %323 = vmatpush1.msra.mxu0 0.0
    %324 = vmatprep.subr.mxu0 0.0
    %325 = vmatpush1.msra.mxu0 0.0
    %326 = vmatprep.subr.mxu0 0.0
    %327 = vmatpush1.msra.mxu0 0.0
    %328 = vmatprep.subr.mxu0 0.0
    %329 = vmatpush1.msra.mxu0 0.0
    %330 = vmatprep.subr.mxu0 0.0
    %331 = vmatpush1.msra.mxu0 0.0
    %332 = vmatprep.subr.mxu0 0.0
    %333 = vmatpush1.msra.mxu0 0.0
    %334 = vmatprep.subr.mxu0 0.0
    %335 = vmatpush1.msra.mxu0 0.0
    %336 = vmatprep.subr.mxu0 0.0
    %337 = vmatpush1.msra.mxu0 0.0
    %338 = vmatprep.subr.mxu0 0.0
    %339 = vmatpush1.msra.mxu0 0.0
    %340 = vmatprep.subr.mxu0 0.0
    %341 = vmatpush1.msra.mxu0 0.0
    %342 = vmatprep.subr.mxu0 0.0
    %343 = vmatpush1.msra.mxu0 0.0
    %344 = vmatprep.subr.mxu0 0.0
    %345 = vmatpush1.msra.mxu0 0.0
    %346 = vmatprep.subr.mxu0 0.0
    %347 = vmatpush1.msra.mxu0 0.0
    %348 = vmatprep.subr.mxu0 0.0
    %349 = vmatpush1.msra.mxu0 0.0
    %350 = vmatprep.subr.mxu0 0.0
    %351 = vmatpush1.msra.mxu0 0.0
    %352 = vmatprep.subr.mxu0 0.0
    %353 = vmatpush1.msra.mxu0 0.0
    %354 = vmatprep.subr.mxu0 0.0
    %355 = vmatpush1.msra.mxu0 0.0
    %356 = vmatprep.subr.mxu0 0.0
    %357 = vmatpush1.msra.mxu0 0.0
    %358 = vmatprep.subr.mxu0 0.0
    %359 = vmatpush1.msra.mxu0 0.0
    %360 = vmatprep.subr.mxu0 0.0
    %361 = vmatpush1.msra.mxu0 0.0
    %362 = vmatprep.subr.mxu0 0.0
    %363 = vmatpush1.msra.mxu0 0.0
    %364 = vmatprep.subr.mxu0 0.0
    %365 = vmatpush1.msra.mxu0 0.0
    %366 = vmatprep.subr.mxu0 0.0
    %367 = vmatpush1.msra.mxu0 0.0
    %368 = vmatprep.subr.mxu0 0.0
    %369 = vmatpush1.msra.mxu0 0.0
    %370 = vmatprep.mubr.f32.mxu0 0.0
    %371 = vmatmul.mubr.f32.gmra.mrb[0].mxu0 %v301
    %v372 = vpop.f32.mrb[0].mxu0
    %v373 = vadd.f32 %v297, %v372
    %v374 = vpop.f32.mrb[0].mxu0
    %375 = vmatprep.mubr.f32.mxu0 0.0
    %376 = vmatmul.mubr.f32.gmra.mrb[0].mxu0 %v304
    %v377 = vpop.f32.mrb[0].mxu0
    %v378 = vadd.f32 %v297, %v377
    %v379 = vpop.f32.mrb[0].mxu0
    %380 = vdwg.mxu0
    %v382 = vlaneseq
    %v383 = vshrl.u32 %v382, 7
    %v384 = vsub.s32 0, %v383
    %v385 = vrot.slane %v217, %v384
    %v388 = vsel %vm299, %v373, 0
    %v391 = vsel %vm299, %v378, 0
    %393 = vmatprep.subr.mxu0 0.0
    %394 = vmatpush1.msra.mxu0 %v209
    %395 = vmatprep.subr.mxu0 0.0
    %396 = vmatpush1.msra.mxu0 %v210
    %397 = vmatprep.subr.mxu0 0.0
    %398 = vmatpush1.msra.mxu0 %v211
    %399 = vmatprep.subr.mxu0 0.0
    %400 = vmatpush1.msra.mxu0 %v212
    %401 = vmatprep.subr.mxu0 0.0
    %402 = vmatpush1.msra.mxu0 0.0
    %403 = vmatprep.subr.mxu0 0.0
    %404 = vmatpush1.msra.mxu0 0.0
    %405 = vmatprep.subr.mxu0 0.0
    %406 = vmatpush1.msra.mxu0 0.0
    %407 = vmatprep.subr.mxu0 0.0
    %408 = vmatpush1.msra.mxu0 0.0
    %409 = vmatprep.subr.mxu0 0.0
    %410 = vmatpush1.msra.mxu0 0.0
    %411 = vmatprep.subr.mxu0 0.0
    %412 = vmatpush1.msra.mxu0 0.0
    %413 = vmatprep.subr.mxu0 0.0
    %414 = vmatpush1.msra.mxu0 0.0
    %415 = vmatprep.subr.mxu0 0.0
    %416 = vmatpush1.msra.mxu0 0.0
    %417 = vmatprep.subr.mxu0 0.0
    %418 = vmatpush1.msra.mxu0 0.0
    %419 = vmatprep.subr.mxu0 0.0
    %420 = vmatpush1.msra.mxu0 0.0
    %421 = vmatprep.subr.mxu0 0.0
    %422 = vmatpush1.msra.mxu0 0.0
    %423 = vmatprep.subr.mxu0 0.0
    %424 = vmatpush1.msra.mxu0 0.0
    %425 = vmatprep.subr.mxu0 0.0
    %426 = vmatpush1.msra.mxu0 0.0
    %427 = vmatprep.subr.mxu0 0.0
    %428 = vmatpush1.msra.mxu0 0.0
    %429 = vmatprep.subr.mxu0 0.0
    %430 = vmatpush1.msra.mxu0 0.0
    %431 = vmatprep.subr.mxu0 0.0
    %432 = vmatpush1.msra.mxu0 0.0
    %433 = vmatprep.subr.mxu0 0.0
    %434 = vmatpush1.msra.mxu0 0.0
    %435 = vmatprep.subr.mxu0 0.0
    %436 = vmatpush1.msra.mxu0 0.0
    %437 = vmatprep.subr.mxu0 0.0
    %438 = vmatpush1.msra.mxu0 0.0
    %439 = vmatprep.subr.mxu0 0.0
    %440 = vmatpush1.msra.mxu0 0.0
    %441 = vmatprep.subr.mxu0 0.0
    %442 = vmatpush1.msra.mxu0 0.0
    %443 = vmatprep.subr.mxu0 0.0
    %444 = vmatpush1.msra.mxu0 0.0
    %445 = vmatprep.subr.mxu0 0.0
    %446 = vmatpush1.msra.mxu0 0.0
    %447 = vmatprep.subr.mxu0 0.0
    %448 = vmatpush1.msra.mxu0 0.0
    %449 = vmatprep.subr.mxu0 0.0
    %450 = vmatpush1.msra.mxu0 0.0
    %451 = vmatprep.subr.mxu0 0.0
    %452 = vmatpush1.msra.mxu0 0.0
    %453 = vmatprep.subr.mxu0 0.0
    %454 = vmatpush1.msra.mxu0 0.0
    %455 = vmatprep.subr.mxu0 0.0
    %456 = vmatpush1.msra.mxu0 0.0
    %457 = vmatprep.mubr.f32.mxu0 0.0
    %458 = vmatmul.mubr.f32.gmra.mrb[0].mxu0 %v388
    %v459 = vpop.f32.mrb[0].mxu0
    %v460 = vadd.f32 %v385, %v459
    %v461 = vpop.f32.mrb[0].mxu0
    %462 = vmatprep.mubr.f32.mxu0 0.0
    %463 = vmatmul.mubr.f32.gmra.mrb[0].mxu0 %v391
    %v464 = vpop.f32.mrb[0].mxu0
    %v465 = vadd.f32 %v385, %v464
    %v466 = vpop.f32.mrb[0].mxu0
    %467 = vdwg.mxu0
    %v469 = vlaneseq
    %v470 = vshrl.u32 %v469, 7
    %v471 = vsub.s32 0, %v470
    %v472 = vrot.slane %v226, %v471
    %474 = vmatprep.subr.mxu0 0.0
    %475 = vmatpush1.msra.mxu0 %v218
    %476 = vmatprep.subr.mxu0 0.0
    %477 = vmatpush1.msra.mxu0 %v219
    %478 = vmatprep.subr.mxu0 0.0
    %479 = vmatpush1.msra.mxu0 %v220
    %480 = vmatprep.subr.mxu0 0.0
    %481 = vmatpush1.msra.mxu0 %v221
    %482 = vmatprep.subr.mxu0 0.0
    %483 = vmatpush1.msra.mxu0 0.0
    %484 = vmatprep.subr.mxu0 0.0
    %485 = vmatpush1.msra.mxu0 0.0
    %486 = vmatprep.subr.mxu0 0.0
    %487 = vmatpush1.msra.mxu0 0.0
    %488 = vmatprep.subr.mxu0 0.0
    %489 = vmatpush1.msra.mxu0 0.0
    %490 = vmatprep.subr.mxu0 0.0
    %491 = vmatpush1.msra.mxu0 0.0
    %492 = vmatprep.subr.mxu0 0.0
    %493 = vmatpush1.msra.mxu0 0.0
    %494 = vmatprep.subr.mxu0 0.0
    %495 = vmatpush1.msra.mxu0 0.0
    %496 = vmatprep.subr.mxu0 0.0
    %497 = vmatpush1.msra.mxu0 0.0
    %498 = vmatprep.subr.mxu0 0.0
    %499 = vmatpush1.msra.mxu0 0.0
    %500 = vmatprep.subr.mxu0 0.0
    %501 = vmatpush1.msra.mxu0 0.0
    %502 = vmatprep.subr.mxu0 0.0
    %503 = vmatpush1.msra.mxu0 0.0
    %504 = vmatprep.subr.mxu0 0.0
    %505 = vmatpush1.msra.mxu0 0.0
    %506 = vmatprep.subr.mxu0 0.0
    %507 = vmatpush1.msra.mxu0 0.0
    %508 = vmatprep.subr.mxu0 0.0
    %509 = vmatpush1.msra.mxu0 0.0
    %510 = vmatprep.subr.mxu0 0.0
    %511 = vmatpush1.msra.mxu0 0.0
    %512 = vmatprep.subr.mxu0 0.0
    %513 = vmatpush1.msra.mxu0 0.0
    %514 = vmatprep.subr.mxu0 0.0
    %515 = vmatpush1.msra.mxu0 0.0
    %516 = vmatprep.subr.mxu0 0.0
    %517 = vmatpush1.msra.mxu0 0.0
    %518 = vmatprep.subr.mxu0 0.0
    %519 = vmatpush1.msra.mxu0 0.0
    %520 = vmatprep.subr.mxu0 0.0
    %521 = vmatpush1.msra.mxu0 0.0
    %522 = vmatprep.subr.mxu0 0.0
    %523 = vmatpush1.msra.mxu0 0.0
    %524 = vmatprep.subr.mxu0 0.0
    %525 = vmatpush1.msra.mxu0 0.0
    %526 = vmatprep.subr.mxu0 0.0
    %527 = vmatpush1.msra.mxu0 0.0
    %528 = vmatprep.subr.mxu0 0.0
    %529 = vmatpush1.msra.mxu0 0.0
    %530 = vmatprep.subr.mxu0 0.0
    %531 = vmatpush1.msra.mxu0 0.0
    %532 = vmatprep.subr.mxu0 0.0
    %533 = vmatpush1.msra.mxu0 0.0
    %534 = vmatprep.subr.mxu0 0.0
    %535 = vmatpush1.msra.mxu0 0.0
    %536 = vmatprep.subr.mxu0 0.0
    %537 = vmatpush1.msra.mxu0 0.0
    %538 = vmatprep.mubr.f32.mxu0 0.0
    %539 = vmatmul.mubr.f32.gmra.mrb[0].mxu0 %v388
    %v540 = vpop.f32.mrb[0].mxu0
    %v541 = vadd.f32 %v472, %v540
    %v542 = vpop.f32.mrb[0].mxu0
    %543 = vmatprep.mubr.f32.mxu0 0.0
    %544 = vmatmul.mubr.f32.gmra.mrb[0].mxu0 %v391
    %v545 = vpop.f32.mrb[0].mxu0
    %v546 = vadd.f32 %v472, %v545
    %v547 = vpop.f32.mrb[0].mxu0
    %548 = vdwg.mxu0
    %v550 = vsel %vm299, 0.0, 0
    %552 = vmatprep.subr.mxu0 0.0
    %553 = vmatpush1.msra.mxu0 %v213
    %554 = vmatprep.subr.mxu0 0.0
    %555 = vmatpush1.msra.mxu0 %v214
    %556 = vmatprep.subr.mxu0 0.0
    %557 = vmatpush1.msra.mxu0 %v215
    %558 = vmatprep.subr.mxu0 0.0
    %559 = vmatpush1.msra.mxu0 %v216
    %560 = vmatprep.subr.mxu0 0.0
    %561 = vmatpush1.msra.mxu0 0.0
    %562 = vmatprep.subr.mxu0 0.0
    %563 = vmatpush1.msra.mxu0 0.0
    %564 = vmatprep.subr.mxu0 0.0
    %565 = vmatpush1.msra.mxu0 0.0
    %566 = vmatprep.subr.mxu0 0.0
    %567 = vmatpush1.msra.mxu0 0.0
    %568 = vmatprep.subr.mxu0 0.0
    %569 = vmatpush1.msra.mxu0 0.0
    %570 = vmatprep.subr.mxu0 0.0
    %571 = vmatpush1.msra.mxu0 0.0
    %572 = vmatprep.subr.mxu0 0.0
    %573 = vmatpush1.msra.mxu0 0.0
    %574 = vmatprep.subr.mxu0 0.0
    %575 = vmatpush1.msra.mxu0 0.0
    %576 = vmatprep.subr.mxu0 0.0
    %577 = vmatpush1.msra.mxu0 0.0
    %578 = vmatprep.subr.mxu0 0.0
    %579 = vmatpush1.msra.mxu0 0.0
    %580 = vmatprep.subr.mxu0 0.0
    %581 = vmatpush1.msra.mxu0 0.0
    %582 = vmatprep.subr.mxu0 0.0
    %583 = vmatpush1.msra.mxu0 0.0
    %584 = vmatprep.subr.mxu0 0.0
    %585 = vmatpush1.msra.mxu0 0.0
    %586 = vmatprep.subr.mxu0 0.0
    %587 = vmatpush1.msra.mxu0 0.0
    %588 = vmatprep.subr.mxu0 0.0
    %589 = vmatpush1.msra.mxu0 0.0
    %590 = vmatprep.subr.mxu0 0.0
    %591 = vmatpush1.msra.mxu0 0.0
    %592 = vmatprep.subr.mxu0 0.0
    %593 = vmatpush1.msra.mxu0 0.0
    %594 = vmatprep.subr.mxu0 0.0
    %595 = vmatpush1.msra.mxu0 0.0
    %596 = vmatprep.subr.mxu0 0.0
    %597 = vmatpush1.msra.mxu0 0.0
    %598 = vmatprep.subr.mxu0 0.0
    %599 = vmatpush1.msra.mxu0 0.0
    %600 = vmatprep.subr.mxu0 0.0
    %601 = vmatpush1.msra.mxu0 0.0
    %602 = vmatprep.subr.mxu0 0.0
    %603 = vmatpush1.msra.mxu0 0.0
    %604 = vmatprep.subr.mxu0 0.0
    %605 = vmatpush1.msra.mxu0 0.0
    %606 = vmatprep.subr.mxu0 0.0
    %607 = vmatpush1.msra.mxu0 0.0
    %608 = vmatprep.subr.mxu0 0.0
    %609 = vmatpush1.msra.mxu0 0.0
    %610 = vmatprep.subr.mxu0 0.0
    %611 = vmatpush1.msra.mxu0 0.0
    %612 = vmatprep.subr.mxu0 0.0
    %613 = vmatpush1.msra.mxu0 0.0
    %614 = vmatprep.subr.mxu0 0.0
    %615 = vmatpush1.msra.mxu0 0.0
    %616 = vmatprep.mubr.f32.mxu0 0.0
    %617 = vmatmul.mubr.f32.gmra.mrb[0].mxu0 %v550
    %v618 = vpop.f32.mrb[0].mxu0
    %v619 = vadd.f32 0.0, %v618
    %v620 = vpop.f32.mrb[0].mxu0
    %621 = vdwg.mxu0
    %v622 = vadd.f32 %v460, %v619
    %623 = vmatprep.subr.mxu0 0.0
    %624 = vmatpush1.msra.mxu0 %v222
    %625 = vmatprep.subr.mxu0 0.0
    %626 = vmatpush1.msra.mxu0 %v223
    %627 = vmatprep.subr.mxu0 0.0
    %628 = vmatpush1.msra.mxu0 %v224
    %629 = vmatprep.subr.mxu0 0.0
    %630 = vmatpush1.msra.mxu0 %v225
    %631 = vmatprep.subr.mxu0 0.0
    %632 = vmatpush1.msra.mxu0 0.0
    %633 = vmatprep.subr.mxu0 0.0
    %634 = vmatpush1.msra.mxu0 0.0
    %635 = vmatprep.subr.mxu0 0.0
    %636 = vmatpush1.msra.mxu0 0.0
    %637 = vmatprep.subr.mxu0 0.0
    %638 = vmatpush1.msra.mxu0 0.0
    %639 = vmatprep.subr.mxu0 0.0
    %640 = vmatpush1.msra.mxu0 0.0
    %641 = vmatprep.subr.mxu0 0.0
    %642 = vmatpush1.msra.mxu0 0.0
    %643 = vmatprep.subr.mxu0 0.0
    %644 = vmatpush1.msra.mxu0 0.0
    %645 = vmatprep.subr.mxu0 0.0
    %646 = vmatpush1.msra.mxu0 0.0
    %647 = vmatprep.subr.mxu0 0.0
    %648 = vmatpush1.msra.mxu0 0.0
    %649 = vmatprep.subr.mxu0 0.0
    %650 = vmatpush1.msra.mxu0 0.0
    %651 = vmatprep.subr.mxu0 0.0
    %652 = vmatpush1.msra.mxu0 0.0
    %653 = vmatprep.subr.mxu0 0.0
    %654 = vmatpush1.msra.mxu0 0.0
    %655 = vmatprep.subr.mxu0 0.0
    %656 = vmatpush1.msra.mxu0 0.0
    %657 = vmatprep.subr.mxu0 0.0
    %658 = vmatpush1.msra.mxu0 0.0
    %659 = vmatprep.subr.mxu0 0.0
    %660 = vmatpush1.msra.mxu0 0.0
    %661 = vmatprep.subr.mxu0 0.0
    %662 = vmatpush1.msra.mxu0 0.0
    %663 = vmatprep.subr.mxu0 0.0
    %664 = vmatpush1.msra.mxu0 0.0
    %665 = vmatprep.subr.mxu0 0.0
    %666 = vmatpush1.msra.mxu0 0.0
    %667 = vmatprep.subr.mxu0 0.0
    %668 = vmatpush1.msra.mxu0 0.0
    %669 = vmatprep.subr.mxu0 0.0
    %670 = vmatpush1.msra.mxu0 0.0
    %671 = vmatprep.subr.mxu0 0.0
    %672 = vmatpush1.msra.mxu0 0.0
    %673 = vmatprep.subr.mxu0 0.0
    %674 = vmatpush1.msra.mxu0 0.0
    %675 = vmatprep.subr.mxu0 0.0
    %676 = vmatpush1.msra.mxu0 0.0
    %677 = vmatprep.subr.mxu0 0.0
    %678 = vmatpush1.msra.mxu0 0.0
    %679 = vmatprep.subr.mxu0 0.0
    %680 = vmatpush1.msra.mxu0 0.0
    %681 = vmatprep.subr.mxu0 0.0
    %682 = vmatpush1.msra.mxu0 0.0
    %683 = vmatprep.subr.mxu0 0.0
    %684 = vmatpush1.msra.mxu0 0.0
    %685 = vmatprep.subr.mxu0 0.0
    %686 = vmatpush1.msra.mxu0 0.0
    %687 = vmatprep.mubr.f32.mxu0 0.0
    %688 = vmatmul.mubr.f32.gmra.mrb[0].mxu0 %v550
    %v689 = vpop.f32.mrb[0].mxu0
    %v690 = vadd.f32 0.0, %v689
    %v691 = vpop.f32.mrb[0].mxu0
    %692 = vdwg.mxu0
    %v694 = vrot.slane %v690, 2
    %v696 = vadd.f32 %v546, %v694
    %v697 = vmul.f32 %v622, 0.5
    %v698 = vtanh.pop %v697
    %v699 = vmul.f32 %v698, 0.5
    %v700 = vadd.f32 %v699, 0.5
    %v701 = vmul.f32 %v696, 0.5
    %v702 = vtanh.pop %v701
    %v703 = vmul.f32 %v702, 0.5
    %v704 = vadd.f32 %v703, 0.5
    %v705 = vtanh.pop %v622
    %v706 = vtanh.pop %v696
    %v707 = vmul.f32 %v700, 0.0
    %709 = vrot.lane.b32.xlu0 %v705, 64
    %v710 = vpop.permute.xlu0 %709
    %v712 = vmul.f32 %v700, %v710
    %714 = vrot.lane.b32.xlu0 %v712, 32
    %v715 = vpop.permute.xlu0 %714
    %v717 = vadd.f32 %v707, %v715
    %v718 = vmul.f32 %v704, 0.0
    %720 = vrot.lane.b32.xlu0 %v706, 64
    %v721 = vpop.permute.xlu0 %720
    %v723 = vmul.f32 %v704, %v721
    %725 = vrot.lane.b32.xlu0 %v723, 32
    %v726 = vpop.permute.xlu0 %725
    %v728 = vadd.f32 %v718, %v726
    %v729 = vtanh.pop %v717
    %731 = vrot.lane.b32.xlu0 %v729, 64
    %v732 = vpop.permute.xlu0 %731
    %v734 = vmul.f32 %v700, %v732
    %v735 = vtanh.pop %v728
    %737 = vrot.lane.b32.xlu0 %v735, 64
    %v738 = vpop.permute.xlu0 %737
    %v740 = vmul.f32 %v704, %v738
    %742 = vrot.lane.b32.xlu0 %v734, 32
    %v743 = vpop.permute.xlu0 %742
    %vm745 = vcmask 254976
    %746 = vst.msk [vmem:[#allocation2] sm:$0x3] %vm745, %v743
    %748 = vrot.lane.b32.xlu0 %v740, 64
    %v749 = vpop.permute.xlu0 %748
    %vm751 = vcmask 523526
    %752 = vst.msk [vmem:[#allocation2 + $0x8] sm:$0xc0] %vm751, %v749
    %v753 = vsel %vm299, %v743, 0
    %755 = vmatprep.subr.mxu0 0.0
    %756 = vmatpush1.msra.mxu0 %v213
    %757 = vmatprep.subr.mxu0 0.0
    %758 = vmatpush1.msra.mxu0 %v214
    %759 = vmatprep.subr.mxu0 0.0
    %760 = vmatpush1.msra.mxu0 %v215
    %761 = vmatprep.subr.mxu0 0.0
    %762 = vmatpush1.msra.mxu0 %v216
    %763 = vmatprep.subr.mxu0 0.0
    %764 = vmatpush1.msra.mxu0 0.0
    %765 = vmatprep.subr.mxu0 0.0
    %766 = vmatpush1.msra.mxu0 0.0
    %767 = vmatprep.subr.mxu0 0.0
    %768 = vmatpush1.msra.mxu0 0.0
    %769 = vmatprep.subr.mxu0 0.0
    %770 = vmatpush1.msra.mxu0 0.0
    %771 = vmatprep.subr.mxu0 0.0
    %772 = vmatpush1.msra.mxu0 0.0
    %773 = vmatprep.subr.mxu0 0.0
    %774 = vmatpush1.msra.mxu0 0.0
    %775 = vmatprep.subr.mxu0 0.0
    %776 = vmatpush1.msra.mxu0 0.0
    %777 = vmatprep.subr.mxu0 0.0
    %778 = vmatpush1.msra.mxu0 0.0
    %779 = vmatprep.subr.mxu0 0.0
    %780 = vmatpush1.msra.mxu0 0.0
    %781 = vmatprep.subr.mxu0 0.0
    %782 = vmatpush1.msra.mxu0 0.0
    %783 = vmatprep.subr.mxu0 0.0
    %784 = vmatpush1.msra.mxu0 0.0
    %785 = vmatprep.subr.mxu0 0.0
    %786 = vmatpush1.msra.mxu0 0.0
    %787 = vmatprep.subr.mxu0 0.0
    %788 = vmatpush1.msra.mxu0 0.0
    %789 = vmatprep.subr.mxu0 0.0
    %790 = vmatpush1.msra.mxu0 0.0
    %791 = vmatprep.subr.mxu0 0.0
    %792 = vmatpush1.msra.mxu0 0.0
    %793 = vmatprep.subr.mxu0 0.0
    %794 = vmatpush1.msra.mxu0 0.0
    %795 = vmatprep.subr.mxu0 0.0
    %796 = vmatpush1.msra.mxu0 0.0
    %797 = vmatprep.subr.mxu0 0.0
    %798 = vmatpush1.msra.mxu0 0.0
    %799 = vmatprep.subr.mxu0 0.0
    %800 = vmatpush1.msra.mxu0 0.0
    %801 = vmatprep.subr.mxu0 0.0
    %802 = vmatpush1.msra.mxu0 0.0
    %803 = vmatprep.subr.mxu0 0.0
    %804 = vmatpush1.msra.mxu0 0.0
    %805 = vmatprep.subr.mxu0 0.0
    %806 = vmatpush1.msra.mxu0 0.0
    %807 = vmatprep.subr.mxu0 0.0
    %808 = vmatpush1.msra.mxu0 0.0
    %809 = vmatprep.subr.mxu0 0.0
    %810 = vmatpush1.msra.mxu0 0.0
    %811 = vmatprep.subr.mxu0 0.0
    %812 = vmatpush1.msra.mxu0 0.0
    %813 = vmatprep.subr.mxu0 0.0
    %814 = vmatpush1.msra.mxu0 0.0
    %815 = vmatprep.subr.mxu0 0.0
    %816 = vmatpush1.msra.mxu0 0.0
    %817 = vmatprep.subr.mxu0 0.0
    %818 = vmatpush1.msra.mxu0 0.0
    %819 = vmatprep.mubr.f32.mxu0 0.0
    %820 = vmatmul.mubr.f32.gmra.mrb[0].mxu0 %v753
    %v821 = vpop.f32.mrb[0].mxu0
    %v822 = vadd.f32 0.0, %v821
    %v823 = vpop.f32.mrb[0].mxu0
    %824 = vdwg.mxu0
    %v826 = vrot.slane %v822, 6
    %v828 = vadd.f32 %v460, %v826
    %v829 = vrot.slane %v740, 6
    %830 = vrot.lane.b32.xlu0 %v829, 32
    %v831 = vpop.permute.xlu0 %830
    %v832 = vsel %vm299, %v831, 0
    %834 = vmatprep.subr.mxu0 0.0
    %835 = vmatpush1.msra.mxu0 %v222
    %836 = vmatprep.subr.mxu0 0.0
    %837 = vmatpush1.msra.mxu0 %v223
    %838 = vmatprep.subr.mxu0 0.0
    %839 = vmatpush1.msra.mxu0 %v224
    %840 = vmatprep.subr.mxu0 0.0
    %841 = vmatpush1.msra.mxu0 %v225
    %842 = vmatprep.subr.mxu0 0.0
    %843 = vmatpush1.msra.mxu0 0.0
    %844 = vmatprep.subr.mxu0 0.0
    %845 = vmatpush1.msra.mxu0 0.0
    %846 = vmatprep.subr.mxu0 0.0
    %847 = vmatpush1.msra.mxu0 0.0
    %848 = vmatprep.subr.mxu0 0.0
    %849 = vmatpush1.msra.mxu0 0.0
    %850 = vmatprep.subr.mxu0 0.0
    %851 = vmatpush1.msra.mxu0 0.0
    %852 = vmatprep.subr.mxu0 0.0
    %853 = vmatpush1.msra.mxu0 0.0
    %854 = vmatprep.subr.mxu0 0.0
    %855 = vmatpush1.msra.mxu0 0.0
    %856 = vmatprep.subr.mxu0 0.0
    %857 = vmatpush1.msra.mxu0 0.0
    %858 = vmatprep.subr.mxu0 0.0
    %859 = vmatpush1.msra.mxu0 0.0
    %860 = vmatprep.subr.mxu0 0.0
    %861 = vmatpush1.msra.mxu0 0.0
    %862 = vmatprep.subr.mxu0 0.0
    %863 = vmatpush1.msra.mxu0 0.0
    %864 = vmatprep.subr.mxu0 0.0
    %865 = vmatpush1.msra.mxu0 0.0
    %866 = vmatprep.subr.mxu0 0.0
    %867 = vmatpush1.msra.mxu0 0.0
    %868 = vmatprep.subr.mxu0 0.0
    %869 = vmatpush1.msra.mxu0 0.0
    %870 = vmatprep.subr.mxu0 0.0
    %871 = vmatpush1.msra.mxu0 0.0
    %872 = vmatprep.subr.mxu0 0.0
    %873 = vmatpush1.msra.mxu0 0.0
    %874 = vmatprep.subr.mxu0 0.0
    %875 = vmatpush1.msra.mxu0 0.0
    %876 = vmatprep.subr.mxu0 0.0
    %877 = vmatpush1.msra.mxu0 0.0
    %878 = vmatprep.subr.mxu0 0.0
    %879 = vmatpush1.msra.mxu0 0.0
    %880 = vmatprep.subr.mxu0 0.0
    %881 = vmatpush1.msra.mxu0 0.0
    %882 = vmatprep.subr.mxu0 0.0
    %883 = vmatpush1.msra.mxu0 0.0
    %884 = vmatprep.subr.mxu0 0.0
    %885 = vmatpush1.msra.mxu0 0.0
    %886 = vmatprep.subr.mxu0 0.0
    %887 = vmatpush1.msra.mxu0 0.0
    %888 = vmatprep.subr.mxu0 0.0
    %889 = vmatpush1.msra.mxu0 0.0
    %890 = vmatprep.subr.mxu0 0.0
    %891 = vmatpush1.msra.mxu0 0.0
    %892 = vmatprep.subr.mxu0 0.0
    %893 = vmatpush1.msra.mxu0 0.0
    %894 = vmatprep.subr.mxu0 0.0
    %895 = vmatpush1.msra.mxu0 0.0
    %896 = vmatprep.subr.mxu0 0.0
    %897 = vmatpush1.msra.mxu0 0.0
    %898 = vmatprep.mubr.f32.mxu0 0.0
    %899 = vmatmul.mubr.f32.gmra.mrb[0].mxu0 %v832
    %v900 = vpop.f32.mrb[0].mxu0
    %v901 = vadd.f32 0.0, %v900
    %v902 = vpop.f32.mrb[0].mxu0
    %903 = vdwg.mxu0
    %v905 = vrot.slane %v901, 4
    %v907 = vadd.f32 %v546, %v905
    %v908 = vmul.f32 %v828, 0.5
    %v909 = vtanh.pop %v908
    %v910 = vmul.f32 %v909, 0.5
    %v911 = vadd.f32 %v910, 0.5
    %v912 = vmul.f32 %v907, 0.5
    %v913 = vtanh.pop %v912
    %v914 = vmul.f32 %v913, 0.5
    %v915 = vadd.f32 %v914, 0.5
    %v916 = vtanh.pop %v828
    %v917 = vtanh.pop %v907
    %v919 = vrot.slane %v717, 6
    %v921 = vmul.f32 %v911, %v919
    %923 = vrot.lane.b32.xlu0 %v916, 64
    %v924 = vpop.permute.xlu0 %923
    %v926 = vmul.f32 %v911, %v924
    %928 = vrot.lane.b32.xlu0 %v926, 32
    %v929 = vpop.permute.xlu0 %928
    %v931 = vadd.f32 %v921, %v929
    %v933 = vrot.slane %v728, 2
    %v935 = vmul.f32 %v915, %v933
    %937 = vrot.lane.b32.xlu0 %v917, 64
    %v938 = vpop.permute.xlu0 %937
    %v940 = vmul.f32 %v915, %v938
    %942 = vrot.lane.b32.xlu0 %v940, 32
    %v943 = vpop.permute.xlu0 %942
    %v945 = vadd.f32 %v935, %v943
    %v946 = vtanh.pop %v931
    %948 = vrot.lane.b32.xlu0 %v946, 64
    %v949 = vpop.permute.xlu0 %948
    %v951 = vmul.f32 %v911, %v949
    %v952 = vtanh.pop %v945
    %954 = vrot.lane.b32.xlu0 %v952, 64
    %v955 = vpop.permute.xlu0 %954
    %v957 = vmul.f32 %v915, %v955
    %959 = vrot.lane.b32.xlu0 %v951, 32
    %v960 = vpop.permute.xlu0 %959
    %vm962 = vcmask 257026
    %963 = vst.msk [vmem:[#allocation2] sm:$0xc] %vm962, %v960
    %965 = vrot.lane.b32.xlu0 %v957, 64
    %v966 = vpop.permute.xlu0 %965
    %vm968 = vcmask 521476
    %969 = vst.msk [vmem:[#allocation2 + $0x8] sm:$0x30] %vm968, %v966
    %v970 = vrot.slane %v951, 2
    %971 = vrot.lane.b32.xlu0 %v970, 32
    %v972 = vpop.permute.xlu0 %971
    %v973 = vsel %vm299, %v972, 0
    %975 = vmatprep.subr.mxu0 0.0
    %976 = vmatpush1.msra.mxu0 %v213
    %977 = vmatprep.subr.mxu0 0.0
    %978 = vmatpush1.msra.mxu0 %v214
    %979 = vmatprep.subr.mxu0 0.0
    %980 = vmatpush1.msra.mxu0 %v215
    %981 = vmatprep.subr.mxu0 0.0
    %982 = vmatpush1.msra.mxu0 %v216
    %983 = vmatprep.subr.mxu0 0.0
    %984 = vmatpush1.msra.mxu0 0.0
    %985 = vmatprep.subr.mxu0 0.0
    %986 = vmatpush1.msra.mxu0 0.0
    %987 = vmatprep.subr.mxu0 0.0
    %988 = vmatpush1.msra.mxu0 0.0
    %989 = vmatprep.subr.mxu0 0.0
    %990 = vmatpush1.msra.mxu0 0.0
    %991 = vmatprep.subr.mxu0 0.0
    %992 = vmatpush1.msra.mxu0 0.0
    %993 = vmatprep.subr.mxu0 0.0
    %994 = vmatpush1.msra.mxu0 0.0
    %995 = vmatprep.subr.mxu0 0.0
    %996 = vmatpush1.msra.mxu0 0.0
    %997 = vmatprep.subr.mxu0 0.0
    %998 = vmatpush1.msra.mxu0 0.0
    %999 = vmatprep.subr.mxu0 0.0
    %1000 = vmatpush1.msra.mxu0 0.0
    %1001 = vmatprep.subr.mxu0 0.0
    %1002 = vmatpush1.msra.mxu0 0.0
    %1003 = vmatprep.subr.mxu0 0.0
    %1004 = vmatpush1.msra.mxu0 0.0
    %1005 = vmatprep.subr.mxu0 0.0
    %1006 = vmatpush1.msra.mxu0 0.0
    %1007 = vmatprep.subr.mxu0 0.0
    %1008 = vmatpush1.msra.mxu0 0.0
    %1009 = vmatprep.subr.mxu0 0.0
    %1010 = vmatpush1.msra.mxu0 0.0
    %1011 = vmatprep.subr.mxu0 0.0
    %1012 = vmatpush1.msra.mxu0 0.0
    %1013 = vmatprep.subr.mxu0 0.0
    %1014 = vmatpush1.msra.mxu0 0.0
    %1015 = vmatprep.subr.mxu0 0.0
    %1016 = vmatpush1.msra.mxu0 0.0
    %1017 = vmatprep.subr.mxu0 0.0
    %1018 = vmatpush1.msra.mxu0 0.0
    %1019 = vmatprep.subr.mxu0 0.0
    %1020 = vmatpush1.msra.mxu0 0.0
    %1021 = vmatprep.subr.mxu0 0.0
    %1022 = vmatpush1.msra.mxu0 0.0
    %1023 = vmatprep.subr.mxu0 0.0
    %1024 = vmatpush1.msra.mxu0 0.0
    %1025 = vmatprep.subr.mxu0 0.0
    %1026 = vmatpush1.msra.mxu0 0.0
    %1027 = vmatprep.subr.mxu0 0.0
    %1028 = vmatpush1.msra.mxu0 0.0
    %1029 = vmatprep.subr.mxu0 0.0
    %1030 = vmatpush1.msra.mxu0 0.0
    %1031 = vmatprep.subr.mxu0 0.0
    %1032 = vmatpush1.msra.mxu0 0.0
    %1033 = vmatprep.subr.mxu0 0.0
    %1034 = vmatpush1.msra.mxu0 0.0
    %1035 = vmatprep.subr.mxu0 0.0
    %1036 = vmatpush1.msra.mxu0 0.0
    %1037 = vmatprep.subr.mxu0 0.0
    %1038 = vmatpush1.msra.mxu0 0.0
    %1039 = vmatprep.mubr.f32.mxu0 0.0
    %1040 = vmatmul.mubr.f32.gmra.mrb[0].mxu0 %v973
    %v1041 = vpop.f32.mrb[0].mxu0
    %v1042 = vadd.f32 0.0, %v1041
    %v1043 = vpop.f32.mrb[0].mxu0
    %1044 = vdwg.mxu0
    %v1046 = vrot.slane %v1042, 4
    %v1048 = vadd.f32 %v460, %v1046
    %v1049 = vrot.slane %v957, 4
    %1050 = vrot.lane.b32.xlu0 %v1049, 32
    %v1051 = vpop.permute.xlu0 %1050
    %v1052 = vsel %vm299, %v1051, 0
    %1054 = vmatprep.subr.mxu0 0.0
    %1055 = vmatpush1.msra.mxu0 %v222
    %1056 = vmatprep.subr.mxu0 0.0
    %1057 = vmatpush1.msra.mxu0 %v223
    %1058 = vmatprep.subr.mxu0 0.0
    %1059 = vmatpush1.msra.mxu0 %v224
    %1060 = vmatprep.subr.mxu0 0.0
    %1061 = vmatpush1.msra.mxu0 %v225
    %1062 = vmatprep.subr.mxu0 0.0
    %1063 = vmatpush1.msra.mxu0 0.0
    %1064 = vmatprep.subr.mxu0 0.0
    %1065 = vmatpush1.msra.mxu0 0.0
    %1066 = vmatprep.subr.mxu0 0.0
    %1067 = vmatpush1.msra.mxu0 0.0
    %1068 = vmatprep.subr.mxu0 0.0
    %1069 = vmatpush1.msra.mxu0 0.0
    %1070 = vmatprep.subr.mxu0 0.0
    %1071 = vmatpush1.msra.mxu0 0.0
    %1072 = vmatprep.subr.mxu0 0.0
    %1073 = vmatpush1.msra.mxu0 0.0
    %1074 = vmatprep.subr.mxu0 0.0
    %1075 = vmatpush1.msra.mxu0 0.0
    %1076 = vmatprep.subr.mxu0 0.0
    %1077 = vmatpush1.msra.mxu0 0.0
    %1078 = vmatprep.subr.mxu0 0.0
    %1079 = vmatpush1.msra.mxu0 0.0
    %1080 = vmatprep.subr.mxu0 0.0
    %1081 = vmatpush1.msra.mxu0 0.0
    %1082 = vmatprep.subr.mxu0 0.0
    %1083 = vmatpush1.msra.mxu0 0.0
    %1084 = vmatprep.subr.mxu0 0.0
    %1085 = vmatpush1.msra.mxu0 0.0
    %1086 = vmatprep.subr.mxu0 0.0
    %1087 = vmatpush1.msra.mxu0 0.0
    %1088 = vmatprep.subr.mxu0 0.0
    %1089 = vmatpush1.msra.mxu0 0.0
    %1090 = vmatprep.subr.mxu0 0.0
    %1091 = vmatpush1.msra.mxu0 0.0
    %1092 = vmatprep.subr.mxu0 0.0
    %1093 = vmatpush1.msra.mxu0 0.0
    %1094 = vmatprep.subr.mxu0 0.0
    %1095 = vmatpush1.msra.mxu0 0.0
    %1096 = vmatprep.subr.mxu0 0.0
    %1097 = vmatpush1.msra.mxu0 0.0
    %1098 = vmatprep.subr.mxu0 0.0
    %1099 = vmatpush1.msra.mxu0 0.0
    %1100 = vmatprep.subr.mxu0 0.0
    %1101 = vmatpush1.msra.mxu0 0.0
    %1102 = vmatprep.subr.mxu0 0.0
    %1103 = vmatpush1.msra.mxu0 0.0
    %1104 = vmatprep.subr.mxu0 0.0
    %1105 = vmatpush1.msra.mxu0 0.0
    %1106 = vmatprep.subr.mxu0 0.0
    %1107 = vmatpush1.msra.mxu0 0.0
    %1108 = vmatprep.subr.mxu0 0.0
    %1109 = vmatpush1.msra.mxu0 0.0
    %1110 = vmatprep.subr.mxu0 0.0
    %1111 = vmatpush1.msra.mxu0 0.0
    %1112 = vmatprep.subr.mxu0 0.0
    %1113 = vmatpush1.msra.mxu0 0.0
    %1114 = vmatprep.subr.mxu0 0.0
    %1115 = vmatpush1.msra.mxu0 0.0
    %1116 = vmatprep.subr.mxu0 0.0
    %1117 = vmatpush1.msra.mxu0 0.0
    %1118 = vmatprep.mubr.f32.mxu0 0.0
    %1119 = vmatmul.mubr.f32.gmra.mrb[0].mxu0 %v1052
    %v1120 = vpop.f32.mrb[0].mxu0
    %v1121 = vadd.f32 0.0, %v1120
    %v1122 = vpop.f32.mrb[0].mxu0
    %1123 = vdwg.mxu0
    %v1125 = vrot.slane %v1121, 6
    %v1127 = vadd.f32 %v546, %v1125
    %v1128 = vmul.f32 %v1048, 0.5
    %v1129 = vtanh.pop %v1128
    %v1130 = vmul.f32 %v1129, 0.5
    %v1131 = vadd.f32 %v1130, 0.5
    %v1132 = vmul.f32 %v1127, 0.5
    %v1133 = vtanh.pop %v1132
    %v1134 = vmul.f32 %v1133, 0.5
    %v1135 = vadd.f32 %v1134, 0.5
    %v1136 = vtanh.pop %v1048
    %v1137 = vtanh.pop %v1127
    %v1139 = vrot.slane %v931, 6
    %v1141 = vmul.f32 %v1131, %v1139
    %1143 = vrot.lane.b32.xlu0 %v1136, 64
    %v1144 = vpop.permute.xlu0 %1143
    %v1146 = vmul.f32 %v1131, %v1144
    %1148 = vrot.lane.b32.xlu0 %v1146, 32
    %v1149 = vpop.permute.xlu0 %1148
    %v1151 = vadd.f32 %v1141, %v1149
    %v1153 = vrot.slane %v945, 2
    %v1155 = vmul.f32 %v1135, %v1153
    %1157 = vrot.lane.b32.xlu0 %v1137, 64
    %v1158 = vpop.permute.xlu0 %1157
    %v1160 = vmul.f32 %v1135, %v1158
    %1162 = vrot.lane.b32.xlu0 %v1160, 32
    %v1163 = vpop.permute.xlu0 %1162
    %v1165 = vadd.f32 %v1155, %v1163
    %v1166 = vtanh.pop %v1151
    %1168 = vrot.lane.b32.xlu0 %v1166, 64
    %v1169 = vpop.permute.xlu0 %1168
    %v1171 = vmul.f32 %v1131, %v1169
    %v1172 = vtanh.pop %v1165
    %1174 = vrot.lane.b32.xlu0 %v1172, 64
    %v1175 = vpop.permute.xlu0 %1174
    %v1177 = vmul.f32 %v1135, %v1175
    %1179 = vrot.lane.b32.xlu0 %v1171, 32
    %v1180 = vpop.permute.xlu0 %1179
    %vm1182 = vcmask 259076
    %1183 = vst.msk [vmem:[#allocation2] sm:$0x30] %vm1182, %v1180
    %1185 = vrot.lane.b32.xlu0 %v1177, 64
    %v1186 = vpop.permute.xlu0 %1185
    %vm1188 = vcmask 519426
    %1189 = vst.msk [vmem:[#allocation2 + $0x8] sm:$0xc] %vm1188, %v1186
    %v1190 = vrot.slane %v1171, 4
    %1191 = vrot.lane.b32.xlu0 %v1190, 32
    %v1192 = vpop.permute.xlu0 %1191
    %v1193 = vsel %vm299, %v1192, 0
    %1195 = vmatprep.subr.mxu0 0.0
    %1196 = vmatpush1.msra.mxu0 %v213
    %1197 = vmatprep.subr.mxu0 0.0
    %1198 = vmatpush1.msra.mxu0 %v214
    %1199 = vmatprep.subr.mxu0 0.0
    %1200 = vmatpush1.msra.mxu0 %v215
    %1201 = vmatprep.subr.mxu0 0.0
    %1202 = vmatpush1.msra.mxu0 %v216
    %1203 = vmatprep.subr.mxu0 0.0
    %1204 = vmatpush1.msra.mxu0 0.0
    %1205 = vmatprep.subr.mxu0 0.0
    %1206 = vmatpush1.msra.mxu0 0.0
    %1207 = vmatprep.subr.mxu0 0.0
    %1208 = vmatpush1.msra.mxu0 0.0
    %1209 = vmatprep.subr.mxu0 0.0
    %1210 = vmatpush1.msra.mxu0 0.0
    %1211 = vmatprep.subr.mxu0 0.0
    %1212 = vmatpush1.msra.mxu0 0.0
    %1213 = vmatprep.subr.mxu0 0.0
    %1214 = vmatpush1.msra.mxu0 0.0
    %1215 = vmatprep.subr.mxu0 0.0
    %1216 = vmatpush1.msra.mxu0 0.0
    %1217 = vmatprep.subr.mxu0 0.0
    %1218 = vmatpush1.msra.mxu0 0.0
    %1219 = vmatprep.subr.mxu0 0.0
    %1220 = vmatpush1.msra.mxu0 0.0
    %1221 = vmatprep.subr.mxu0 0.0
    %1222 = vmatpush1.msra.mxu0 0.0
    %1223 = vmatprep.subr.mxu0 0.0
    %1224 = vmatpush1.msra.mxu0 0.0
    %1225 = vmatprep.subr.mxu0 0.0
    %1226 = vmatpush1.msra.mxu0 0.0
    %1227 = vmatprep.subr.mxu0 0.0
    %1228 = vmatpush1.msra.mxu0 0.0
    %1229 = vmatprep.subr.mxu0 0.0
    %1230 = vmatpush1.msra.mxu0 0.0
    %1231 = vmatprep.subr.mxu0 0.0
    %1232 = vmatpush1.msra.mxu0 0.0
    %1233 = vmatprep.subr.mxu0 0.0
    %1234 = vmatpush1.msra.mxu0 0.0
    %1235 = vmatprep.subr.mxu0 0.0
    %1236 = vmatpush1.msra.mxu0 0.0
    %1237 = vmatprep.subr.mxu0 0.0
    %1238 = vmatpush1.msra.mxu0 0.0
    %1239 = vmatprep.subr.mxu0 0.0
    %1240 = vmatpush1.msra.mxu0 0.0
    %1241 = vmatprep.subr.mxu0 0.0
    %1242 = vmatpush1.msra.mxu0 0.0
    %1243 = vmatprep.subr.mxu0 0.0
    %1244 = vmatpush1.msra.mxu0 0.0
    %1245 = vmatprep.subr.mxu0 0.0
    %1246 = vmatpush1.msra.mxu0 0.0
    %1247 = vmatprep.subr.mxu0 0.0
    %1248 = vmatpush1.msra.mxu0 0.0
    %1249 = vmatprep.subr.mxu0 0.0
    %1250 = vmatpush1.msra.mxu0 0.0
    %1251 = vmatprep.subr.mxu0 0.0
    %1252 = vmatpush1.msra.mxu0 0.0
    %1253 = vmatprep.subr.mxu0 0.0
    %1254 = vmatpush1.msra.mxu0 0.0
    %1255 = vmatprep.subr.mxu0 0.0
    %1256 = vmatpush1.msra.mxu0 0.0
    %1257 = vmatprep.subr.mxu0 0.0
    %1258 = vmatpush1.msra.mxu0 0.0
    %1259 = vmatprep.mubr.f32.mxu0 0.0
    %1260 = vmatmul.mubr.f32.gmra.mrb[0].mxu0 %v1193
    %v1261 = vpop.f32.mrb[0].mxu0
    %v1262 = vadd.f32 0.0, %v1261
    %v1263 = vpop.f32.mrb[0].mxu0
    %1264 = vdwg.mxu0
    %v1266 = vrot.slane %v1262, 2
    %v1268 = vadd.f32 %v460, %v1266
    %v1269 = vrot.slane %v1177, 2
    %1270 = vrot.lane.b32.xlu0 %v1269, 32
    %v1271 = vpop.permute.xlu0 %1270
    %v1272 = vsel %vm299, %v1271, 0
    %1274 = vmatprep.subr.mxu0 0.0
    %1275 = vmatpush1.msra.mxu0 %v222
    %1276 = vmatprep.subr.mxu0 0.0
    %1277 = vmatpush1.msra.mxu0 %v223
    %1278 = vmatprep.subr.mxu0 0.0
    %1279 = vmatpush1.msra.mxu0 %v224
    %1280 = vmatprep.subr.mxu0 0.0
    %1281 = vmatpush1.msra.mxu0 %v225
    %1282 = vmatprep.subr.mxu0 0.0
    %1283 = vmatpush1.msra.mxu0 0.0
    %1284 = vmatprep.subr.mxu0 0.0
    %1285 = vmatpush1.msra.mxu0 0.0
    %1286 = vmatprep.subr.mxu0 0.0
    %1287 = vmatpush1.msra.mxu0 0.0
    %1288 = vmatprep.subr.mxu0 0.0
    %1289 = vmatpush1.msra.mxu0 0.0
    %1290 = vmatprep.subr.mxu0 0.0
    %1291 = vmatpush1.msra.mxu0 0.0
    %1292 = vmatprep.subr.mxu0 0.0
    %1293 = vmatpush1.msra.mxu0 0.0
    %1294 = vmatprep.subr.mxu0 0.0
    %1295 = vmatpush1.msra.mxu0 0.0
    %1296 = vmatprep.subr.mxu0 0.0
    %1297 = vmatpush1.msra.mxu0 0.0
    %1298 = vmatprep.subr.mxu0 0.0
    %1299 = vmatpush1.msra.mxu0 0.0
    %1300 = vmatprep.subr.mxu0 0.0
    %1301 = vmatpush1.msra.mxu0 0.0
    %1302 = vmatprep.subr.mxu0 0.0
    %1303 = vmatpush1.msra.mxu0 0.0
    %1304 = vmatprep.subr.mxu0 0.0
    %1305 = vmatpush1.msra.mxu0 0.0
    %1306 = vmatprep.subr.mxu0 0.0
    %1307 = vmatpush1.msra.mxu0 0.0
    %1308 = vmatprep.subr.mxu0 0.0
    %1309 = vmatpush1.msra.mxu0 0.0
    %1310 = vmatprep.subr.mxu0 0.0
    %1311 = vmatpush1.msra.mxu0 0.0
    %1312 = vmatprep.subr.mxu0 0.0
    %1313 = vmatpush1.msra.mxu0 0.0
    %1314 = vmatprep.subr.mxu0 0.0
    %1315 = vmatpush1.msra.mxu0 0.0
    %1316 = vmatprep.subr.mxu0 0.0
    %1317 = vmatpush1.msra.mxu0 0.0
    %1318 = vmatprep.subr.mxu0 0.0
    %1319 = vmatpush1.msra.mxu0 0.0
    %1320 = vmatprep.subr.mxu0 0.0
    %1321 = vmatpush1.msra.mxu0 0.0
    %1322 = vmatprep.subr.mxu0 0.0
    %1323 = vmatpush1.msra.mxu0 0.0
    %1324 = vmatprep.subr.mxu0 0.0
    %1325 = vmatpush1.msra.mxu0 0.0
    %1326 = vmatprep.subr.mxu0 0.0
    %1327 = vmatpush1.msra.mxu0 0.0
    %1328 = vmatprep.subr.mxu0 0.0
    %1329 = vmatpush1.msra.mxu0 0.0
    %1330 = vmatprep.subr.mxu0 0.0
    %1331 = vmatpush1.msra.mxu0 0.0
    %1332 = vmatprep.subr.mxu0 0.0
    %1333 = vmatpush1.msra.mxu0 0.0
    %1334 = vmatprep.subr.mxu0 0.0
    %1335 = vmatpush1.msra.mxu0 0.0
    %1336 = vmatprep.subr.mxu0 0.0
    %1337 = vmatpush1.msra.mxu0 0.0
    %1338 = vmatprep.mubr.f32.mxu0 0.0
    %1339 = vmatmul.mubr.f32.gmra.mrb[0].mxu0 %v1272
    %v1340 = vpop.f32.mrb[0].mxu0
    %v1341 = vadd.f32 0.0, %v1340
    %v1342 = vpop.f32.mrb[0].mxu0
    %1343 = vdwg.mxu0
    %v1344 = vadd.f32 %v546, %v1341
    %v1345 = vmul.f32 %v1268, 0.5
    %v1346 = vtanh.pop %v1345
    %v1347 = vmul.f32 %v1346, 0.5
    %v1348 = vadd.f32 %v1347, 0.5
    %v1349 = vmul.f32 %v1344, 0.5
    %v1350 = vtanh.pop %v1349
    %v1351 = vmul.f32 %v1350, 0.5
    %v1352 = vadd.f32 %v1351, 0.5
    %v1353 = vtanh.pop %v1268
    %v1354 = vtanh.pop %v1344
    %v1356 = vrot.slane %v1151, 6
    %v1358 = vmul.f32 %v1348, %v1356
    %1360 = vrot.lane.b32.xlu0 %v1353, 64
    %v1361 = vpop.permute.xlu0 %1360
    %v1363 = vmul.f32 %v1348, %v1361
    %1365 = vrot.lane.b32.xlu0 %v1363, 32
    %v1366 = vpop.permute.xlu0 %1365
    %v1368 = vadd.f32 %v1358, %v1366
    %v1370 = vrot.slane %v1165, 2
    %v1372 = vmul.f32 %v1352, %v1370
    %1374 = vrot.lane.b32.xlu0 %v1354, 64
    %v1375 = vpop.permute.xlu0 %1374
    %v1377 = vmul.f32 %v1352, %v1375
    %1379 = vrot.lane.b32.xlu0 %v1377, 32
    %v1380 = vpop.permute.xlu0 %1379
    %v1382 = vadd.f32 %v1372, %v1380
    %v1383 = vtanh.pop %v1368
    %1385 = vrot.lane.b32.xlu0 %v1383, 64
    %v1386 = vpop.permute.xlu0 %1385
    %v1388 = vmul.f32 %v1348, %v1386
    %v1389 = vtanh.pop %v1382
    %1391 = vrot.lane.b32.xlu0 %v1389, 64
    %v1392 = vpop.permute.xlu0 %1391
    %v1394 = vmul.f32 %v1352, %v1392
    %1396 = vrot.lane.b32.xlu0 %v1388, 32
    %v1397 = vpop.permute.xlu0 %1396
    %vm1399 = vcmask 261126
    %1400 = vst.msk [vmem:[#allocation2] sm:$0xc0] %vm1399, %v1397
    %1402 = vrot.lane.b32.xlu0 %v1394, 64
    %v1403 = vpop.permute.xlu0 %1402
    %vm1405 = vcmask 517376
    %1406 = vst.msk [vmem:[#allocation2 + $0x8] sm:$0x3] %vm1405, %v1403
    %v1407 = vrot.slane %v1388, 6
    %1408 = vrot.lane.b32.xlu0 %v1407, 32
    %v1409 = vpop.permute.xlu0 %1408
    %v1410 = vsel %vm299, %v1409, 0
    %1412 = vmatprep.subr.mxu0 0.0
    %1413 = vmatpush1.msra.mxu0 %v213
    %1414 = vmatprep.subr.mxu0 0.0
    %1415 = vmatpush1.msra.mxu0 %v214
    %1416 = vmatprep.subr.mxu0 0.0
    %1417 = vmatpush1.msra.mxu0 %v215
    %1418 = vmatprep.subr.mxu0 0.0
    %1419 = vmatpush1.msra.mxu0 %v216
    %1420 = vmatprep.subr.mxu0 0.0
    %1421 = vmatpush1.msra.mxu0 0.0
    %1422 = vmatprep.subr.mxu0 0.0
    %1423 = vmatpush1.msra.mxu0 0.0
    %1424 = vmatprep.subr.mxu0 0.0
    %1425 = vmatpush1.msra.mxu0 0.0
    %1426 = vmatprep.subr.mxu0 0.0
    %1427 = vmatpush1.msra.mxu0 0.0
    %1428 = vmatprep.subr.mxu0 0.0
    %1429 = vmatpush1.msra.mxu0 0.0
    %1430 = vmatprep.subr.mxu0 0.0
    %1431 = vmatpush1.msra.mxu0 0.0
    %1432 = vmatprep.subr.mxu0 0.0
    %1433 = vmatpush1.msra.mxu0 0.0
    %1434 = vmatprep.subr.mxu0 0.0
    %1435 = vmatpush1.msra.mxu0 0.0
    %1436 = vmatprep.subr.mxu0 0.0
    %1437 = vmatpush1.msra.mxu0 0.0
    %1438 = vmatprep.subr.mxu0 0.0
    %1439 = vmatpush1.msra.mxu0 0.0
    %1440 = vmatprep.subr.mxu0 0.0
    %1441 = vmatpush1.msra.mxu0 0.0
    %1442 = vmatprep.subr.mxu0 0.0
    %1443 = vmatpush1.msra.mxu0 0.0
    %1444 = vmatprep.subr.mxu0 0.0
    %1445 = vmatpush1.msra.mxu0 0.0
    %1446 = vmatprep.subr.mxu0 0.0
    %1447 = vmatpush1.msra.mxu0 0.0
    %1448 = vmatprep.subr.mxu0 0.0
    %1449 = vmatpush1.msra.mxu0 0.0
    %1450 = vmatprep.subr.mxu0 0.0
    %1451 = vmatpush1.msra.mxu0 0.0
    %1452 = vmatprep.subr.mxu0 0.0
    %1453 = vmatpush1.msra.mxu0 0.0
    %1454 = vmatprep.subr.mxu0 0.0
    %1455 = vmatpush1.msra.mxu0 0.0
    %1456 = vmatprep.subr.mxu0 0.0
    %1457 = vmatpush1.msra.mxu0 0.0
    %1458 = vmatprep.subr.mxu0 0.0
    %1459 = vmatpush1.msra.mxu0 0.0
    %1460 = vmatprep.subr.mxu0 0.0
    %1461 = vmatpush1.msra.mxu0 0.0
    %1462 = vmatprep.subr.mxu0 0.0
    %1463 = vmatpush1.msra.mxu0 0.0
    %1464 = vmatprep.subr.mxu0 0.0
    %1465 = vmatpush1.msra.mxu0 0.0
    %1466 = vmatprep.subr.mxu0 0.0
    %1467 = vmatpush1.msra.mxu0 0.0
    %1468 = vmatprep.subr.mxu0 0.0
    %1469 = vmatpush1.msra.mxu0 0.0
    %1470 = vmatprep.subr.mxu0 0.0
    %1471 = vmatpush1.msra.mxu0 0.0
    %1472 = vmatprep.subr.mxu0 0.0
    %1473 = vmatpush1.msra.mxu0 0.0
    %1474 = vmatprep.subr.mxu0 0.0
    %1475 = vmatpush1.msra.mxu0 0.0
    %1476 = vmatprep.mubr.f32.mxu0 0.0
    %1477 = vmatmul.mubr.f32.gmra.mrb[0].mxu0 %v1410
    %v1478 = vpop.f32.mrb[0].mxu0
    %v1479 = vadd.f32 0.0, %v1478
    %v1480 = vpop.f32.mrb[0].mxu0
    %1481 = vdwg.mxu0
    %v1482 = vadd.f32 %v465, %v1479
    %1483 = vrot.lane.b32.xlu0 %v1394, 32
    %v1484 = vpop.permute.xlu0 %1483
    %v1485 = vsel %vm299, %v1484, 0
    %1487 = vmatprep.subr.mxu0 0.0
    %1488 = vmatpush1.msra.mxu0 %v222
    %1489 = vmatprep.subr.mxu0 0.0
    %1490 = vmatpush1.msra.mxu0 %v223
    %1491 = vmatprep.subr.mxu0 0.0
    %1492 = vmatpush1.msra.mxu0 %v224
    %1493 = vmatprep.subr.mxu0 0.0
    %1494 = vmatpush1.msra.mxu0 %v225
    %1495 = vmatprep.subr.mxu0 0.0
    %1496 = vmatpush1.msra.mxu0 0.0
    %1497 = vmatprep.subr.mxu0 0.0
    %1498 = vmatpush1.msra.mxu0 0.0
    %1499 = vmatprep.subr.mxu0 0.0
    %1500 = vmatpush1.msra.mxu0 0.0
    %1501 = vmatprep.subr.mxu0 0.0
    %1502 = vmatpush1.msra.mxu0 0.0
    %1503 = vmatprep.subr.mxu0 0.0
    %1504 = vmatpush1.msra.mxu0 0.0
    %1505 = vmatprep.subr.mxu0 0.0
    %1506 = vmatpush1.msra.mxu0 0.0
    %1507 = vmatprep.subr.mxu0 0.0
    %1508 = vmatpush1.msra.mxu0 0.0
    %1509 = vmatprep.subr.mxu0 0.0
    %1510 = vmatpush1.msra.mxu0 0.0
    %1511 = vmatprep.subr.mxu0 0.0
    %1512 = vmatpush1.msra.mxu0 0.0
    %1513 = vmatprep.subr.mxu0 0.0
    %1514 = vmatpush1.msra.mxu0 0.0
    %1515 = vmatprep.subr.mxu0 0.0
    %1516 = vmatpush1.msra.mxu0 0.0
    %1517 = vmatprep.subr.mxu0 0.0
    %1518 = vmatpush1.msra.mxu0 0.0
    %1519 = vmatprep.subr.mxu0 0.0
    %1520 = vmatpush1.msra.mxu0 0.0
    %1521 = vmatprep.subr.mxu0 0.0
    %1522 = vmatpush1.msra.mxu0 0.0
    %1523 = vmatprep.subr.mxu0 0.0
    %1524 = vmatpush1.msra.mxu0 0.0
    %1525 = vmatprep.subr.mxu0 0.0
    %1526 = vmatpush1.msra.mxu0 0.0
    %1527 = vmatprep.subr.mxu0 0.0
    %1528 = vmatpush1.msra.mxu0 0.0
    %1529 = vmatprep.subr.mxu0 0.0
    %1530 = vmatpush1.msra.mxu0 0.0
    %1531 = vmatprep.subr.mxu0 0.0
    %1532 = vmatpush1.msra.mxu0 0.0
    %1533 = vmatprep.subr.mxu0 0.0
    %1534 = vmatpush1.msra.mxu0 0.0
    %1535 = vmatprep.subr.mxu0 0.0
    %1536 = vmatpush1.msra.mxu0 0.0
    %1537 = vmatprep.subr.mxu0 0.0
    %1538 = vmatpush1.msra.mxu0 0.0
    %1539 = vmatprep.subr.mxu0 0.0
    %1540 = vmatpush1.msra.mxu0 0.0
    %1541 = vmatprep.subr.mxu0 0.0
    %1542 = vmatpush1.msra.mxu0 0.0
    %1543 = vmatprep.subr.mxu0 0.0
    %1544 = vmatpush1.msra.mxu0 0.0
    %1545 = vmatprep.subr.mxu0 0.0
    %1546 = vmatpush1.msra.mxu0 0.0
    %1547 = vmatprep.subr.mxu0 0.0
    %1548 = vmatpush1.msra.mxu0 0.0
    %1549 = vmatprep.subr.mxu0 0.0
    %1550 = vmatpush1.msra.mxu0 0.0
    %1551 = vmatprep.mubr.f32.mxu0 0.0
    %1552 = vmatmul.mubr.f32.gmra.mrb[0].mxu0 %v1485
    %v1553 = vpop.f32.mrb[0].mxu0
    %v1554 = vadd.f32 0.0, %v1553
    %v1555 = vpop.f32.mrb[0].mxu0
    %1556 = vdwg.mxu0
    %v1558 = vrot.slane %v1554, 2
    %v1560 = vadd.f32 %v541, %v1558
    %v1561 = vmul.f32 %v1482, 0.5
    %v1562 = vtanh.pop %v1561
    %v1563 = vmul.f32 %v1562, 0.5
    %v1564 = vadd.f32 %v1563, 0.5
    %v1565 = vmul.f32 %v1560, 0.5
    %v1566 = vtanh.pop %v1565
    %v1567 = vmul.f32 %v1566, 0.5
    %v1568 = vadd.f32 %v1567, 0.5
    %v1569 = vtanh.pop %v1482
    %v1570 = vtanh.pop %v1560
    %v1572 = vrot.slane %v1368, 6
    %v1574 = vmul.f32 %v1564, %v1572
    %1576 = vrot.lane.b32.xlu0 %v1569, 64
    %v1577 = vpop.permute.xlu0 %1576
    %v1579 = vmul.f32 %v1564, %v1577
    %1581 = vrot.lane.b32.xlu0 %v1579, 32
    %v1582 = vpop.permute.xlu0 %1581
    %v1584 = vadd.f32 %v1574, %v1582
    %v1586 = vrot.slane %v1382, 2
    %v1588 = vmul.f32 %v1568, %v1586
    %1590 = vrot.lane.b32.xlu0 %v1570, 64
    %v1591 = vpop.permute.xlu0 %1590
    %v1593 = vmul.f32 %v1568, %v1591
    %1595 = vrot.lane.b32.xlu0 %v1593, 32
    %v1596 = vpop.permute.xlu0 %1595
    %v1598 = vadd.f32 %v1588, %v1596
    %v1599 = vtanh.pop %v1584
    %1601 = vrot.lane.b32.xlu0 %v1599, 64
    %v1602 = vpop.permute.xlu0 %1601
    %v1604 = vmul.f32 %v1564, %v1602
    %v1605 = vtanh.pop %v1598
    %1607 = vrot.lane.b32.xlu0 %v1605, 64
    %v1608 = vpop.permute.xlu0 %1607
    %v1610 = vmul.f32 %v1568, %v1608
    %1612 = vrot.lane.b32.xlu0 %v1604, 32
    %v1613 = vpop.permute.xlu0 %1612
    %1615 = vst.msk [vmem:[#allocation2 + $0x8] sm:$0x3] %vm745, %v1613
    %1617 = vrot.lane.b32.xlu0 %v1610, 64
    %v1618 = vpop.permute.xlu0 %1617
    %1620 = vst.msk [vmem:[#allocation2] sm:$0xc0] %vm751, %v1618
    %v1621 = vsel %vm299, %v1613, 0
    %1623 = vmatprep.subr.mxu0 0.0
    %1624 = vmatpush1.msra.mxu0 %v213
    %1625 = vmatprep.subr.mxu0 0.0
    %1626 = vmatpush1.msra.mxu0 %v214
    %1627 = vmatprep.subr.mxu0 0.0
    %1628 = vmatpush1.msra.mxu0 %v215
    %1629 = vmatprep.subr.mxu0 0.0
    %1630 = vmatpush1.msra.mxu0 %v216
    %1631 = vmatprep.subr.mxu0 0.0
    %1632 = vmatpush1.msra.mxu0 0.0
    %1633 = vmatprep.subr.mxu0 0.0
    %1634 = vmatpush1.msra.mxu0 0.0
    %1635 = vmatprep.subr.mxu0 0.0
    %1636 = vmatpush1.msra.mxu0 0.0
    %1637 = vmatprep.subr.mxu0 0.0
    %1638 = vmatpush1.msra.mxu0 0.0
    %1639 = vmatprep.subr.mxu0 0.0
    %1640 = vmatpush1.msra.mxu0 0.0
    %1641 = vmatprep.subr.mxu0 0.0
    %1642 = vmatpush1.msra.mxu0 0.0
    %1643 = vmatprep.subr.mxu0 0.0
    %1644 = vmatpush1.msra.mxu0 0.0
    %1645 = vmatprep.subr.mxu0 0.0
    %1646 = vmatpush1.msra.mxu0 0.0
    %1647 = vmatprep.subr.mxu0 0.0
    %1648 = vmatpush1.msra.mxu0 0.0
    %1649 = vmatprep.subr.mxu0 0.0
    %1650 = vmatpush1.msra.mxu0 0.0
    %1651 = vmatprep.subr.mxu0 0.0
    %1652 = vmatpush1.msra.mxu0 0.0
    %1653 = vmatprep.subr.mxu0 0.0
    %1654 = vmatpush1.msra.mxu0 0.0
    %1655 = vmatprep.subr.mxu0 0.0
    %1656 = vmatpush1.msra.mxu0 0.0
    %1657 = vmatprep.subr.mxu0 0.0
    %1658 = vmatpush1.msra.mxu0 0.0
    %1659 = vmatprep.subr.mxu0 0.0
    %1660 = vmatpush1.msra.mxu0 0.0
    %1661 = vmatprep.subr.mxu0 0.0
    %1662 = vmatpush1.msra.mxu0 0.0
    %1663 = vmatprep.subr.mxu0 0.0
    %1664 = vmatpush1.msra.mxu0 0.0
    %1665 = vmatprep.subr.mxu0 0.0
    %1666 = vmatpush1.msra.mxu0 0.0
    %1667 = vmatprep.subr.mxu0 0.0
    %1668 = vmatpush1.msra.mxu0 0.0
    %1669 = vmatprep.subr.mxu0 0.0
    %1670 = vmatpush1.msra.mxu0 0.0
    %1671 = vmatprep.subr.mxu0 0.0
    %1672 = vmatpush1.msra.mxu0 0.0
    %1673 = vmatprep.subr.mxu0 0.0
    %1674 = vmatpush1.msra.mxu0 0.0
    %1675 = vmatprep.subr.mxu0 0.0
    %1676 = vmatpush1.msra.mxu0 0.0
    %1677 = vmatprep.subr.mxu0 0.0
    %1678 = vmatpush1.msra.mxu0 0.0
    %1679 = vmatprep.subr.mxu0 0.0
    %1680 = vmatpush1.msra.mxu0 0.0
    %1681 = vmatprep.subr.mxu0 0.0
    %1682 = vmatpush1.msra.mxu0 0.0
    %1683 = vmatprep.subr.mxu0 0.0
    %1684 = vmatpush1.msra.mxu0 0.0
    %1685 = vmatprep.subr.mxu0 0.0
    %1686 = vmatpush1.msra.mxu0 0.0
    %1687 = vmatprep.mubr.f32.mxu0 0.0
    %1688 = vmatmul.mubr.f32.gmra.mrb[0].mxu0 %v1621
    %v1689 = vpop.f32.mrb[0].mxu0
    %v1690 = vadd.f32 0.0, %v1689
    %v1691 = vpop.f32.mrb[0].mxu0
    %1692 = vdwg.mxu0
    %v1694 = vrot.slane %v1690, 6
    %v1696 = vadd.f32 %v465, %v1694
    %v1697 = vrot.slane %v1610, 6
    %1698 = vrot.lane.b32.xlu0 %v1697, 32
    %v1699 = vpop.permute.xlu0 %1698
    %v1700 = vsel %vm299, %v1699, 0
    %1702 = vmatprep.subr.mxu0 0.0
    %1703 = vmatpush1.msra.mxu0 %v222
    %1704 = vmatprep.subr.mxu0 0.0
    %1705 = vmatpush1.msra.mxu0 %v223
    %1706 = vmatprep.subr.mxu0 0.0
    %1707 = vmatpush1.msra.mxu0 %v224
    %1708 = vmatprep.subr.mxu0 0.0
    %1709 = vmatpush1.msra.mxu0 %v225
    %1710 = vmatprep.subr.mxu0 0.0
    %1711 = vmatpush1.msra.mxu0 0.0
    %1712 = vmatprep.subr.mxu0 0.0
    %1713 = vmatpush1.msra.mxu0 0.0
    %1714 = vmatprep.subr.mxu0 0.0
    %1715 = vmatpush1.msra.mxu0 0.0
    %1716 = vmatprep.subr.mxu0 0.0
    %1717 = vmatpush1.msra.mxu0 0.0
    %1718 = vmatprep.subr.mxu0 0.0
    %1719 = vmatpush1.msra.mxu0 0.0
    %1720 = vmatprep.subr.mxu0 0.0
    %1721 = vmatpush1.msra.mxu0 0.0
    %1722 = vmatprep.subr.mxu0 0.0
    %1723 = vmatpush1.msra.mxu0 0.0
    %1724 = vmatprep.subr.mxu0 0.0
    %1725 = vmatpush1.msra.mxu0 0.0
    %1726 = vmatprep.subr.mxu0 0.0
    %1727 = vmatpush1.msra.mxu0 0.0
    %1728 = vmatprep.subr.mxu0 0.0
    %1729 = vmatpush1.msra.mxu0 0.0
    %1730 = vmatprep.subr.mxu0 0.0
    %1731 = vmatpush1.msra.mxu0 0.0
    %1732 = vmatprep.subr.mxu0 0.0
    %1733 = vmatpush1.msra.mxu0 0.0
    %1734 = vmatprep.subr.mxu0 0.0
    %1735 = vmatpush1.msra.mxu0 0.0
    %1736 = vmatprep.subr.mxu0 0.0
    %1737 = vmatpush1.msra.mxu0 0.0
    %1738 = vmatprep.subr.mxu0 0.0
    %1739 = vmatpush1.msra.mxu0 0.0
    %1740 = vmatprep.subr.mxu0 0.0
    %1741 = vmatpush1.msra.mxu0 0.0
    %1742 = vmatprep.subr.mxu0 0.0
    %1743 = vmatpush1.msra.mxu0 0.0
    %1744 = vmatprep.subr.mxu0 0.0
    %1745 = vmatpush1.msra.mxu0 0.0
    %1746 = vmatprep.subr.mxu0 0.0
    %1747 = vmatpush1.msra.mxu0 0.0
    %1748 = vmatprep.subr.mxu0 0.0
    %1749 = vmatpush1.msra.mxu0 0.0
    %1750 = vmatprep.subr.mxu0 0.0
    %1751 = vmatpush1.msra.mxu0 0.0
    %1752 = vmatprep.subr.mxu0 0.0
    %1753 = vmatpush1.msra.mxu0 0.0
    %1754 = vmatprep.subr.mxu0 0.0
    %1755 = vmatpush1.msra.mxu0 0.0
    %1756 = vmatprep.subr.mxu0 0.0
    %1757 = vmatpush1.msra.mxu0 0.0
    %1758 = vmatprep.subr.mxu0 0.0
    %1759 = vmatpush1.msra.mxu0 0.0
    %1760 = vmatprep.subr.mxu0 0.0
    %1761 = vmatpush1.msra.mxu0 0.0
    %1762 = vmatprep.subr.mxu0 0.0
    %1763 = vmatpush1.msra.mxu0 0.0
    %1764 = vmatprep.subr.mxu0 0.0
    %1765 = vmatpush1.msra.mxu0 0.0
    %1766 = vmatprep.mubr.f32.mxu0 0.0
    %1767 = vmatmul.mubr.f32.gmra.mrb[0].mxu0 %v1700
    %v1768 = vpop.f32.mrb[0].mxu0
    %v1769 = vadd.f32 0.0, %v1768
    %v1770 = vpop.f32.mrb[0].mxu0
    %1771 = vdwg.mxu0
    %v1773 = vrot.slane %v1769, 4
    %v1775 = vadd.f32 %v541, %v1773
    %v1776 = vmul.f32 %v1696, 0.5
    %v1777 = vtanh.pop %v1776
    %v1778 = vmul.f32 %v1777, 0.5
    %v1779 = vadd.f32 %v1778, 0.5
    %v1780 = vmul.f32 %v1775, 0.5
    %v1781 = vtanh.pop %v1780
    %v1782 = vmul.f32 %v1781, 0.5
    %v1783 = vadd.f32 %v1782, 0.5
    %v1784 = vtanh.pop %v1696
    %v1785 = vtanh.pop %v1775
    %v1787 = vrot.slane %v1584, 6
    %v1789 = vmul.f32 %v1779, %v1787
    %1791 = vrot.lane.b32.xlu0 %v1784, 64
    %v1792 = vpop.permute.xlu0 %1791
    %v1794 = vmul.f32 %v1779, %v1792
    %1796 = vrot.lane.b32.xlu0 %v1794, 32
    %v1797 = vpop.permute.xlu0 %1796
    %v1799 = vadd.f32 %v1789, %v1797
    %v1801 = vrot.slane %v1598, 2
    %v1803 = vmul.f32 %v1783, %v1801
    %1805 = vrot.lane.b32.xlu0 %v1785, 64
    %v1806 = vpop.permute.xlu0 %1805
    %v1808 = vmul.f32 %v1783, %v1806
    %1810 = vrot.lane.b32.xlu0 %v1808, 32
    %v1811 = vpop.permute.xlu0 %1810
    %v1813 = vadd.f32 %v1803, %v1811
    %v1814 = vtanh.pop %v1799
    %1816 = vrot.lane.b32.xlu0 %v1814, 64
    %v1817 = vpop.permute.xlu0 %1816
    %v1819 = vmul.f32 %v1779, %v1817
    %v1820 = vtanh.pop %v1813
    %1822 = vrot.lane.b32.xlu0 %v1820, 64
    %v1823 = vpop.permute.xlu0 %1822
    %v1825 = vmul.f32 %v1783, %v1823
    %1827 = vrot.lane.b32.xlu0 %v1819, 32
    %v1828 = vpop.permute.xlu0 %1827
    %1830 = vst.msk [vmem:[#allocation2 + $0x8] sm:$0xc] %vm962, %v1828
    %1832 = vrot.lane.b32.xlu0 %v1825, 64
    %v1833 = vpop.permute.xlu0 %1832
    %1835 = vst.msk [vmem:[#allocation2] sm:$0x30] %vm968, %v1833
    %v1836 = vrot.slane %v1819, 2
    %1837 = vrot.lane.b32.xlu0 %v1836, 32
    %v1838 = vpop.permute.xlu0 %1837
    %v1839 = vsel %vm299, %v1838, 0
    %1841 = vmatprep.subr.mxu0 0.0
    %1842 = vmatpush1.msra.mxu0 %v213
    %1843 = vmatprep.subr.mxu0 0.0
    %1844 = vmatpush1.msra.mxu0 %v214
    %1845 = vmatprep.subr.mxu0 0.0
    %1846 = vmatpush1.msra.mxu0 %v215
    %1847 = vmatprep.subr.mxu0 0.0
    %1848 = vmatpush1.msra.mxu0 %v216
    %1849 = vmatprep.subr.mxu0 0.0
    %1850 = vmatpush1.msra.mxu0 0.0
    %1851 = vmatprep.subr.mxu0 0.0
    %1852 = vmatpush1.msra.mxu0 0.0
    %1853 = vmatprep.subr.mxu0 0.0
    %1854 = vmatpush1.msra.mxu0 0.0
    %1855 = vmatprep.subr.mxu0 0.0
    %1856 = vmatpush1.msra.mxu0 0.0
    %1857 = vmatprep.subr.mxu0 0.0
    %1858 = vmatpush1.msra.mxu0 0.0
    %1859 = vmatprep.subr.mxu0 0.0
    %1860 = vmatpush1.msra.mxu0 0.0
    %1861 = vmatprep.subr.mxu0 0.0
    %1862 = vmatpush1.msra.mxu0 0.0
    %1863 = vmatprep.subr.mxu0 0.0
    %1864 = vmatpush1.msra.mxu0 0.0
    %1865 = vmatprep.subr.mxu0 0.0
    %1866 = vmatpush1.msra.mxu0 0.0
    %1867 = vmatprep.subr.mxu0 0.0
    %1868 = vmatpush1.msra.mxu0 0.0
    %1869 = vmatprep.subr.mxu0 0.0
    %1870 = vmatpush1.msra.mxu0 0.0
    %1871 = vmatprep.subr.mxu0 0.0
    %1872 = vmatpush1.msra.mxu0 0.0
    %1873 = vmatprep.subr.mxu0 0.0
    %1874 = vmatpush1.msra.mxu0 0.0
    %1875 = vmatprep.subr.mxu0 0.0
    %1876 = vmatpush1.msra.mxu0 0.0
    %1877 = vmatprep.subr.mxu0 0.0
    %1878 = vmatpush1.msra.mxu0 0.0
    %1879 = vmatprep.subr.mxu0 0.0
    %1880 = vmatpush1.msra.mxu0 0.0
    %1881 = vmatprep.subr.mxu0 0.0
    %1882 = vmatpush1.msra.mxu0 0.0
    %1883 = vmatprep.subr.mxu0 0.0
    %1884 = vmatpush1.msra.mxu0 0.0
    %1885 = vmatprep.subr.mxu0 0.0
    %1886 = vmatpush1.msra.mxu0 0.0
    %1887 = vmatprep.subr.mxu0 0.0
    %1888 = vmatpush1.msra.mxu0 0.0
    %1889 = vmatprep.subr.mxu0 0.0
    %1890 = vmatpush1.msra.mxu0 0.0
    %1891 = vmatprep.subr.mxu0 0.0
    %1892 = vmatpush1.msra.mxu0 0.0
    %1893 = vmatprep.subr.mxu0 0.0
    %1894 = vmatpush1.msra.mxu0 0.0
    %1895 = vmatprep.subr.mxu0 0.0
    %1896 = vmatpush1.msra.mxu0 0.0
    %1897 = vmatprep.subr.mxu0 0.0
    %1898 = vmatpush1.msra.mxu0 0.0
    %1899 = vmatprep.subr.mxu0 0.0
    %1900 = vmatpush1.msra.mxu0 0.0
    %1901 = vmatprep.subr.mxu0 0.0
    %1902 = vmatpush1.msra.mxu0 0.0
    %1903 = vmatprep.subr.mxu0 0.0
    %1904 = vmatpush1.msra.mxu0 0.0
    %1905 = vmatprep.mubr.f32.mxu0 0.0
    %1906 = vmatmul.mubr.f32.gmra.mrb[0].mxu0 %v1839
    %v1907 = vpop.f32.mrb[0].mxu0
    %v1908 = vadd.f32 0.0, %v1907
    %v1909 = vpop.f32.mrb[0].mxu0
    %1910 = vdwg.mxu0
    %v1912 = vrot.slane %v1908, 4
    %v1914 = vadd.f32 %v465, %v1912
    %v1915 = vrot.slane %v1825, 4
    %1916 = vrot.lane.b32.xlu0 %v1915, 32
    %v1917 = vpop.permute.xlu0 %1916
    %v1918 = vsel %vm299, %v1917, 0
    %1920 = vmatprep.subr.mxu0 0.0
    %1921 = vmatpush1.msra.mxu0 %v222
    %1922 = vmatprep.subr.mxu0 0.0
    %1923 = vmatpush1.msra.mxu0 %v223
    %1924 = vmatprep.subr.mxu0 0.0
    %1925 = vmatpush1.msra.mxu0 %v224
    %1926 = vmatprep.subr.mxu0 0.0
    %1927 = vmatpush1.msra.mxu0 %v225
    %1928 = vmatprep.subr.mxu0 0.0
    %1929 = vmatpush1.msra.mxu0 0.0
    %1930 = vmatprep.subr.mxu0 0.0
    %1931 = vmatpush1.msra.mxu0 0.0
    %1932 = vmatprep.subr.mxu0 0.0
    %1933 = vmatpush1.msra.mxu0 0.0
    %1934 = vmatprep.subr.mxu0 0.0
    %1935 = vmatpush1.msra.mxu0 0.0
    %1936 = vmatprep.subr.mxu0 0.0
    %1937 = vmatpush1.msra.mxu0 0.0
    %1938 = vmatprep.subr.mxu0 0.0
    %1939 = vmatpush1.msra.mxu0 0.0
    %1940 = vmatprep.subr.mxu0 0.0
    %1941 = vmatpush1.msra.mxu0 0.0
    %1942 = vmatprep.subr.mxu0 0.0
    %1943 = vmatpush1.msra.mxu0 0.0
    %1944 = vmatprep.subr.mxu0 0.0
    %1945 = vmatpush1.msra.mxu0 0.0
    %1946 = vmatprep.subr.mxu0 0.0
    %1947 = vmatpush1.msra.mxu0 0.0
    %1948 = vmatprep.subr.mxu0 0.0
    %1949 = vmatpush1.msra.mxu0 0.0
    %1950 = vmatprep.subr.mxu0 0.0
    %1951 = vmatpush1.msra.mxu0 0.0
    %1952 = vmatprep.subr.mxu0 0.0
    %1953 = vmatpush1.msra.mxu0 0.0
    %1954 = vmatprep.subr.mxu0 0.0
    %1955 = vmatpush1.msra.mxu0 0.0
    %1956 = vmatprep.subr.mxu0 0.0
    %1957 = vmatpush1.msra.mxu0 0.0
    %1958 = vmatprep.subr.mxu0 0.0
    %1959 = vmatpush1.msra.mxu0 0.0
    %1960 = vmatprep.subr.mxu0 0.0
    %1961 = vmatpush1.msra.mxu0 0.0
    %1962 = vmatprep.subr.mxu0 0.0
    %1963 = vmatpush1.msra.mxu0 0.0
    %1964 = vmatprep.subr.mxu0 0.0
    %1965 = vmatpush1.msra.mxu0 0.0
    %1966 = vmatprep.subr.mxu0 0.0
    %1967 = vmatpush1.msra.mxu0 0.0
    %1968 = vmatprep.subr.mxu0 0.0
    %1969 = vmatpush1.msra.mxu0 0.0
    %1970 = vmatprep.subr.mxu0 0.0
    %1971 = vmatpush1.msra.mxu0 0.0
    %1972 = vmatprep.subr.mxu0 0.0
    %1973 = vmatpush1.msra.mxu0 0.0
    %1974 = vmatprep.subr.mxu0 0.0
    %1975 = vmatpush1.msra.mxu0 0.0
    %1976 = vmatprep.subr.mxu0 0.0
    %1977 = vmatpush1.msra.mxu0 0.0
    %1978 = vmatprep.subr.mxu0 0.0
    %1979 = vmatpush1.msra.mxu0 0.0
    %1980 = vmatprep.subr.mxu0 0.0
    %1981 = vmatpush1.msra.mxu0 0.0
    %1982 = vmatprep.subr.mxu0 0.0
    %1983 = vmatpush1.msra.mxu0 0.0
    %1984 = vmatprep.mubr.f32.mxu0 0.0
    %1985 = vmatmul.mubr.f32.gmra.mrb[0].mxu0 %v1918
    %v1986 = vpop.f32.mrb[0].mxu0
    %v1987 = vadd.f32 0.0, %v1986
    %v1988 = vpop.f32.mrb[0].mxu0
    %1989 = vdwg.mxu0
    %v1991 = vrot.slane %v1987, 6
    %v1993 = vadd.f32 %v541, %v1991
    %v1994 = vmul.f32 %v1914, 0.5
    %v1995 = vtanh.pop %v1994
    %v1996 = vmul.f32 %v1995, 0.5
    %v1997 = vadd.f32 %v1996, 0.5
    %v1998 = vmul.f32 %v1993, 0.5
    %v1999 = vtanh.pop %v1998
    %v2000 = vmul.f32 %v1999, 0.5
    %v2001 = vadd.f32 %v2000, 0.5
    %v2002 = vtanh.pop %v1914
    %v2003 = vtanh.pop %v1993
    %v2005 = vrot.slane %v1799, 6
    %v2007 = vmul.f32 %v1997, %v2005
    %2009 = vrot.lane.b32.xlu0 %v2002, 64
    %v2010 = vpop.permute.xlu0 %2009
    %v2012 = vmul.f32 %v1997, %v2010
    %2014 = vrot.lane.b32.xlu0 %v2012, 32
    %v2015 = vpop.permute.xlu0 %2014
    %v2017 = vadd.f32 %v2007, %v2015
    %v2019 = vrot.slane %v1813, 2
    %v2021 = vmul.f32 %v2001, %v2019
    %2023 = vrot.lane.b32.xlu0 %v2003, 64
    %v2024 = vpop.permute.xlu0 %2023
    %v2026 = vmul.f32 %v2001, %v2024
    %2028 = vrot.lane.b32.xlu0 %v2026, 32
    %v2029 = vpop.permute.xlu0 %2028
    %v2031 = vadd.f32 %v2021, %v2029
    %v2032 = vtanh.pop %v2017
    %2034 = vrot.lane.b32.xlu0 %v2032, 64
    %v2035 = vpop.permute.xlu0 %2034
    %v2037 = vmul.f32 %v1997, %v2035
    %v2038 = vtanh.pop %v2031
    %2040 = vrot.lane.b32.xlu0 %v2038, 64
    %v2041 = vpop.permute.xlu0 %2040
    %v2043 = vmul.f32 %v2001, %v2041
    %2045 = vrot.lane.b32.xlu0 %v2037, 32
    %v2046 = vpop.permute.xlu0 %2045
    %2048 = vst.msk [vmem:[#allocation2 + $0x8] sm:$0x30] %vm1182, %v2046
    %2050 = vrot.lane.b32.xlu0 %v2043, 64
    %v2051 = vpop.permute.xlu0 %2050
    %2053 = vst.msk [vmem:[#allocation2] sm:$0xc] %vm1188, %v2051
    %v2054 = vrot.slane %v2037, 4
    %2055 = vrot.lane.b32.xlu0 %v2054, 32
    %v2056 = vpop.permute.xlu0 %2055
    %v2057 = vsel %vm299, %v2056, 0
    %2059 = vmatprep.subr.mxu0 0.0
    %2060 = vmatpush1.msra.mxu0 %v213
    %2061 = vmatprep.subr.mxu0 0.0
    %2062 = vmatpush1.msra.mxu0 %v214
    %2063 = vmatprep.subr.mxu0 0.0
    %2064 = vmatpush1.msra.mxu0 %v215
    %2065 = vmatprep.subr.mxu0 0.0
    %2066 = vmatpush1.msra.mxu0 %v216
    %2067 = vmatprep.subr.mxu0 0.0
    %2068 = vmatpush1.msra.mxu0 0.0
    %2069 = vmatprep.subr.mxu0 0.0
    %2070 = vmatpush1.msra.mxu0 0.0
    %2071 = vmatprep.subr.mxu0 0.0
    %2072 = vmatpush1.msra.mxu0 0.0
    %2073 = vmatprep.subr.mxu0 0.0
    %2074 = vmatpush1.msra.mxu0 0.0
    %2075 = vmatprep.subr.mxu0 0.0
    %2076 = vmatpush1.msra.mxu0 0.0
    %2077 = vmatprep.subr.mxu0 0.0
    %2078 = vmatpush1.msra.mxu0 0.0
    %2079 = vmatprep.subr.mxu0 0.0
    %2080 = vmatpush1.msra.mxu0 0.0
    %2081 = vmatprep.subr.mxu0 0.0
    %2082 = vmatpush1.msra.mxu0 0.0
    %2083 = vmatprep.subr.mxu0 0.0
    %2084 = vmatpush1.msra.mxu0 0.0
    %2085 = vmatprep.subr.mxu0 0.0
    %2086 = vmatpush1.msra.mxu0 0.0
    %2087 = vmatprep.subr.mxu0 0.0
    %2088 = vmatpush1.msra.mxu0 0.0
    %2089 = vmatprep.subr.mxu0 0.0
    %2090 = vmatpush1.msra.mxu0 0.0
    %2091 = vmatprep.subr.mxu0 0.0
    %2092 = vmatpush1.msra.mxu0 0.0
    %2093 = vmatprep.subr.mxu0 0.0
    %2094 = vmatpush1.msra.mxu0 0.0
    %2095 = vmatprep.subr.mxu0 0.0
    %2096 = vmatpush1.msra.mxu0 0.0
    %2097 = vmatprep.subr.mxu0 0.0
    %2098 = vmatpush1.msra.mxu0 0.0
    %2099 = vmatprep.subr.mxu0 0.0
    %2100 = vmatpush1.msra.mxu0 0.0
    %2101 = vmatprep.subr.mxu0 0.0
    %2102 = vmatpush1.msra.mxu0 0.0
    %2103 = vmatprep.subr.mxu0 0.0
    %2104 = vmatpush1.msra.mxu0 0.0
    %2105 = vmatprep.subr.mxu0 0.0
    %2106 = vmatpush1.msra.mxu0 0.0
    %2107 = vmatprep.subr.mxu0 0.0
    %2108 = vmatpush1.msra.mxu0 0.0
    %2109 = vmatprep.subr.mxu0 0.0
    %2110 = vmatpush1.msra.mxu0 0.0
    %2111 = vmatprep.subr.mxu0 0.0
    %2112 = vmatpush1.msra.mxu0 0.0
    %2113 = vmatprep.subr.mxu0 0.0
    %2114 = vmatpush1.msra.mxu0 0.0
    %2115 = vmatprep.subr.mxu0 0.0
    %2116 = vmatpush1.msra.mxu0 0.0
    %2117 = vmatprep.subr.mxu0 0.0
    %2118 = vmatpush1.msra.mxu0 0.0
    %2119 = vmatprep.subr.mxu0 0.0
    %2120 = vmatpush1.msra.mxu0 0.0
    %2121 = vmatprep.subr.mxu0 0.0
    %2122 = vmatpush1.msra.mxu0 0.0
    %2123 = vmatprep.mubr.f32.mxu0 0.0
    %2124 = vmatmul.mubr.f32.gmra.mrb[0].mxu0 %v2057
    %v2125 = vpop.f32.mrb[0].mxu0
    %v2126 = vadd.f32 0.0, %v2125
    %v2127 = vpop.f32.mrb[0].mxu0
    %2128 = vdwg.mxu0
    %v2130 = vrot.slane %v2126, 2
    %v2132 = vadd.f32 %v465, %v2130
    %v2133 = vrot.slane %v2043, 2
    %2134 = vrot.lane.b32.xlu0 %v2133, 32
    %v2135 = vpop.permute.xlu0 %2134
    %v2136 = vsel %vm299, %v2135, 0
    %2138 = vmatprep.subr.mxu0 0.0
    %2139 = vmatpush1.msra.mxu0 %v222
    %2140 = vmatprep.subr.mxu0 0.0
    %2141 = vmatpush1.msra.mxu0 %v223
    %2142 = vmatprep.subr.mxu0 0.0
    %2143 = vmatpush1.msra.mxu0 %v224
    %2144 = vmatprep.subr.mxu0 0.0
    %2145 = vmatpush1.msra.mxu0 %v225
    %2146 = vmatprep.subr.mxu0 0.0
    %2147 = vmatpush1.msra.mxu0 0.0
    %2148 = vmatprep.subr.mxu0 0.0
    %2149 = vmatpush1.msra.mxu0 0.0
    %2150 = vmatprep.subr.mxu0 0.0
    %2151 = vmatpush1.msra.mxu0 0.0
    %2152 = vmatprep.subr.mxu0 0.0
    %2153 = vmatpush1.msra.mxu0 0.0
    %2154 = vmatprep.subr.mxu0 0.0
    %2155 = vmatpush1.msra.mxu0 0.0
    %2156 = vmatprep.subr.mxu0 0.0
    %2157 = vmatpush1.msra.mxu0 0.0
    %2158 = vmatprep.subr.mxu0 0.0
    %2159 = vmatpush1.msra.mxu0 0.0
    %2160 = vmatprep.subr.mxu0 0.0
    %2161 = vmatpush1.msra.mxu0 0.0
    %2162 = vmatprep.subr.mxu0 0.0
    %2163 = vmatpush1.msra.mxu0 0.0
    %2164 = vmatprep.subr.mxu0 0.0
    %2165 = vmatpush1.msra.mxu0 0.0
    %2166 = vmatprep.subr.mxu0 0.0
    %2167 = vmatpush1.msra.mxu0 0.0
    %2168 = vmatprep.subr.mxu0 0.0
    %2169 = vmatpush1.msra.mxu0 0.0
    %2170 = vmatprep.subr.mxu0 0.0
    %2171 = vmatpush1.msra.mxu0 0.0
    %2172 = vmatprep.subr.mxu0 0.0
    %2173 = vmatpush1.msra.mxu0 0.0
    %2174 = vmatprep.subr.mxu0 0.0
    %2175 = vmatpush1.msra.mxu0 0.0
    %2176 = vmatprep.subr.mxu0 0.0
    %2177 = vmatpush1.msra.mxu0 0.0
    %2178 = vmatprep.subr.mxu0 0.0
    %2179 = vmatpush1.msra.mxu0 0.0
    %2180 = vmatprep.subr.mxu0 0.0
    %2181 = vmatpush1.msra.mxu0 0.0
    %2182 = vmatprep.subr.mxu0 0.0
    %2183 = vmatpush1.msra.mxu0 0.0
    %2184 = vmatprep.subr.mxu0 0.0
    %2185 = vmatpush1.msra.mxu0 0.0
    %2186 = vmatprep.subr.mxu0 0.0
    %2187 = vmatpush1.msra.mxu0 0.0
    %2188 = vmatprep.subr.mxu0 0.0
    %2189 = vmatpush1.msra.mxu0 0.0
    %2190 = vmatprep.subr.mxu0 0.0
    %2191 = vmatpush1.msra.mxu0 0.0
    %2192 = vmatprep.subr.mxu0 0.0
    %2193 = vmatpush1.msra.mxu0 0.0
    %2194 = vmatprep.subr.mxu0 0.0
    %2195 = vmatpush1.msra.mxu0 0.0
    %2196 = vmatprep.subr.mxu0 0.0
    %2197 = vmatpush1.msra.mxu0 0.0
    %2198 = vmatprep.subr.mxu0 0.0
    %2199 = vmatpush1.msra.mxu0 0.0
    %2200 = vmatprep.subr.mxu0 0.0
    %2201 = vmatpush1.msra.mxu0 0.0
    %2202 = vmatprep.mubr.f32.mxu0 0.0
    %2203 = vmatmul.mubr.f32.gmra.mrb[0].mxu0 %v2136
    %v2204 = vpop.f32.mrb[0].mxu0
    %v2205 = vadd.f32 0.0, %v2204
    %v2206 = vpop.f32.mrb[0].mxu0
    %2207 = vdwg.mxu0
    %v2208 = vadd.f32 %v541, %v2205
    %v2209 = vmul.f32 %v2132, 0.5
    %v2210 = vtanh.pop %v2209
    %v2211 = vmul.f32 %v2210, 0.5
    %v2212 = vadd.f32 %v2211, 0.5
    %v2213 = vmul.f32 %v2208, 0.5
    %v2214 = vtanh.pop %v2213
    %v2215 = vmul.f32 %v2214, 0.5
    %v2216 = vadd.f32 %v2215, 0.5
    %v2217 = vtanh.pop %v2132
    %v2218 = vtanh.pop %v2208
    %v2220 = vrot.slane %v2017, 6
    %v2222 = vmul.f32 %v2212, %v2220
    %2224 = vrot.lane.b32.xlu0 %v2217, 64
    %v2225 = vpop.permute.xlu0 %2224
    %v2227 = vmul.f32 %v2212, %v2225
    %2229 = vrot.lane.b32.xlu0 %v2227, 32
    %v2230 = vpop.permute.xlu0 %2229
    %v2232 = vadd.f32 %v2222, %v2230
    %v2234 = vrot.slane %v2031, 2
    %v2236 = vmul.f32 %v2216, %v2234
    %2238 = vrot.lane.b32.xlu0 %v2218, 64
    %v2239 = vpop.permute.xlu0 %2238
    %v2241 = vmul.f32 %v2216, %v2239
    %2243 = vrot.lane.b32.xlu0 %v2241, 32
    %v2244 = vpop.permute.xlu0 %2243
    %v2246 = vadd.f32 %v2236, %v2244
    %v2247 = vtanh.pop %v2232
    %2249 = vrot.lane.b32.xlu0 %v2247, 64
    %v2250 = vpop.permute.xlu0 %2249
    %v2252 = vmul.f32 %v2212, %v2250
    %v2253 = vtanh.pop %v2246
    %2255 = vrot.lane.b32.xlu0 %v2253, 64
    %v2256 = vpop.permute.xlu0 %2255
    %v2258 = vmul.f32 %v2216, %v2256
    %2260 = vrot.lane.b32.xlu0 %v2252, 32
    %v2261 = vpop.permute.xlu0 %2260
    %2263 = vst.msk [vmem:[#allocation2 + $0x8] sm:$0xc0] %vm1399, %v2261
    %2265 = vrot.lane.b32.xlu0 %v2258, 64
    %v2266 = vpop.permute.xlu0 %2265
    %2268 = vst.msk [vmem:[#allocation2] sm:$0x3] %vm1405, %v2266
    %v2269 = vld [vmem:[#allocation2] sm:$0xff]
    %v2270 = vld [vmem:[#allocation2 + $0x8] sm:$0xff]
    %v2272 = vlaneseq
    %v2273 = vshrl.u32 %v2272, 7
    %v2274 = vsub.s32 0, %v2273
    %v2275 = vrot.slane %v239, %v2274
    %vm2277 = vcmask 523264
    %v2279 = vsel %vm2277, %v2269, 0
    %v2282 = vsel %vm2277, %v2270, 0
    %2284 = vmatprep.subr.mxu0 0.0
    %2285 = vmatpush1.msra.mxu0 %v227
    %2286 = vmatprep.subr.mxu0 0.0
    %2287 = vmatpush1.msra.mxu0 %v228
    %2288 = vmatprep.subr.mxu0 0.0
    %2289 = vmatpush1.msra.mxu0 %v229
    %2290 = vmatprep.subr.mxu0 0.0
    %2291 = vmatpush1.msra.mxu0 %v230
    %2292 = vmatprep.subr.mxu0 0.0
    %2293 = vmatpush1.msra.mxu0 %v231
    %2294 = vmatprep.subr.mxu0 0.0
    %2295 = vmatpush1.msra.mxu0 %v232
    %2296 = vmatprep.subr.mxu0 0.0
    %2297 = vmatpush1.msra.mxu0 %v233
    %2298 = vmatprep.subr.mxu0 0.0
    %2299 = vmatpush1.msra.mxu0 %v234
    %2300 = vmatprep.subr.mxu0 0.0
    %2301 = vmatpush1.msra.mxu0 0.0
    %2302 = vmatprep.subr.mxu0 0.0
    %2303 = vmatpush1.msra.mxu0 0.0
    %2304 = vmatprep.subr.mxu0 0.0
    %2305 = vmatpush1.msra.mxu0 0.0
    %2306 = vmatprep.subr.mxu0 0.0
    %2307 = vmatpush1.msra.mxu0 0.0
    %2308 = vmatprep.subr.mxu0 0.0
    %2309 = vmatpush1.msra.mxu0 0.0
    %2310 = vmatprep.subr.mxu0 0.0
    %2311 = vmatpush1.msra.mxu0 0.0
    %2312 = vmatprep.subr.mxu0 0.0
    %2313 = vmatpush1.msra.mxu0 0.0
    %2314 = vmatprep.subr.mxu0 0.0
    %2315 = vmatpush1.msra.mxu0 0.0
    %2316 = vmatprep.subr.mxu0 0.0
    %2317 = vmatpush1.msra.mxu0 0.0
    %2318 = vmatprep.subr.mxu0 0.0
    %2319 = vmatpush1.msra.mxu0 0.0
    %2320 = vmatprep.subr.mxu0 0.0
    %2321 = vmatpush1.msra.mxu0 0.0
    %2322 = vmatprep.subr.mxu0 0.0
    %2323 = vmatpush1.msra.mxu0 0.0
    %2324 = vmatprep.subr.mxu0 0.0
    %2325 = vmatpush1.msra.mxu0 0.0
    %2326 = vmatprep.subr.mxu0 0.0
    %2327 = vmatpush1.msra.mxu0 0.0
    %2328 = vmatprep.subr.mxu0 0.0
    %2329 = vmatpush1.msra.mxu0 0.0
    %2330 = vmatprep.subr.mxu0 0.0
    %2331 = vmatpush1.msra.mxu0 0.0
    %2332 = vmatprep.subr.mxu0 0.0
    %2333 = vmatpush1.msra.mxu0 0.0
    %2334 = vmatprep.subr.mxu0 0.0
    %2335 = vmatpush1.msra.mxu0 0.0
    %2336 = vmatprep.subr.mxu0 0.0
    %2337 = vmatpush1.msra.mxu0 0.0
    %2338 = vmatprep.subr.mxu0 0.0
    %2339 = vmatpush1.msra.mxu0 0.0
    %2340 = vmatprep.subr.mxu0 0.0
    %2341 = vmatpush1.msra.mxu0 0.0
    %2342 = vmatprep.subr.mxu0 0.0
    %2343 = vmatpush1.msra.mxu0 0.0
    %2344 = vmatprep.subr.mxu0 0.0
    %2345 = vmatpush1.msra.mxu0 0.0
    %2346 = vmatprep.subr.mxu0 0.0
    %2347 = vmatpush1.msra.mxu0 0.0
    %2348 = vmatprep.mubr.f32.mxu0 0.0
    %2349 = vmatmul.mubr.f32.gmra.mrb[0].mxu0 %v2279
    %v2350 = vpop.f32.mrb[0].mxu0
    %v2351 = vadd.f32 %v2275, %v2350
    %v2352 = vpop.f32.mrb[0].mxu0
    %2353 = vmatprep.mubr.f32.mxu0 0.0
    %2354 = vmatmul.mubr.f32.gmra.mrb[0].mxu0 %v2282
    %v2355 = vpop.f32.mrb[0].mxu0
    %v2356 = vadd.f32 %v2275, %v2355
    %v2357 = vpop.f32.mrb[0].mxu0
    %2358 = vdwg.mxu0
    %v2360 = vlaneseq
    %v2361 = vshrl.u32 %v2360, 7
    %v2362 = vsub.s32 0, %v2361
    %v2363 = vrot.slane %v252, %v2362
    %2365 = vmatprep.subr.mxu0 0.0
    %2366 = vmatpush1.msra.mxu0 %v240
    %2367 = vmatprep.subr.mxu0 0.0
    %2368 = vmatpush1.msra.mxu0 %v241
    %2369 = vmatprep.subr.mxu0 0.0
    %2370 = vmatpush1.msra.mxu0 %v242
    %2371 = vmatprep.subr.mxu0 0.0
    %2372 = vmatpush1.msra.mxu0 %v243
    %2373 = vmatprep.subr.mxu0 0.0
    %2374 = vmatpush1.msra.mxu0 %v244
    %2375 = vmatprep.subr.mxu0 0.0
    %2376 = vmatpush1.msra.mxu0 %v245
    %2377 = vmatprep.subr.mxu0 0.0
    %2378 = vmatpush1.msra.mxu0 %v246
    %2379 = vmatprep.subr.mxu0 0.0
    %2380 = vmatpush1.msra.mxu0 %v247
    %2381 = vmatprep.subr.mxu0 0.0
    %2382 = vmatpush1.msra.mxu0 0.0
    %2383 = vmatprep.subr.mxu0 0.0
    %2384 = vmatpush1.msra.mxu0 0.0
    %2385 = vmatprep.subr.mxu0 0.0
    %2386 = vmatpush1.msra.mxu0 0.0
    %2387 = vmatprep.subr.mxu0 0.0
    %2388 = vmatpush1.msra.mxu0 0.0
    %2389 = vmatprep.subr.mxu0 0.0
    %2390 = vmatpush1.msra.mxu0 0.0
    %2391 = vmatprep.subr.mxu0 0.0
    %2392 = vmatpush1.msra.mxu0 0.0
    %2393 = vmatprep.subr.mxu0 0.0
    %2394 = vmatpush1.msra.mxu0 0.0
    %2395 = vmatprep.subr.mxu0 0.0
    %2396 = vmatpush1.msra.mxu0 0.0
    %2397 = vmatprep.subr.mxu0 0.0
    %2398 = vmatpush1.msra.mxu0 0.0
    %2399 = vmatprep.subr.mxu0 0.0
    %2400 = vmatpush1.msra.mxu0 0.0
    %2401 = vmatprep.subr.mxu0 0.0
    %2402 = vmatpush1.msra.mxu0 0.0
    %2403 = vmatprep.subr.mxu0 0.0
    %2404 = vmatpush1.msra.mxu0 0.0
    %2405 = vmatprep.subr.mxu0 0.0
    %2406 = vmatpush1.msra.mxu0 0.0
    %2407 = vmatprep.subr.mxu0 0.0
    %2408 = vmatpush1.msra.mxu0 0.0
    %2409 = vmatprep.subr.mxu0 0.0
    %2410 = vmatpush1.msra.mxu0 0.0
    %2411 = vmatprep.subr.mxu0 0.0
    %2412 = vmatpush1.msra.mxu0 0.0
    %2413 = vmatprep.subr.mxu0 0.0
    %2414 = vmatpush1.msra.mxu0 0.0
    %2415 = vmatprep.subr.mxu0 0.0
    %2416 = vmatpush1.msra.mxu0 0.0
    %2417 = vmatprep.subr.mxu0 0.0
    %2418 = vmatpush1.msra.mxu0 0.0
    %2419 = vmatprep.subr.mxu0 0.0
    %2420 = vmatpush1.msra.mxu0 0.0
    %2421 = vmatprep.subr.mxu0 0.0
    %2422 = vmatpush1.msra.mxu0 0.0
    %2423 = vmatprep.subr.mxu0 0.0
    %2424 = vmatpush1.msra.mxu0 0.0
    %2425 = vmatprep.subr.mxu0 0.0
    %2426 = vmatpush1.msra.mxu0 0.0
    %2427 = vmatprep.subr.mxu0 0.0
    %2428 = vmatpush1.msra.mxu0 0.0
    %2429 = vmatprep.mubr.f32.mxu0 0.0
    %2430 = vmatmul.mubr.f32.gmra.mrb[0].mxu0 %v2279
    %v2431 = vpop.f32.mrb[0].mxu0
    %v2432 = vadd.f32 %v2363, %v2431
    %v2433 = vpop.f32.mrb[0].mxu0
    %2434 = vmatprep.mubr.f32.mxu0 0.0
    %2435 = vmatmul.mubr.f32.gmra.mrb[0].mxu0 %v2282
    %v2436 = vpop.f32.mrb[0].mxu0
    %v2437 = vadd.f32 %v2363, %v2436
    %v2438 = vpop.f32.mrb[0].mxu0
    %2439 = vdwg.mxu0
    %2440 = vmatprep.subr.mxu0 0.0
    %2441 = vmatpush1.msra.mxu0 %v235
    %2442 = vmatprep.subr.mxu0 0.0
    %2443 = vmatpush1.msra.mxu0 %v236
    %2444 = vmatprep.subr.mxu0 0.0
    %2445 = vmatpush1.msra.mxu0 %v237
    %2446 = vmatprep.subr.mxu0 0.0
    %2447 = vmatpush1.msra.mxu0 %v238
    %2448 = vmatprep.subr.mxu0 0.0
    %2449 = vmatpush1.msra.mxu0 0.0
    %2450 = vmatprep.subr.mxu0 0.0
    %2451 = vmatpush1.msra.mxu0 0.0
    %2452 = vmatprep.subr.mxu0 0.0
    %2453 = vmatpush1.msra.mxu0 0.0
    %2454 = vmatprep.subr.mxu0 0.0
    %2455 = vmatpush1.msra.mxu0 0.0
    %2456 = vmatprep.subr.mxu0 0.0
    %2457 = vmatpush1.msra.mxu0 0.0
    %2458 = vmatprep.subr.mxu0 0.0
    %2459 = vmatpush1.msra.mxu0 0.0
    %2460 = vmatprep.subr.mxu0 0.0
    %2461 = vmatpush1.msra.mxu0 0.0
    %2462 = vmatprep.subr.mxu0 0.0
    %2463 = vmatpush1.msra.mxu0 0.0
    %2464 = vmatprep.subr.mxu0 0.0
    %2465 = vmatpush1.msra.mxu0 0.0
    %2466 = vmatprep.subr.mxu0 0.0
    %2467 = vmatpush1.msra.mxu0 0.0
    %2468 = vmatprep.subr.mxu0 0.0
    %2469 = vmatpush1.msra.mxu0 0.0
    %2470 = vmatprep.subr.mxu0 0.0
    %2471 = vmatpush1.msra.mxu0 0.0
    %2472 = vmatprep.subr.mxu0 0.0
    %2473 = vmatpush1.msra.mxu0 0.0
    %2474 = vmatprep.subr.mxu0 0.0
    %2475 = vmatpush1.msra.mxu0 0.0
    %2476 = vmatprep.subr.mxu0 0.0
    %2477 = vmatpush1.msra.mxu0 0.0
    %2478 = vmatprep.subr.mxu0 0.0
    %2479 = vmatpush1.msra.mxu0 0.0
    %2480 = vmatprep.subr.mxu0 0.0
    %2481 = vmatpush1.msra.mxu0 0.0
    %2482 = vmatprep.subr.mxu0 0.0
    %2483 = vmatpush1.msra.mxu0 0.0
    %2484 = vmatprep.subr.mxu0 0.0
    %2485 = vmatpush1.msra.mxu0 0.0
    %2486 = vmatprep.subr.mxu0 0.0
    %2487 = vmatpush1.msra.mxu0 0.0
    %2488 = vmatprep.subr.mxu0 0.0
    %2489 = vmatpush1.msra.mxu0 0.0
    %2490 = vmatprep.subr.mxu0 0.0
    %2491 = vmatpush1.msra.mxu0 0.0
    %2492 = vmatprep.subr.mxu0 0.0
    %2493 = vmatpush1.msra.mxu0 0.0
    %2494 = vmatprep.subr.mxu0 0.0
    %2495 = vmatpush1.msra.mxu0 0.0
    %2496 = vmatprep.subr.mxu0 0.0
    %2497 = vmatpush1.msra.mxu0 0.0
    %2498 = vmatprep.subr.mxu0 0.0
    %2499 = vmatpush1.msra.mxu0 0.0
    %2500 = vmatprep.subr.mxu0 0.0
    %2501 = vmatpush1.msra.mxu0 0.0
    %2502 = vmatprep.subr.mxu0 0.0
    %2503 = vmatpush1.msra.mxu0 0.0
    %2504 = vmatprep.mubr.f32.mxu0 0.0
    %2505 = vmatmul.mubr.f32.gmra.mrb[0].mxu0 %v550
    %v2506 = vpop.f32.mrb[0].mxu0
    %v2507 = vadd.f32 0.0, %v2506
    %v2508 = vpop.f32.mrb[0].mxu0
    %2509 = vdwg.mxu0
    %v2510 = vadd.f32 %v2351, %v2507
    %2511 = vmatprep.subr.mxu0 0.0
    %2512 = vmatpush1.msra.mxu0 %v248
    %2513 = vmatprep.subr.mxu0 0.0
    %2514 = vmatpush1.msra.mxu0 %v249
    %2515 = vmatprep.subr.mxu0 0.0
    %2516 = vmatpush1.msra.mxu0 %v250
    %2517 = vmatprep.subr.mxu0 0.0
    %2518 = vmatpush1.msra.mxu0 %v251
    %2519 = vmatprep.subr.mxu0 0.0
    %2520 = vmatpush1.msra.mxu0 0.0
    %2521 = vmatprep.subr.mxu0 0.0
    %2522 = vmatpush1.msra.mxu0 0.0
    %2523 = vmatprep.subr.mxu0 0.0
    %2524 = vmatpush1.msra.mxu0 0.0
    %2525 = vmatprep.subr.mxu0 0.0
    %2526 = vmatpush1.msra.mxu0 0.0
    %2527 = vmatprep.subr.mxu0 0.0
    %2528 = vmatpush1.msra.mxu0 0.0
    %2529 = vmatprep.subr.mxu0 0.0
    %2530 = vmatpush1.msra.mxu0 0.0
    %2531 = vmatprep.subr.mxu0 0.0
    %2532 = vmatpush1.msra.mxu0 0.0
    %2533 = vmatprep.subr.mxu0 0.0
    %2534 = vmatpush1.msra.mxu0 0.0
    %2535 = vmatprep.subr.mxu0 0.0
    %2536 = vmatpush1.msra.mxu0 0.0
    %2537 = vmatprep.subr.mxu0 0.0
    %2538 = vmatpush1.msra.mxu0 0.0
    %2539 = vmatprep.subr.mxu0 0.0
    %2540 = vmatpush1.msra.mxu0 0.0
    %2541 = vmatprep.subr.mxu0 0.0
    %2542 = vmatpush1.msra.mxu0 0.0
    %2543 = vmatprep.subr.mxu0 0.0
    %2544 = vmatpush1.msra.mxu0 0.0
    %2545 = vmatprep.subr.mxu0 0.0
    %2546 = vmatpush1.msra.mxu0 0.0
    %2547 = vmatprep.subr.mxu0 0.0
    %2548 = vmatpush1.msra.mxu0 0.0
    %2549 = vmatprep.subr.mxu0 0.0
    %2550 = vmatpush1.msra.mxu0 0.0
    %2551 = vmatprep.subr.mxu0 0.0
    %2552 = vmatpush1.msra.mxu0 0.0
    %2553 = vmatprep.subr.mxu0 0.0
    %2554 = vmatpush1.msra.mxu0 0.0
    %2555 = vmatprep.subr.mxu0 0.0
    %2556 = vmatpush1.msra.mxu0 0.0
    %2557 = vmatprep.subr.mxu0 0.0
    %2558 = vmatpush1.msra.mxu0 0.0
    %2559 = vmatprep.subr.mxu0 0.0
    %2560 = vmatpush1.msra.mxu0 0.0
    %2561 = vmatprep.subr.mxu0 0.0
    %2562 = vmatpush1.msra.mxu0 0.0
    %2563 = vmatprep.subr.mxu0 0.0
    %2564 = vmatpush1.msra.mxu0 0.0
    %2565 = vmatprep.subr.mxu0 0.0
    %2566 = vmatpush1.msra.mxu0 0.0
    %2567 = vmatprep.subr.mxu0 0.0
    %2568 = vmatpush1.msra.mxu0 0.0
    %2569 = vmatprep.subr.mxu0 0.0
    %2570 = vmatpush1.msra.mxu0 0.0
    %2571 = vmatprep.subr.mxu0 0.0
    %2572 = vmatpush1.msra.mxu0 0.0
    %2573 = vmatprep.subr.mxu0 0.0
    %2574 = vmatpush1.msra.mxu0 0.0
    %2575 = vmatprep.mubr.f32.mxu0 0.0
    %2576 = vmatmul.mubr.f32.gmra.mrb[0].mxu0 %v550
    %v2577 = vpop.f32.mrb[0].mxu0
    %v2578 = vadd.f32 0.0, %v2577
    %v2579 = vpop.f32.mrb[0].mxu0
    %2580 = vdwg.mxu0
    %v2582 = vrot.slane %v2578, 2
    %v2584 = vadd.f32 %v2437, %v2582
    %v2585 = vmul.f32 %v2510, 0.5
    %v2586 = vtanh.pop %v2585
    %v2587 = vmul.f32 %v2586, 0.5
    %v2588 = vadd.f32 %v2587, 0.5
    %v2589 = vmul.f32 %v2584, 0.5
    %v2590 = vtanh.pop %v2589
    %v2591 = vmul.f32 %v2590, 0.5
    %v2592 = vadd.f32 %v2591, 0.5
    %v2593 = vtanh.pop %v2510
    %v2594 = vtanh.pop %v2584
    %v2595 = vmul.f32 %v2588, 0.0
    %2597 = vrot.lane.b32.xlu0 %v2593, 64
    %v2598 = vpop.permute.xlu0 %2597
    %v2600 = vmul.f32 %v2588, %v2598
    %2602 = vrot.lane.b32.xlu0 %v2600, 32
    %v2603 = vpop.permute.xlu0 %2602
    %v2605 = vadd.f32 %v2595, %v2603
    %v2606 = vmul.f32 %v2592, 0.0
    %2608 = vrot.lane.b32.xlu0 %v2594, 64
    %v2609 = vpop.permute.xlu0 %2608
    %v2611 = vmul.f32 %v2592, %v2609
    %2613 = vrot.lane.b32.xlu0 %v2611, 32
    %v2614 = vpop.permute.xlu0 %2613
    %v2616 = vadd.f32 %v2606, %v2614
    %v2617 = vtanh.pop %v2605
    %2619 = vrot.lane.b32.xlu0 %v2617, 64
    %v2620 = vpop.permute.xlu0 %2619
    %v2622 = vmul.f32 %v2588, %v2620
    %v2623 = vtanh.pop %v2616
    %2625 = vrot.lane.b32.xlu0 %v2623, 64
    %v2626 = vpop.permute.xlu0 %2625
    %v2628 = vmul.f32 %v2592, %v2626
    %v2629 = vadd.f32 %v2622, 0.0
    %v2631 = vrot.slane %v2628, 6
    %v2633 = vadd.f32 %v2629, %v2631
    %2635 = vrot.lane.b32.xlu0 %v2622, 32
    %v2636 = vpop.permute.xlu0 %2635
    %v2637 = vsel %vm299, %v2636, 0
    %2639 = vmatprep.subr.mxu0 0.0
    %2640 = vmatpush1.msra.mxu0 %v235
    %2641 = vmatprep.subr.mxu0 0.0
    %2642 = vmatpush1.msra.mxu0 %v236
    %2643 = vmatprep.subr.mxu0 0.0
    %2644 = vmatpush1.msra.mxu0 %v237
    %2645 = vmatprep.subr.mxu0 0.0
    %2646 = vmatpush1.msra.mxu0 %v238
    %2647 = vmatprep.subr.mxu0 0.0
    %2648 = vmatpush1.msra.mxu0 0.0
    %2649 = vmatprep.subr.mxu0 0.0
    %2650 = vmatpush1.msra.mxu0 0.0
    %2651 = vmatprep.subr.mxu0 0.0
    %2652 = vmatpush1.msra.mxu0 0.0
    %2653 = vmatprep.subr.mxu0 0.0
    %2654 = vmatpush1.msra.mxu0 0.0
    %2655 = vmatprep.subr.mxu0 0.0
    %2656 = vmatpush1.msra.mxu0 0.0
    %2657 = vmatprep.subr.mxu0 0.0
    %2658 = vmatpush1.msra.mxu0 0.0
    %2659 = vmatprep.subr.mxu0 0.0
    %2660 = vmatpush1.msra.mxu0 0.0
    %2661 = vmatprep.subr.mxu0 0.0
    %2662 = vmatpush1.msra.mxu0 0.0
    %2663 = vmatprep.subr.mxu0 0.0
    %2664 = vmatpush1.msra.mxu0 0.0
    %2665 = vmatprep.subr.mxu0 0.0
    %2666 = vmatpush1.msra.mxu0 0.0
    %2667 = vmatprep.subr.mxu0 0.0
    %2668 = vmatpush1.msra.mxu0 0.0
    %2669 = vmatprep.subr.mxu0 0.0
    %2670 = vmatpush1.msra.mxu0 0.0
    %2671 = vmatprep.subr.mxu0 0.0
    %2672 = vmatpush1.msra.mxu0 0.0
    %2673 = vmatprep.subr.mxu0 0.0
    %2674 = vmatpush1.msra.mxu0 0.0
    %2675 = vmatprep.subr.mxu0 0.0
    %2676 = vmatpush1.msra.mxu0 0.0
    %2677 = vmatprep.subr.mxu0 0.0
    %2678 = vmatpush1.msra.mxu0 0.0
    %2679 = vmatprep.subr.mxu0 0.0
    %2680 = vmatpush1.msra.mxu0 0.0
    %2681 = vmatprep.subr.mxu0 0.0
    %2682 = vmatpush1.msra.mxu0 0.0
    %2683 = vmatprep.subr.mxu0 0.0
    %2684 = vmatpush1.msra.mxu0 0.0
    %2685 = vmatprep.subr.mxu0 0.0
    %2686 = vmatpush1.msra.mxu0 0.0
    %2687 = vmatprep.subr.mxu0 0.0
    %2688 = vmatpush1.msra.mxu0 0.0
    %2689 = vmatprep.subr.mxu0 0.0
    %2690 = vmatpush1.msra.mxu0 0.0
    %2691 = vmatprep.subr.mxu0 0.0
    %2692 = vmatpush1.msra.mxu0 0.0
    %2693 = vmatprep.subr.mxu0 0.0
    %2694 = vmatpush1.msra.mxu0 0.0
    %2695 = vmatprep.subr.mxu0 0.0
    %2696 = vmatpush1.msra.mxu0 0.0
    %2697 = vmatprep.subr.mxu0 0.0
    %2698 = vmatpush1.msra.mxu0 0.0
    %2699 = vmatprep.subr.mxu0 0.0
    %2700 = vmatpush1.msra.mxu0 0.0
    %2701 = vmatprep.subr.mxu0 0.0
    %2702 = vmatpush1.msra.mxu0 0.0
    %2703 = vmatprep.mubr.f32.mxu0 0.0
    %2704 = vmatmul.mubr.f32.gmra.mrb[0].mxu0 %v2637
    %v2705 = vpop.f32.mrb[0].mxu0
    %v2706 = vadd.f32 0.0, %v2705
    %v2707 = vpop.f32.mrb[0].mxu0
    %2708 = vdwg.mxu0
    %v2710 = vrot.slane %v2706, 6
    %v2712 = vadd.f32 %v2351, %v2710
    %2713 = vrot.lane.b32.xlu0 %v2631, 32
    %v2714 = vpop.permute.xlu0 %2713
    %v2715 = vsel %vm299, %v2714, 0
    %2717 = vmatprep.subr.mxu0 0.0
    %2718 = vmatpush1.msra.mxu0 %v248
    %2719 = vmatprep.subr.mxu0 0.0
    %2720 = vmatpush1.msra.mxu0 %v249
    %2721 = vmatprep.subr.mxu0 0.0
    %2722 = vmatpush1.msra.mxu0 %v250
    %2723 = vmatprep.subr.mxu0 0.0
    %2724 = vmatpush1.msra.mxu0 %v251
    %2725 = vmatprep.subr.mxu0 0.0
    %2726 = vmatpush1.msra.mxu0 0.0
    %2727 = vmatprep.subr.mxu0 0.0
    %2728 = vmatpush1.msra.mxu0 0.0
    %2729 = vmatprep.subr.mxu0 0.0
    %2730 = vmatpush1.msra.mxu0 0.0
    %2731 = vmatprep.subr.mxu0 0.0
    %2732 = vmatpush1.msra.mxu0 0.0
    %2733 = vmatprep.subr.mxu0 0.0
    %2734 = vmatpush1.msra.mxu0 0.0
    %2735 = vmatprep.subr.mxu0 0.0
    %2736 = vmatpush1.msra.mxu0 0.0
    %2737 = vmatprep.subr.mxu0 0.0
    %2738 = vmatpush1.msra.mxu0 0.0
    %2739 = vmatprep.subr.mxu0 0.0
    %2740 = vmatpush1.msra.mxu0 0.0
    %2741 = vmatprep.subr.mxu0 0.0
    %2742 = vmatpush1.msra.mxu0 0.0
    %2743 = vmatprep.subr.mxu0 0.0
    %2744 = vmatpush1.msra.mxu0 0.0
    %2745 = vmatprep.subr.mxu0 0.0
    %2746 = vmatpush1.msra.mxu0 0.0
    %2747 = vmatprep.subr.mxu0 0.0
    %2748 = vmatpush1.msra.mxu0 0.0
    %2749 = vmatprep.subr.mxu0 0.0
    %2750 = vmatpush1.msra.mxu0 0.0
    %2751 = vmatprep.subr.mxu0 0.0
    %2752 = vmatpush1.msra.mxu0 0.0
    %2753 = vmatprep.subr.mxu0 0.0
    %2754 = vmatpush1.msra.mxu0 0.0
    %2755 = vmatprep.subr.mxu0 0.0
    %2756 = vmatpush1.msra.mxu0 0.0
    %2757 = vmatprep.subr.mxu0 0.0
    %2758 = vmatpush1.msra.mxu0 0.0
    %2759 = vmatprep.subr.mxu0 0.0
    %2760 = vmatpush1.msra.mxu0 0.0
    %2761 = vmatprep.subr.mxu0 0.0
    %2762 = vmatpush1.msra.mxu0 0.0
    %2763 = vmatprep.subr.mxu0 0.0
    %2764 = vmatpush1.msra.mxu0 0.0
    %2765 = vmatprep.subr.mxu0 0.0
    %2766 = vmatpush1.msra.mxu0 0.0
    %2767 = vmatprep.subr.mxu0 0.0
    %2768 = vmatpush1.msra.mxu0 0.0
    %2769 = vmatprep.subr.mxu0 0.0
    %2770 = vmatpush1.msra.mxu0 0.0
    %2771 = vmatprep.subr.mxu0 0.0
    %2772 = vmatpush1.msra.mxu0 0.0
    %2773 = vmatprep.subr.mxu0 0.0
    %2774 = vmatpush1.msra.mxu0 0.0
    %2775 = vmatprep.subr.mxu0 0.0
    %2776 = vmatpush1.msra.mxu0 0.0
    %2777 = vmatprep.subr.mxu0 0.0
    %2778 = vmatpush1.msra.mxu0 0.0
    %2779 = vmatprep.subr.mxu0 0.0
    %2780 = vmatpush1.msra.mxu0 0.0
    %2781 = vmatprep.mubr.f32.mxu0 0.0
    %2782 = vmatmul.mubr.f32.gmra.mrb[0].mxu0 %v2715
    %v2783 = vpop.f32.mrb[0].mxu0
    %v2784 = vadd.f32 0.0, %v2783
    %v2785 = vpop.f32.mrb[0].mxu0
    %2786 = vdwg.mxu0
    %v2788 = vrot.slane %v2784, 4
    %v2790 = vadd.f32 %v2437, %v2788
    %v2791 = vmul.f32 %v2712, 0.5
    %v2792 = vtanh.pop %v2791
    %v2793 = vmul.f32 %v2792, 0.5
    %v2794 = vadd.f32 %v2793, 0.5
    %v2795 = vmul.f32 %v2790, 0.5
    %v2796 = vtanh.pop %v2795
    %v2797 = vmul.f32 %v2796, 0.5
    %v2798 = vadd.f32 %v2797, 0.5
    %v2799 = vtanh.pop %v2712
    %v2800 = vtanh.pop %v2790
    %v2802 = vrot.slane %v2605, 6
    %v2804 = vmul.f32 %v2794, %v2802
    %2806 = vrot.lane.b32.xlu0 %v2799, 64
    %v2807 = vpop.permute.xlu0 %2806
    %v2809 = vmul.f32 %v2794, %v2807
    %2811 = vrot.lane.b32.xlu0 %v2809, 32
    %v2812 = vpop.permute.xlu0 %2811
    %v2814 = vadd.f32 %v2804, %v2812
    %v2816 = vrot.slane %v2616, 2
    %v2818 = vmul.f32 %v2798, %v2816
    %2820 = vrot.lane.b32.xlu0 %v2800, 64
    %v2821 = vpop.permute.xlu0 %2820
    %v2823 = vmul.f32 %v2798, %v2821
    %2825 = vrot.lane.b32.xlu0 %v2823, 32
    %v2826 = vpop.permute.xlu0 %2825
    %v2828 = vadd.f32 %v2818, %v2826
    %v2829 = vtanh.pop %v2814
    %2831 = vrot.lane.b32.xlu0 %v2829, 64
    %v2832 = vpop.permute.xlu0 %2831
    %v2834 = vmul.f32 %v2794, %v2832
    %v2835 = vtanh.pop %v2828
    %2837 = vrot.lane.b32.xlu0 %v2835, 64
    %v2838 = vpop.permute.xlu0 %2837
    %v2840 = vmul.f32 %v2798, %v2838
    %v2842 = vrot.slane %v2834, 2
    %v2844 = vadd.f32 %v2633, %v2842
    %v2846 = vrot.slane %v2840, 4
    %v2848 = vadd.f32 %v2844, %v2846
    %2849 = vrot.lane.b32.xlu0 %v2842, 32
    %v2850 = vpop.permute.xlu0 %2849
    %v2851 = vsel %vm299, %v2850, 0
    %2853 = vmatprep.subr.mxu0 0.0
    %2854 = vmatpush1.msra.mxu0 %v235
    %2855 = vmatprep.subr.mxu0 0.0
    %2856 = vmatpush1.msra.mxu0 %v236
    %2857 = vmatprep.subr.mxu0 0.0
    %2858 = vmatpush1.msra.mxu0 %v237
    %2859 = vmatprep.subr.mxu0 0.0
    %2860 = vmatpush1.msra.mxu0 %v238
    %2861 = vmatprep.subr.mxu0 0.0
    %2862 = vmatpush1.msra.mxu0 0.0
    %2863 = vmatprep.subr.mxu0 0.0
    %2864 = vmatpush1.msra.mxu0 0.0
    %2865 = vmatprep.subr.mxu0 0.0
    %2866 = vmatpush1.msra.mxu0 0.0
    %2867 = vmatprep.subr.mxu0 0.0
    %2868 = vmatpush1.msra.mxu0 0.0
    %2869 = vmatprep.subr.mxu0 0.0
    %2870 = vmatpush1.msra.mxu0 0.0
    %2871 = vmatprep.subr.mxu0 0.0
    %2872 = vmatpush1.msra.mxu0 0.0
    %2873 = vmatprep.subr.mxu0 0.0
    %2874 = vmatpush1.msra.mxu0 0.0
    %2875 = vmatprep.subr.mxu0 0.0
    %2876 = vmatpush1.msra.mxu0 0.0
    %2877 = vmatprep.subr.mxu0 0.0
    %2878 = vmatpush1.msra.mxu0 0.0
    %2879 = vmatprep.subr.mxu0 0.0
    %2880 = vmatpush1.msra.mxu0 0.0
    %2881 = vmatprep.subr.mxu0 0.0
    %2882 = vmatpush1.msra.mxu0 0.0
    %2883 = vmatprep.subr.mxu0 0.0
    %2884 = vmatpush1.msra.mxu0 0.0
    %2885 = vmatprep.subr.mxu0 0.0
    %2886 = vmatpush1.msra.mxu0 0.0
    %2887 = vmatprep.subr.mxu0 0.0
    %2888 = vmatpush1.msra.mxu0 0.0
    %2889 = vmatprep.subr.mxu0 0.0
    %2890 = vmatpush1.msra.mxu0 0.0
    %2891 = vmatprep.subr.mxu0 0.0
    %2892 = vmatpush1.msra.mxu0 0.0
    %2893 = vmatprep.subr.mxu0 0.0
    %2894 = vmatpush1.msra.mxu0 0.0
    %2895 = vmatprep.subr.mxu0 0.0
    %2896 = vmatpush1.msra.mxu0 0.0
    %2897 = vmatprep.subr.mxu0 0.0
    %2898 = vmatpush1.msra.mxu0 0.0
    %2899 = vmatprep.subr.mxu0 0.0
    %2900 = vmatpush1.msra.mxu0 0.0
    %2901 = vmatprep.subr.mxu0 0.0
    %2902 = vmatpush1.msra.mxu0 0.0
    %2903 = vmatprep.subr.mxu0 0.0
    %2904 = vmatpush1.msra.mxu0 0.0
    %2905 = vmatprep.subr.mxu0 0.0
    %2906 = vmatpush1.msra.mxu0 0.0
    %2907 = vmatprep.subr.mxu0 0.0
    %2908 = vmatpush1.msra.mxu0 0.0
    %2909 = vmatprep.subr.mxu0 0.0
    %2910 = vmatpush1.msra.mxu0 0.0
    %2911 = vmatprep.subr.mxu0 0.0
    %2912 = vmatpush1.msra.mxu0 0.0
    %2913 = vmatprep.subr.mxu0 0.0
    %2914 = vmatpush1.msra.mxu0 0.0
    %2915 = vmatprep.subr.mxu0 0.0
    %2916 = vmatpush1.msra.mxu0 0.0
    %2917 = vmatprep.mubr.f32.mxu0 0.0
    %2918 = vmatmul.mubr.f32.gmra.mrb[0].mxu0 %v2851
    %v2919 = vpop.f32.mrb[0].mxu0
    %v2920 = vadd.f32 0.0, %v2919
    %v2921 = vpop.f32.mrb[0].mxu0
    %2922 = vdwg.mxu0
    %v2924 = vrot.slane %v2920, 4
    %v2926 = vadd.f32 %v2351, %v2924
    %2927 = vrot.lane.b32.xlu0 %v2846, 32
    %v2928 = vpop.permute.xlu0 %2927
    %v2929 = vsel %vm299, %v2928, 0
    %2931 = vmatprep.subr.mxu0 0.0
    %2932 = vmatpush1.msra.mxu0 %v248
    %2933 = vmatprep.subr.mxu0 0.0
    %2934 = vmatpush1.msra.mxu0 %v249
    %2935 = vmatprep.subr.mxu0 0.0
    %2936 = vmatpush1.msra.mxu0 %v250
    %2937 = vmatprep.subr.mxu0 0.0
    %2938 = vmatpush1.msra.mxu0 %v251
    %2939 = vmatprep.subr.mxu0 0.0
    %2940 = vmatpush1.msra.mxu0 0.0
    %2941 = vmatprep.subr.mxu0 0.0
    %2942 = vmatpush1.msra.mxu0 0.0
    %2943 = vmatprep.subr.mxu0 0.0
    %2944 = vmatpush1.msra.mxu0 0.0
    %2945 = vmatprep.subr.mxu0 0.0
    %2946 = vmatpush1.msra.mxu0 0.0
    %2947 = vmatprep.subr.mxu0 0.0
    %2948 = vmatpush1.msra.mxu0 0.0
    %2949 = vmatprep.subr.mxu0 0.0
    %2950 = vmatpush1.msra.mxu0 0.0
    %2951 = vmatprep.subr.mxu0 0.0
    %2952 = vmatpush1.msra.mxu0 0.0
    %2953 = vmatprep.subr.mxu0 0.0
    %2954 = vmatpush1.msra.mxu0 0.0
    %2955 = vmatprep.subr.mxu0 0.0
    %2956 = vmatpush1.msra.mxu0 0.0
    %2957 = vmatprep.subr.mxu0 0.0
    %2958 = vmatpush1.msra.mxu0 0.0
    %2959 = vmatprep.subr.mxu0 0.0
    %2960 = vmatpush1.msra.mxu0 0.0
    %2961 = vmatprep.subr.mxu0 0.0
    %2962 = vmatpush1.msra.mxu0 0.0
    %2963 = vmatprep.subr.mxu0 0.0
    %2964 = vmatpush1.msra.mxu0 0.0
    %2965 = vmatprep.subr.mxu0 0.0
    %2966 = vmatpush1.msra.mxu0 0.0
    %2967 = vmatprep.subr.mxu0 0.0
    %2968 = vmatpush1.msra.mxu0 0.0
    %2969 = vmatprep.subr.mxu0 0.0
    %2970 = vmatpush1.msra.mxu0 0.0
    %2971 = vmatprep.subr.mxu0 0.0
    %2972 = vmatpush1.msra.mxu0 0.0
    %2973 = vmatprep.subr.mxu0 0.0
    %2974 = vmatpush1.msra.mxu0 0.0
    %2975 = vmatprep.subr.mxu0 0.0
    %2976 = vmatpush1.msra.mxu0 0.0
    %2977 = vmatprep.subr.mxu0 0.0
    %2978 = vmatpush1.msra.mxu0 0.0
    %2979 = vmatprep.subr.mxu0 0.0
    %2980 = vmatpush1.msra.mxu0 0.0
    %2981 = vmatprep.subr.mxu0 0.0
    %2982 = vmatpush1.msra.mxu0 0.0
    %2983 = vmatprep.subr.mxu0 0.0
    %2984 = vmatpush1.msra.mxu0 0.0
    %2985 = vmatprep.subr.mxu0 0.0
    %2986 = vmatpush1.msra.mxu0 0.0
    %2987 = vmatprep.subr.mxu0 0.0
    %2988 = vmatpush1.msra.mxu0 0.0
    %2989 = vmatprep.subr.mxu0 0.0
    %2990 = vmatpush1.msra.mxu0 0.0
    %2991 = vmatprep.subr.mxu0 0.0
    %2992 = vmatpush1.msra.mxu0 0.0
    %2993 = vmatprep.subr.mxu0 0.0
    %2994 = vmatpush1.msra.mxu0 0.0
    %2995 = vmatprep.mubr.f32.mxu0 0.0
    %2996 = vmatmul.mubr.f32.gmra.mrb[0].mxu0 %v2929
    %v2997 = vpop.f32.mrb[0].mxu0
    %v2998 = vadd.f32 0.0, %v2997
    %v2999 = vpop.f32.mrb[0].mxu0
    %3000 = vdwg.mxu0
    %v3002 = vrot.slane %v2998, 6
    %v3004 = vadd.f32 %v2437, %v3002
    %v3005 = vmul.f32 %v2926, 0.5
    %v3006 = vtanh.pop %v3005
    %v3007 = vmul.f32 %v3006, 0.5
    %v3008 = vadd.f32 %v3007, 0.5
    %v3009 = vmul.f32 %v3004, 0.5
    %v3010 = vtanh.pop %v3009
    %v3011 = vmul.f32 %v3010, 0.5
    %v3012 = vadd.f32 %v3011, 0.5
    %v3013 = vtanh.pop %v2926
    %v3014 = vtanh.pop %v3004
    %v3016 = vrot.slane %v2814, 6
    %v3018 = vmul.f32 %v3008, %v3016
    %3020 = vrot.lane.b32.xlu0 %v3013, 64
    %v3021 = vpop.permute.xlu0 %3020
    %v3023 = vmul.f32 %v3008, %v3021
    %3025 = vrot.lane.b32.xlu0 %v3023, 32
    %v3026 = vpop.permute.xlu0 %3025
    %v3028 = vadd.f32 %v3018, %v3026
    %v3030 = vrot.slane %v2828, 2
    %v3032 = vmul.f32 %v3012, %v3030
    %3034 = vrot.lane.b32.xlu0 %v3014, 64
    %v3035 = vpop.permute.xlu0 %3034
    %v3037 = vmul.f32 %v3012, %v3035
    %3039 = vrot.lane.b32.xlu0 %v3037, 32
    %v3040 = vpop.permute.xlu0 %3039
    %v3042 = vadd.f32 %v3032, %v3040
    %v3043 = vtanh.pop %v3028
    %3045 = vrot.lane.b32.xlu0 %v3043, 64
    %v3046 = vpop.permute.xlu0 %3045
    %v3048 = vmul.f32 %v3008, %v3046
    %v3049 = vtanh.pop %v3042
    %3051 = vrot.lane.b32.xlu0 %v3049, 64
    %v3052 = vpop.permute.xlu0 %3051
    %v3054 = vmul.f32 %v3012, %v3052
    %v3056 = vrot.slane %v3048, 4
    %v3058 = vadd.f32 %v2848, %v3056
    %v3060 = vrot.slane %v3054, 2
    %v3062 = vadd.f32 %v3058, %v3060
    %3063 = vrot.lane.b32.xlu0 %v3056, 32
    %v3064 = vpop.permute.xlu0 %3063
    %v3065 = vsel %vm299, %v3064, 0
    %3067 = vmatprep.subr.mxu0 0.0
    %3068 = vmatpush1.msra.mxu0 %v235
    %3069 = vmatprep.subr.mxu0 0.0
    %3070 = vmatpush1.msra.mxu0 %v236
    %3071 = vmatprep.subr.mxu0 0.0
    %3072 = vmatpush1.msra.mxu0 %v237
    %3073 = vmatprep.subr.mxu0 0.0
    %3074 = vmatpush1.msra.mxu0 %v238
    %3075 = vmatprep.subr.mxu0 0.0
    %3076 = vmatpush1.msra.mxu0 0.0
    %3077 = vmatprep.subr.mxu0 0.0
    %3078 = vmatpush1.msra.mxu0 0.0
    %3079 = vmatprep.subr.mxu0 0.0
    %3080 = vmatpush1.msra.mxu0 0.0
    %3081 = vmatprep.subr.mxu0 0.0
    %3082 = vmatpush1.msra.mxu0 0.0
    %3083 = vmatprep.subr.mxu0 0.0
    %3084 = vmatpush1.msra.mxu0 0.0
    %3085 = vmatprep.subr.mxu0 0.0
    %3086 = vmatpush1.msra.mxu0 0.0
    %3087 = vmatprep.subr.mxu0 0.0
    %3088 = vmatpush1.msra.mxu0 0.0
    %3089 = vmatprep.subr.mxu0 0.0
    %3090 = vmatpush1.msra.mxu0 0.0
    %3091 = vmatprep.subr.mxu0 0.0
    %3092 = vmatpush1.msra.mxu0 0.0
    %3093 = vmatprep.subr.mxu0 0.0
    %3094 = vmatpush1.msra.mxu0 0.0
    %3095 = vmatprep.subr.mxu0 0.0
    %3096 = vmatpush1.msra.mxu0 0.0
    %3097 = vmatprep.subr.mxu0 0.0
    %3098 = vmatpush1.msra.mxu0 0.0
    %3099 = vmatprep.subr.mxu0 0.0
    %3100 = vmatpush1.msra.mxu0 0.0
    %3101 = vmatprep.subr.mxu0 0.0
    %3102 = vmatpush1.msra.mxu0 0.0
    %3103 = vmatprep.subr.mxu0 0.0
    %3104 = vmatpush1.msra.mxu0 0.0
    %3105 = vmatprep.subr.mxu0 0.0
    %3106 = vmatpush1.msra.mxu0 0.0
    %3107 = vmatprep.subr.mxu0 0.0
    %3108 = vmatpush1.msra.mxu0 0.0
    %3109 = vmatprep.subr.mxu0 0.0
    %3110 = vmatpush1.msra.mxu0 0.0
    %3111 = vmatprep.subr.mxu0 0.0
    %3112 = vmatpush1.msra.mxu0 0.0
    %3113 = vmatprep.subr.mxu0 0.0
    %3114 = vmatpush1.msra.mxu0 0.0
    %3115 = vmatprep.subr.mxu0 0.0
    %3116 = vmatpush1.msra.mxu0 0.0
    %3117 = vmatprep.subr.mxu0 0.0
    %3118 = vmatpush1.msra.mxu0 0.0
    %3119 = vmatprep.subr.mxu0 0.0
    %3120 = vmatpush1.msra.mxu0 0.0
    %3121 = vmatprep.subr.mxu0 0.0
    %3122 = vmatpush1.msra.mxu0 0.0
    %3123 = vmatprep.subr.mxu0 0.0
    %3124 = vmatpush1.msra.mxu0 0.0
    %3125 = vmatprep.subr.mxu0 0.0
    %3126 = vmatpush1.msra.mxu0 0.0
    %3127 = vmatprep.subr.mxu0 0.0
    %3128 = vmatpush1.msra.mxu0 0.0
    %3129 = vmatprep.subr.mxu0 0.0
    %3130 = vmatpush1.msra.mxu0 0.0
    %3131 = vmatprep.mubr.f32.mxu0 0.0
    %3132 = vmatmul.mubr.f32.gmra.mrb[0].mxu0 %v3065
    %v3133 = vpop.f32.mrb[0].mxu0
    %v3134 = vadd.f32 0.0, %v3133
    %v3135 = vpop.f32.mrb[0].mxu0
    %3136 = vdwg.mxu0
    %v3138 = vrot.slane %v3134, 2
    %v3140 = vadd.f32 %v2351, %v3138
    %3141 = vrot.lane.b32.xlu0 %v3060, 32
    %v3142 = vpop.permute.xlu0 %3141
    %v3143 = vsel %vm299, %v3142, 0
    %3145 = vmatprep.subr.mxu0 0.0
    %3146 = vmatpush1.msra.mxu0 %v248
    %3147 = vmatprep.subr.mxu0 0.0
    %3148 = vmatpush1.msra.mxu0 %v249
    %3149 = vmatprep.subr.mxu0 0.0
    %3150 = vmatpush1.msra.mxu0 %v250
    %3151 = vmatprep.subr.mxu0 0.0
    %3152 = vmatpush1.msra.mxu0 %v251
    %3153 = vmatprep.subr.mxu0 0.0
    %3154 = vmatpush1.msra.mxu0 0.0
    %3155 = vmatprep.subr.mxu0 0.0
    %3156 = vmatpush1.msra.mxu0 0.0
    %3157 = vmatprep.subr.mxu0 0.0
    %3158 = vmatpush1.msra.mxu0 0.0
    %3159 = vmatprep.subr.mxu0 0.0
    %3160 = vmatpush1.msra.mxu0 0.0
    %3161 = vmatprep.subr.mxu0 0.0
    %3162 = vmatpush1.msra.mxu0 0.0
    %3163 = vmatprep.subr.mxu0 0.0
    %3164 = vmatpush1.msra.mxu0 0.0
    %3165 = vmatprep.subr.mxu0 0.0
    %3166 = vmatpush1.msra.mxu0 0.0
    %3167 = vmatprep.subr.mxu0 0.0
    %3168 = vmatpush1.msra.mxu0 0.0
    %3169 = vmatprep.subr.mxu0 0.0
    %3170 = vmatpush1.msra.mxu0 0.0
    %3171 = vmatprep.subr.mxu0 0.0
    %3172 = vmatpush1.msra.mxu0 0.0
    %3173 = vmatprep.subr.mxu0 0.0
    %3174 = vmatpush1.msra.mxu0 0.0
    %3175 = vmatprep.subr.mxu0 0.0
    %3176 = vmatpush1.msra.mxu0 0.0
    %3177 = vmatprep.subr.mxu0 0.0
    %3178 = vmatpush1.msra.mxu0 0.0
    %3179 = vmatprep.subr.mxu0 0.0
    %3180 = vmatpush1.msra.mxu0 0.0
    %3181 = vmatprep.subr.mxu0 0.0
    %3182 = vmatpush1.msra.mxu0 0.0
    %3183 = vmatprep.subr.mxu0 0.0
    %3184 = vmatpush1.msra.mxu0 0.0
    %3185 = vmatprep.subr.mxu0 0.0
    %3186 = vmatpush1.msra.mxu0 0.0
    %3187 = vmatprep.subr.mxu0 0.0
    %3188 = vmatpush1.msra.mxu0 0.0
    %3189 = vmatprep.subr.mxu0 0.0
    %3190 = vmatpush1.msra.mxu0 0.0
    %3191 = vmatprep.subr.mxu0 0.0
    %3192 = vmatpush1.msra.mxu0 0.0
    %3193 = vmatprep.subr.mxu0 0.0
    %3194 = vmatpush1.msra.mxu0 0.0
    %3195 = vmatprep.subr.mxu0 0.0
    %3196 = vmatpush1.msra.mxu0 0.0
    %3197 = vmatprep.subr.mxu0 0.0
    %3198 = vmatpush1.msra.mxu0 0.0
    %3199 = vmatprep.subr.mxu0 0.0
    %3200 = vmatpush1.msra.mxu0 0.0
    %3201 = vmatprep.subr.mxu0 0.0
    %3202 = vmatpush1.msra.mxu0 0.0
    %3203 = vmatprep.subr.mxu0 0.0
    %3204 = vmatpush1.msra.mxu0 0.0
    %3205 = vmatprep.subr.mxu0 0.0
    %3206 = vmatpush1.msra.mxu0 0.0
    %3207 = vmatprep.subr.mxu0 0.0
    %3208 = vmatpush1.msra.mxu0 0.0
    %3209 = vmatprep.mubr.f32.mxu0 0.0
    %3210 = vmatmul.mubr.f32.gmra.mrb[0].mxu0 %v3143
    %v3211 = vpop.f32.mrb[0].mxu0
    %v3212 = vadd.f32 0.0, %v3211
    %v3213 = vpop.f32.mrb[0].mxu0
    %3214 = vdwg.mxu0
    %v3215 = vadd.f32 %v2437, %v3212
    %v3216 = vmul.f32 %v3140, 0.5
    %v3217 = vtanh.pop %v3216
    %v3218 = vmul.f32 %v3217, 0.5
    %v3219 = vadd.f32 %v3218, 0.5
    %v3220 = vmul.f32 %v3215, 0.5
    %v3221 = vtanh.pop %v3220
    %v3222 = vmul.f32 %v3221, 0.5
    %v3223 = vadd.f32 %v3222, 0.5
    %v3224 = vtanh.pop %v3140
    %v3225 = vtanh.pop %v3215
    %v3227 = vrot.slane %v3028, 6
    %v3229 = vmul.f32 %v3219, %v3227
    %3231 = vrot.lane.b32.xlu0 %v3224, 64
    %v3232 = vpop.permute.xlu0 %3231
    %v3234 = vmul.f32 %v3219, %v3232
    %3236 = vrot.lane.b32.xlu0 %v3234, 32
    %v3237 = vpop.permute.xlu0 %3236
    %v3239 = vadd.f32 %v3229, %v3237
    %v3241 = vrot.slane %v3042, 2
    %v3243 = vmul.f32 %v3223, %v3241
    %3245 = vrot.lane.b32.xlu0 %v3225, 64
    %v3246 = vpop.permute.xlu0 %3245
    %v3248 = vmul.f32 %v3223, %v3246
    %3250 = vrot.lane.b32.xlu0 %v3248, 32
    %v3251 = vpop.permute.xlu0 %3250
    %v3253 = vadd.f32 %v3243, %v3251
    %v3254 = vtanh.pop %v3239
    %3256 = vrot.lane.b32.xlu0 %v3254, 64
    %v3257 = vpop.permute.xlu0 %3256
    %v3259 = vmul.f32 %v3219, %v3257
    %v3260 = vtanh.pop %v3253
    %3262 = vrot.lane.b32.xlu0 %v3260, 64
    %v3263 = vpop.permute.xlu0 %3262
    %v3265 = vmul.f32 %v3223, %v3263
    %v3267 = vrot.slane %v3259, 6
    %v3269 = vadd.f32 %v3062, %v3267
    %v3270 = vadd.f32 %v3269, %v3265
    %3271 = vrot.lane.b32.xlu0 %v3267, 32
    %v3272 = vpop.permute.xlu0 %3271
    %v3273 = vsel %vm299, %v3272, 0
    %3275 = vmatprep.subr.mxu0 0.0
    %3276 = vmatpush1.msra.mxu0 %v235
    %3277 = vmatprep.subr.mxu0 0.0
    %3278 = vmatpush1.msra.mxu0 %v236
    %3279 = vmatprep.subr.mxu0 0.0
    %3280 = vmatpush1.msra.mxu0 %v237
    %3281 = vmatprep.subr.mxu0 0.0
    %3282 = vmatpush1.msra.mxu0 %v238
    %3283 = vmatprep.subr.mxu0 0.0
    %3284 = vmatpush1.msra.mxu0 0.0
    %3285 = vmatprep.subr.mxu0 0.0
    %3286 = vmatpush1.msra.mxu0 0.0
    %3287 = vmatprep.subr.mxu0 0.0
    %3288 = vmatpush1.msra.mxu0 0.0
    %3289 = vmatprep.subr.mxu0 0.0
    %3290 = vmatpush1.msra.mxu0 0.0
    %3291 = vmatprep.subr.mxu0 0.0
    %3292 = vmatpush1.msra.mxu0 0.0
    %3293 = vmatprep.subr.mxu0 0.0
    %3294 = vmatpush1.msra.mxu0 0.0
    %3295 = vmatprep.subr.mxu0 0.0
    %3296 = vmatpush1.msra.mxu0 0.0
    %3297 = vmatprep.subr.mxu0 0.0
    %3298 = vmatpush1.msra.mxu0 0.0
    %3299 = vmatprep.subr.mxu0 0.0
    %3300 = vmatpush1.msra.mxu0 0.0
    %3301 = vmatprep.subr.mxu0 0.0
    %3302 = vmatpush1.msra.mxu0 0.0
    %3303 = vmatprep.subr.mxu0 0.0
    %3304 = vmatpush1.msra.mxu0 0.0
    %3305 = vmatprep.subr.mxu0 0.0
    %3306 = vmatpush1.msra.mxu0 0.0
    %3307 = vmatprep.subr.mxu0 0.0
    %3308 = vmatpush1.msra.mxu0 0.0
    %3309 = vmatprep.subr.mxu0 0.0
    %3310 = vmatpush1.msra.mxu0 0.0
    %3311 = vmatprep.subr.mxu0 0.0
    %3312 = vmatpush1.msra.mxu0 0.0
    %3313 = vmatprep.subr.mxu0 0.0
    %3314 = vmatpush1.msra.mxu0 0.0
    %3315 = vmatprep.subr.mxu0 0.0
    %3316 = vmatpush1.msra.mxu0 0.0
    %3317 = vmatprep.subr.mxu0 0.0
    %3318 = vmatpush1.msra.mxu0 0.0
    %3319 = vmatprep.subr.mxu0 0.0
    %3320 = vmatpush1.msra.mxu0 0.0
    %3321 = vmatprep.subr.mxu0 0.0
    %3322 = vmatpush1.msra.mxu0 0.0
    %3323 = vmatprep.subr.mxu0 0.0
    %3324 = vmatpush1.msra.mxu0 0.0
    %3325 = vmatprep.subr.mxu0 0.0
    %3326 = vmatpush1.msra.mxu0 0.0
    %3327 = vmatprep.subr.mxu0 0.0
    %3328 = vmatpush1.msra.mxu0 0.0
    %3329 = vmatprep.subr.mxu0 0.0
    %3330 = vmatpush1.msra.mxu0 0.0
    %3331 = vmatprep.subr.mxu0 0.0
    %3332 = vmatpush1.msra.mxu0 0.0
    %3333 = vmatprep.subr.mxu0 0.0
    %3334 = vmatpush1.msra.mxu0 0.0
    %3335 = vmatprep.subr.mxu0 0.0
    %3336 = vmatpush1.msra.mxu0 0.0
    %3337 = vmatprep.subr.mxu0 0.0
    %3338 = vmatpush1.msra.mxu0 0.0
    %3339 = vmatprep.mubr.f32.mxu0 0.0
    %3340 = vmatmul.mubr.f32.gmra.mrb[0].mxu0 %v3273
    %v3341 = vpop.f32.mrb[0].mxu0
    %v3342 = vadd.f32 0.0, %v3341
    %v3343 = vpop.f32.mrb[0].mxu0
    %3344 = vdwg.mxu0
    %v3345 = vadd.f32 %v2356, %v3342
    %3347 = vrot.lane.b32.xlu0 %v3265, 32
    %v3348 = vpop.permute.xlu0 %3347
    %v3349 = vsel %vm299, %v3348, 0
    %3351 = vmatprep.subr.mxu0 0.0
    %3352 = vmatpush1.msra.mxu0 %v248
    %3353 = vmatprep.subr.mxu0 0.0
    %3354 = vmatpush1.msra.mxu0 %v249
    %3355 = vmatprep.subr.mxu0 0.0
    %3356 = vmatpush1.msra.mxu0 %v250
    %3357 = vmatprep.subr.mxu0 0.0
    %3358 = vmatpush1.msra.mxu0 %v251
    %3359 = vmatprep.subr.mxu0 0.0
    %3360 = vmatpush1.msra.mxu0 0.0
    %3361 = vmatprep.subr.mxu0 0.0
    %3362 = vmatpush1.msra.mxu0 0.0
    %3363 = vmatprep.subr.mxu0 0.0
    %3364 = vmatpush1.msra.mxu0 0.0
    %3365 = vmatprep.subr.mxu0 0.0
    %3366 = vmatpush1.msra.mxu0 0.0
    %3367 = vmatprep.subr.mxu0 0.0
    %3368 = vmatpush1.msra.mxu0 0.0
    %3369 = vmatprep.subr.mxu0 0.0
    %3370 = vmatpush1.msra.mxu0 0.0
    %3371 = vmatprep.subr.mxu0 0.0
    %3372 = vmatpush1.msra.mxu0 0.0
    %3373 = vmatprep.subr.mxu0 0.0
    %3374 = vmatpush1.msra.mxu0 0.0
    %3375 = vmatprep.subr.mxu0 0.0
    %3376 = vmatpush1.msra.mxu0 0.0
    %3377 = vmatprep.subr.mxu0 0.0
    %3378 = vmatpush1.msra.mxu0 0.0
    %3379 = vmatprep.subr.mxu0 0.0
    %3380 = vmatpush1.msra.mxu0 0.0
    %3381 = vmatprep.subr.mxu0 0.0
    %3382 = vmatpush1.msra.mxu0 0.0
    %3383 = vmatprep.subr.mxu0 0.0
    %3384 = vmatpush1.msra.mxu0 0.0
    %3385 = vmatprep.subr.mxu0 0.0
    %3386 = vmatpush1.msra.mxu0 0.0
    %3387 = vmatprep.subr.mxu0 0.0
    %3388 = vmatpush1.msra.mxu0 0.0
    %3389 = vmatprep.subr.mxu0 0.0
    %3390 = vmatpush1.msra.mxu0 0.0
    %3391 = vmatprep.subr.mxu0 0.0
    %3392 = vmatpush1.msra.mxu0 0.0
    %3393 = vmatprep.subr.mxu0 0.0
    %3394 = vmatpush1.msra.mxu0 0.0
    %3395 = vmatprep.subr.mxu0 0.0
    %3396 = vmatpush1.msra.mxu0 0.0
    %3397 = vmatprep.subr.mxu0 0.0
    %3398 = vmatpush1.msra.mxu0 0.0
    %3399 = vmatprep.subr.mxu0 0.0
    %3400 = vmatpush1.msra.mxu0 0.0
    %3401 = vmatprep.subr.mxu0 0.0
    %3402 = vmatpush1.msra.mxu0 0.0
    %3403 = vmatprep.subr.mxu0 0.0
    %3404 = vmatpush1.msra.mxu0 0.0
    %3405 = vmatprep.subr.mxu0 0.0
    %3406 = vmatpush1.msra.mxu0 0.0
    %3407 = vmatprep.subr.mxu0 0.0
    %3408 = vmatpush1.msra.mxu0 0.0
    %3409 = vmatprep.subr.mxu0 0.0
    %3410 = vmatpush1.msra.mxu0 0.0
    %3411 = vmatprep.subr.mxu0 0.0
    %3412 = vmatpush1.msra.mxu0 0.0
    %3413 = vmatprep.subr.mxu0 0.0
    %3414 = vmatpush1.msra.mxu0 0.0
    %3415 = vmatprep.mubr.f32.mxu0 0.0
    %3416 = vmatmul.mubr.f32.gmra.mrb[0].mxu0 %v3349
    %v3417 = vpop.f32.mrb[0].mxu0
    %v3418 = vadd.f32 0.0, %v3417
    %v3419 = vpop.f32.mrb[0].mxu0
    %3420 = vdwg.mxu0
    %v3422 = vrot.slane %v3418, 2
    %v3424 = vadd.f32 %v2432, %v3422
    %v3425 = vmul.f32 %v3345, 0.5
    %v3426 = vtanh.pop %v3425
    %v3427 = vmul.f32 %v3426, 0.5
    %v3428 = vadd.f32 %v3427, 0.5
    %v3429 = vmul.f32 %v3424, 0.5
    %v3430 = vtanh.pop %v3429
    %v3431 = vmul.f32 %v3430, 0.5
    %v3432 = vadd.f32 %v3431, 0.5
    %v3433 = vtanh.pop %v3345
    %v3434 = vtanh.pop %v3424
    %v3436 = vrot.slane %v3239, 6
    %v3438 = vmul.f32 %v3428, %v3436
    %3440 = vrot.lane.b32.xlu0 %v3433, 64
    %v3441 = vpop.permute.xlu0 %3440
    %v3443 = vmul.f32 %v3428, %v3441
    %3445 = vrot.lane.b32.xlu0 %v3443, 32
    %v3446 = vpop.permute.xlu0 %3445
    %v3448 = vadd.f32 %v3438, %v3446
    %v3450 = vrot.slane %v3253, 2
    %v3452 = vmul.f32 %v3432, %v3450
    %3454 = vrot.lane.b32.xlu0 %v3434, 64
    %v3455 = vpop.permute.xlu0 %3454
    %v3457 = vmul.f32 %v3432, %v3455
    %3459 = vrot.lane.b32.xlu0 %v3457, 32
    %v3460 = vpop.permute.xlu0 %3459
    %v3462 = vadd.f32 %v3452, %v3460
    %v3463 = vtanh.pop %v3448
    %3465 = vrot.lane.b32.xlu0 %v3463, 64
    %v3466 = vpop.permute.xlu0 %3465
    %v3468 = vmul.f32 %v3428, %v3466
    %v3469 = vtanh.pop %v3462
    %3471 = vrot.lane.b32.xlu0 %v3469, 64
    %v3472 = vpop.permute.xlu0 %3471
    %v3474 = vmul.f32 %v3432, %v3472
    %v3475 = vadd.f32 %v3270, %v3468
    %v3477 = vrot.slane %v3474, 6
    %v3479 = vadd.f32 %v3475, %v3477
    %3481 = vrot.lane.b32.xlu0 %v3468, 32
    %v3482 = vpop.permute.xlu0 %3481
    %v3483 = vsel %vm299, %v3482, 0
    %3485 = vmatprep.subr.mxu0 0.0
    %3486 = vmatpush1.msra.mxu0 %v235
    %3487 = vmatprep.subr.mxu0 0.0
    %3488 = vmatpush1.msra.mxu0 %v236
    %3489 = vmatprep.subr.mxu0 0.0
    %3490 = vmatpush1.msra.mxu0 %v237
    %3491 = vmatprep.subr.mxu0 0.0
    %3492 = vmatpush1.msra.mxu0 %v238
    %3493 = vmatprep.subr.mxu0 0.0
    %3494 = vmatpush1.msra.mxu0 0.0
    %3495 = vmatprep.subr.mxu0 0.0
    %3496 = vmatpush1.msra.mxu0 0.0
    %3497 = vmatprep.subr.mxu0 0.0
    %3498 = vmatpush1.msra.mxu0 0.0
    %3499 = vmatprep.subr.mxu0 0.0
    %3500 = vmatpush1.msra.mxu0 0.0
    %3501 = vmatprep.subr.mxu0 0.0
    %3502 = vmatpush1.msra.mxu0 0.0
    %3503 = vmatprep.subr.mxu0 0.0
    %3504 = vmatpush1.msra.mxu0 0.0
    %3505 = vmatprep.subr.mxu0 0.0
    %3506 = vmatpush1.msra.mxu0 0.0
    %3507 = vmatprep.subr.mxu0 0.0
    %3508 = vmatpush1.msra.mxu0 0.0
    %3509 = vmatprep.subr.mxu0 0.0
    %3510 = vmatpush1.msra.mxu0 0.0
    %3511 = vmatprep.subr.mxu0 0.0
    %3512 = vmatpush1.msra.mxu0 0.0
    %3513 = vmatprep.subr.mxu0 0.0
    %3514 = vmatpush1.msra.mxu0 0.0
    %3515 = vmatprep.subr.mxu0 0.0
    %3516 = vmatpush1.msra.mxu0 0.0
    %3517 = vmatprep.subr.mxu0 0.0
    %3518 = vmatpush1.msra.mxu0 0.0
    %3519 = vmatprep.subr.mxu0 0.0
    %3520 = vmatpush1.msra.mxu0 0.0
    %3521 = vmatprep.subr.mxu0 0.0
    %3522 = vmatpush1.msra.mxu0 0.0
    %3523 = vmatprep.subr.mxu0 0.0
    %3524 = vmatpush1.msra.mxu0 0.0
    %3525 = vmatprep.subr.mxu0 0.0
    %3526 = vmatpush1.msra.mxu0 0.0
    %3527 = vmatprep.subr.mxu0 0.0
    %3528 = vmatpush1.msra.mxu0 0.0
    %3529 = vmatprep.subr.mxu0 0.0
    %3530 = vmatpush1.msra.mxu0 0.0
    %3531 = vmatprep.subr.mxu0 0.0
    %3532 = vmatpush1.msra.mxu0 0.0
    %3533 = vmatprep.subr.mxu0 0.0
    %3534 = vmatpush1.msra.mxu0 0.0
    %3535 = vmatprep.subr.mxu0 0.0
    %3536 = vmatpush1.msra.mxu0 0.0
    %3537 = vmatprep.subr.mxu0 0.0
    %3538 = vmatpush1.msra.mxu0 0.0
    %3539 = vmatprep.subr.mxu0 0.0
    %3540 = vmatpush1.msra.mxu0 0.0
    %3541 = vmatprep.subr.mxu0 0.0
    %3542 = vmatpush1.msra.mxu0 0.0
    %3543 = vmatprep.subr.mxu0 0.0
    %3544 = vmatpush1.msra.mxu0 0.0
    %3545 = vmatprep.subr.mxu0 0.0
    %3546 = vmatpush1.msra.mxu0 0.0
    %3547 = vmatprep.subr.mxu0 0.0
    %3548 = vmatpush1.msra.mxu0 0.0
    %3549 = vmatprep.mubr.f32.mxu0 0.0
    %3550 = vmatmul.mubr.f32.gmra.mrb[0].mxu0 %v3483
    %v3551 = vpop.f32.mrb[0].mxu0
    %v3552 = vadd.f32 0.0, %v3551
    %v3553 = vpop.f32.mrb[0].mxu0
    %3554 = vdwg.mxu0
    %v3556 = vrot.slane %v3552, 6
    %v3558 = vadd.f32 %v2356, %v3556
    %3559 = vrot.lane.b32.xlu0 %v3477, 32
    %v3560 = vpop.permute.xlu0 %3559
    %v3561 = vsel %vm299, %v3560, 0
    %3563 = vmatprep.subr.mxu0 0.0
    %3564 = vmatpush1.msra.mxu0 %v248
    %3565 = vmatprep.subr.mxu0 0.0
    %3566 = vmatpush1.msra.mxu0 %v249
    %3567 = vmatprep.subr.mxu0 0.0
    %3568 = vmatpush1.msra.mxu0 %v250
    %3569 = vmatprep.subr.mxu0 0.0
    %3570 = vmatpush1.msra.mxu0 %v251
    %3571 = vmatprep.subr.mxu0 0.0
    %3572 = vmatpush1.msra.mxu0 0.0
    %3573 = vmatprep.subr.mxu0 0.0
    %3574 = vmatpush1.msra.mxu0 0.0
    %3575 = vmatprep.subr.mxu0 0.0
    %3576 = vmatpush1.msra.mxu0 0.0
    %3577 = vmatprep.subr.mxu0 0.0
    %3578 = vmatpush1.msra.mxu0 0.0
    %3579 = vmatprep.subr.mxu0 0.0
    %3580 = vmatpush1.msra.mxu0 0.0
    %3581 = vmatprep.subr.mxu0 0.0
    %3582 = vmatpush1.msra.mxu0 0.0
    %3583 = vmatprep.subr.mxu0 0.0
    %3584 = vmatpush1.msra.mxu0 0.0
    %3585 = vmatprep.subr.mxu0 0.0
    %3586 = vmatpush1.msra.mxu0 0.0
    %3587 = vmatprep.subr.mxu0 0.0
    %3588 = vmatpush1.msra.mxu0 0.0
    %3589 = vmatprep.subr.mxu0 0.0
    %3590 = vmatpush1.msra.mxu0 0.0
    %3591 = vmatprep.subr.mxu0 0.0
    %3592 = vmatpush1.msra.mxu0 0.0
    %3593 = vmatprep.subr.mxu0 0.0
    %3594 = vmatpush1.msra.mxu0 0.0
    %3595 = vmatprep.subr.mxu0 0.0
    %3596 = vmatpush1.msra.mxu0 0.0
    %3597 = vmatprep.subr.mxu0 0.0
    %3598 = vmatpush1.msra.mxu0 0.0
    %3599 = vmatprep.subr.mxu0 0.0
    %3600 = vmatpush1.msra.mxu0 0.0
    %3601 = vmatprep.subr.mxu0 0.0
    %3602 = vmatpush1.msra.mxu0 0.0
    %3603 = vmatprep.subr.mxu0 0.0
    %3604 = vmatpush1.msra.mxu0 0.0
    %3605 = vmatprep.subr.mxu0 0.0
    %3606 = vmatpush1.msra.mxu0 0.0
    %3607 = vmatprep.subr.mxu0 0.0
    %3608 = vmatpush1.msra.mxu0 0.0
    %3609 = vmatprep.subr.mxu0 0.0
    %3610 = vmatpush1.msra.mxu0 0.0
    %3611 = vmatprep.subr.mxu0 0.0
    %3612 = vmatpush1.msra.mxu0 0.0
    %3613 = vmatprep.subr.mxu0 0.0
    %3614 = vmatpush1.msra.mxu0 0.0
    %3615 = vmatprep.subr.mxu0 0.0
    %3616 = vmatpush1.msra.mxu0 0.0
    %3617 = vmatprep.subr.mxu0 0.0
    %3618 = vmatpush1.msra.mxu0 0.0
    %3619 = vmatprep.subr.mxu0 0.0
    %3620 = vmatpush1.msra.mxu0 0.0
    %3621 = vmatprep.subr.mxu0 0.0
    %3622 = vmatpush1.msra.mxu0 0.0
    %3623 = vmatprep.subr.mxu0 0.0
    %3624 = vmatpush1.msra.mxu0 0.0
    %3625 = vmatprep.subr.mxu0 0.0
    %3626 = vmatpush1.msra.mxu0 0.0
    %3627 = vmatprep.mubr.f32.mxu0 0.0
    %3628 = vmatmul.mubr.f32.gmra.mrb[0].mxu0 %v3561
    %v3629 = vpop.f32.mrb[0].mxu0
    %v3630 = vadd.f32 0.0, %v3629
    %v3631 = vpop.f32.mrb[0].mxu0
    %3632 = vdwg.mxu0
    %v3634 = vrot.slane %v3630, 4
    %v3636 = vadd.f32 %v2432, %v3634
    %v3637 = vmul.f32 %v3558, 0.5
    %v3638 = vtanh.pop %v3637
    %v3639 = vmul.f32 %v3638, 0.5
    %v3640 = vadd.f32 %v3639, 0.5
    %v3641 = vmul.f32 %v3636, 0.5
    %v3642 = vtanh.pop %v3641
    %v3643 = vmul.f32 %v3642, 0.5
    %v3644 = vadd.f32 %v3643, 0.5
    %v3645 = vtanh.pop %v3558
    %v3646 = vtanh.pop %v3636
    %v3648 = vrot.slane %v3448, 6
    %v3650 = vmul.f32 %v3640, %v3648
    %3652 = vrot.lane.b32.xlu0 %v3645, 64
    %v3653 = vpop.permute.xlu0 %3652
    %v3655 = vmul.f32 %v3640, %v3653
    %3657 = vrot.lane.b32.xlu0 %v3655, 32
    %v3658 = vpop.permute.xlu0 %3657
    %v3660 = vadd.f32 %v3650, %v3658
    %v3662 = vrot.slane %v3462, 2
    %v3664 = vmul.f32 %v3644, %v3662
    %3666 = vrot.lane.b32.xlu0 %v3646, 64
    %v3667 = vpop.permute.xlu0 %3666
    %v3669 = vmul.f32 %v3644, %v3667
    %3671 = vrot.lane.b32.xlu0 %v3669, 32
    %v3672 = vpop.permute.xlu0 %3671
    %v3674 = vadd.f32 %v3664, %v3672
    %v3675 = vtanh.pop %v3660
    %3677 = vrot.lane.b32.xlu0 %v3675, 64
    %v3678 = vpop.permute.xlu0 %3677
    %v3680 = vmul.f32 %v3640, %v3678
    %v3681 = vtanh.pop %v3674
    %3683 = vrot.lane.b32.xlu0 %v3681, 64
    %v3684 = vpop.permute.xlu0 %3683
    %v3686 = vmul.f32 %v3644, %v3684
    %v3688 = vrot.slane %v3680, 2
    %v3690 = vadd.f32 %v3479, %v3688
    %v3692 = vrot.slane %v3686, 4
    %v3694 = vadd.f32 %v3690, %v3692
    %3695 = vrot.lane.b32.xlu0 %v3688, 32
    %v3696 = vpop.permute.xlu0 %3695
    %v3697 = vsel %vm299, %v3696, 0
    %3699 = vmatprep.subr.mxu0 0.0
    %3700 = vmatpush1.msra.mxu0 %v235
    %3701 = vmatprep.subr.mxu0 0.0
    %3702 = vmatpush1.msra.mxu0 %v236
    %3703 = vmatprep.subr.mxu0 0.0
    %3704 = vmatpush1.msra.mxu0 %v237
    %3705 = vmatprep.subr.mxu0 0.0
    %3706 = vmatpush1.msra.mxu0 %v238
    %3707 = vmatprep.subr.mxu0 0.0
    %3708 = vmatpush1.msra.mxu0 0.0
    %3709 = vmatprep.subr.mxu0 0.0
    %3710 = vmatpush1.msra.mxu0 0.0
    %3711 = vmatprep.subr.mxu0 0.0
    %3712 = vmatpush1.msra.mxu0 0.0
    %3713 = vmatprep.subr.mxu0 0.0
    %3714 = vmatpush1.msra.mxu0 0.0
    %3715 = vmatprep.subr.mxu0 0.0
    %3716 = vmatpush1.msra.mxu0 0.0
    %3717 = vmatprep.subr.mxu0 0.0
    %3718 = vmatpush1.msra.mxu0 0.0
    %3719 = vmatprep.subr.mxu0 0.0
    %3720 = vmatpush1.msra.mxu0 0.0
    %3721 = vmatprep.subr.mxu0 0.0
    %3722 = vmatpush1.msra.mxu0 0.0
    %3723 = vmatprep.subr.mxu0 0.0
    %3724 = vmatpush1.msra.mxu0 0.0
    %3725 = vmatprep.subr.mxu0 0.0
    %3726 = vmatpush1.msra.mxu0 0.0
    %3727 = vmatprep.subr.mxu0 0.0
    %3728 = vmatpush1.msra.mxu0 0.0
    %3729 = vmatprep.subr.mxu0 0.0
    %3730 = vmatpush1.msra.mxu0 0.0
    %3731 = vmatprep.subr.mxu0 0.0
    %3732 = vmatpush1.msra.mxu0 0.0
    %3733 = vmatprep.subr.mxu0 0.0
    %3734 = vmatpush1.msra.mxu0 0.0
    %3735 = vmatprep.subr.mxu0 0.0
    %3736 = vmatpush1.msra.mxu0 0.0
    %3737 = vmatprep.subr.mxu0 0.0
    %3738 = vmatpush1.msra.mxu0 0.0
    %3739 = vmatprep.subr.mxu0 0.0
    %3740 = vmatpush1.msra.mxu0 0.0
    %3741 = vmatprep.subr.mxu0 0.0
    %3742 = vmatpush1.msra.mxu0 0.0
    %3743 = vmatprep.subr.mxu0 0.0
    %3744 = vmatpush1.msra.mxu0 0.0
    %3745 = vmatprep.subr.mxu0 0.0
    %3746 = vmatpush1.msra.mxu0 0.0
    %3747 = vmatprep.subr.mxu0 0.0
    %3748 = vmatpush1.msra.mxu0 0.0
    %3749 = vmatprep.subr.mxu0 0.0
    %3750 = vmatpush1.msra.mxu0 0.0
    %3751 = vmatprep.subr.mxu0 0.0
    %3752 = vmatpush1.msra.mxu0 0.0
    %3753 = vmatprep.subr.mxu0 0.0
    %3754 = vmatpush1.msra.mxu0 0.0
    %3755 = vmatprep.subr.mxu0 0.0
    %3756 = vmatpush1.msra.mxu0 0.0
    %3757 = vmatprep.subr.mxu0 0.0
    %3758 = vmatpush1.msra.mxu0 0.0
    %3759 = vmatprep.subr.mxu0 0.0
    %3760 = vmatpush1.msra.mxu0 0.0
    %3761 = vmatprep.subr.mxu0 0.0
    %3762 = vmatpush1.msra.mxu0 0.0
    %3763 = vmatprep.mubr.f32.mxu0 0.0
    %3764 = vmatmul.mubr.f32.gmra.mrb[0].mxu0 %v3697
    %v3765 = vpop.f32.mrb[0].mxu0
    %v3766 = vadd.f32 0.0, %v3765
    %v3767 = vpop.f32.mrb[0].mxu0
    %3768 = vdwg.mxu0
    %v3770 = vrot.slane %v3766, 4
    %v3772 = vadd.f32 %v2356, %v3770
    %3773 = vrot.lane.b32.xlu0 %v3692, 32
    %v3774 = vpop.permute.xlu0 %3773
    %v3775 = vsel %vm299, %v3774, 0
    %3777 = vmatprep.subr.mxu0 0.0
    %3778 = vmatpush1.msra.mxu0 %v248
    %3779 = vmatprep.subr.mxu0 0.0
    %3780 = vmatpush1.msra.mxu0 %v249
    %3781 = vmatprep.subr.mxu0 0.0
    %3782 = vmatpush1.msra.mxu0 %v250
    %3783 = vmatprep.subr.mxu0 0.0
    %3784 = vmatpush1.msra.mxu0 %v251
    %3785 = vmatprep.subr.mxu0 0.0
    %3786 = vmatpush1.msra.mxu0 0.0
    %3787 = vmatprep.subr.mxu0 0.0
    %3788 = vmatpush1.msra.mxu0 0.0
    %3789 = vmatprep.subr.mxu0 0.0
    %3790 = vmatpush1.msra.mxu0 0.0
    %3791 = vmatprep.subr.mxu0 0.0
    %3792 = vmatpush1.msra.mxu0 0.0
    %3793 = vmatprep.subr.mxu0 0.0
    %3794 = vmatpush1.msra.mxu0 0.0
    %3795 = vmatprep.subr.mxu0 0.0
    %3796 = vmatpush1.msra.mxu0 0.0
    %3797 = vmatprep.subr.mxu0 0.0
    %3798 = vmatpush1.msra.mxu0 0.0
    %3799 = vmatprep.subr.mxu0 0.0
    %3800 = vmatpush1.msra.mxu0 0.0
    %3801 = vmatprep.subr.mxu0 0.0
    %3802 = vmatpush1.msra.mxu0 0.0
    %3803 = vmatprep.subr.mxu0 0.0
    %3804 = vmatpush1.msra.mxu0 0.0
    %3805 = vmatprep.subr.mxu0 0.0
    %3806 = vmatpush1.msra.mxu0 0.0
    %3807 = vmatprep.subr.mxu0 0.0
    %3808 = vmatpush1.msra.mxu0 0.0
    %3809 = vmatprep.subr.mxu0 0.0
    %3810 = vmatpush1.msra.mxu0 0.0
    %3811 = vmatprep.subr.mxu0 0.0
    %3812 = vmatpush1.msra.mxu0 0.0
    %3813 = vmatprep.subr.mxu0 0.0
    %3814 = vmatpush1.msra.mxu0 0.0
    %3815 = vmatprep.subr.mxu0 0.0
    %3816 = vmatpush1.msra.mxu0 0.0
    %3817 = vmatprep.subr.mxu0 0.0
    %3818 = vmatpush1.msra.mxu0 0.0
    %3819 = vmatprep.subr.mxu0 0.0
    %3820 = vmatpush1.msra.mxu0 0.0
    %3821 = vmatprep.subr.mxu0 0.0
    %3822 = vmatpush1.msra.mxu0 0.0
    %3823 = vmatprep.subr.mxu0 0.0
    %3824 = vmatpush1.msra.mxu0 0.0
    %3825 = vmatprep.subr.mxu0 0.0
    %3826 = vmatpush1.msra.mxu0 0.0
    %3827 = vmatprep.subr.mxu0 0.0
    %3828 = vmatpush1.msra.mxu0 0.0
    %3829 = vmatprep.subr.mxu0 0.0
    %3830 = vmatpush1.msra.mxu0 0.0
    %3831 = vmatprep.subr.mxu0 0.0
    %3832 = vmatpush1.msra.mxu0 0.0
    %3833 = vmatprep.subr.mxu0 0.0
    %3834 = vmatpush1.msra.mxu0 0.0
    %3835 = vmatprep.subr.mxu0 0.0
    %3836 = vmatpush1.msra.mxu0 0.0
    %3837 = vmatprep.subr.mxu0 0.0
    %3838 = vmatpush1.msra.mxu0 0.0
    %3839 = vmatprep.subr.mxu0 0.0
    %3840 = vmatpush1.msra.mxu0 0.0
    %3841 = vmatprep.mubr.f32.mxu0 0.0
    %3842 = vmatmul.mubr.f32.gmra.mrb[0].mxu0 %v3775
    %v3843 = vpop.f32.mrb[0].mxu0
    %v3844 = vadd.f32 0.0, %v3843
    %v3845 = vpop.f32.mrb[0].mxu0
    %3846 = vdwg.mxu0
    %v3848 = vrot.slane %v3844, 6
    %v3850 = vadd.f32 %v2432, %v3848
    %v3851 = vmul.f32 %v3772, 0.5
    %v3852 = vtanh.pop %v3851
    %v3853 = vmul.f32 %v3852, 0.5
    %v3854 = vadd.f32 %v3853, 0.5
    %v3855 = vmul.f32 %v3850, 0.5
    %v3856 = vtanh.pop %v3855
    %v3857 = vmul.f32 %v3856, 0.5
    %v3858 = vadd.f32 %v3857, 0.5
    %v3859 = vtanh.pop %v3772
    %v3860 = vtanh.pop %v3850
    %v3862 = vrot.slane %v3660, 6
    %v3864 = vmul.f32 %v3854, %v3862
    %3866 = vrot.lane.b32.xlu0 %v3859, 64
    %v3867 = vpop.permute.xlu0 %3866
    %v3869 = vmul.f32 %v3854, %v3867
    %3871 = vrot.lane.b32.xlu0 %v3869, 32
    %v3872 = vpop.permute.xlu0 %3871
    %v3874 = vadd.f32 %v3864, %v3872
    %v3876 = vrot.slane %v3674, 2
    %v3878 = vmul.f32 %v3858, %v3876
    %3880 = vrot.lane.b32.xlu0 %v3860, 64
    %v3881 = vpop.permute.xlu0 %3880
    %v3883 = vmul.f32 %v3858, %v3881
    %3885 = vrot.lane.b32.xlu0 %v3883, 32
    %v3886 = vpop.permute.xlu0 %3885
    %v3888 = vadd.f32 %v3878, %v3886
    %v3889 = vtanh.pop %v3874
    %3891 = vrot.lane.b32.xlu0 %v3889, 64
    %v3892 = vpop.permute.xlu0 %3891
    %v3894 = vmul.f32 %v3854, %v3892
    %v3895 = vtanh.pop %v3888
    %3897 = vrot.lane.b32.xlu0 %v3895, 64
    %v3898 = vpop.permute.xlu0 %3897
    %v3900 = vmul.f32 %v3858, %v3898
    %v3902 = vrot.slane %v3894, 4
    %v3904 = vadd.f32 %v3694, %v3902
    %v3906 = vrot.slane %v3900, 2
    %v3908 = vadd.f32 %v3904, %v3906
    %3909 = vrot.lane.b32.xlu0 %v3902, 32
    %v3910 = vpop.permute.xlu0 %3909
    %v3911 = vsel %vm299, %v3910, 0
    %3913 = vmatprep.subr.mxu0 0.0
    %3914 = vmatpush1.msra.mxu0 %v235
    %3915 = vmatprep.subr.mxu0 0.0
    %3916 = vmatpush1.msra.mxu0 %v236
    %3917 = vmatprep.subr.mxu0 0.0
    %3918 = vmatpush1.msra.mxu0 %v237
    %3919 = vmatprep.subr.mxu0 0.0
    %3920 = vmatpush1.msra.mxu0 %v238
    %3921 = vmatprep.subr.mxu0 0.0
    %3922 = vmatpush1.msra.mxu0 0.0
    %3923 = vmatprep.subr.mxu0 0.0
    %3924 = vmatpush1.msra.mxu0 0.0
    %3925 = vmatprep.subr.mxu0 0.0
    %3926 = vmatpush1.msra.mxu0 0.0
    %3927 = vmatprep.subr.mxu0 0.0
    %3928 = vmatpush1.msra.mxu0 0.0
    %3929 = vmatprep.subr.mxu0 0.0
    %3930 = vmatpush1.msra.mxu0 0.0
    %3931 = vmatprep.subr.mxu0 0.0
    %3932 = vmatpush1.msra.mxu0 0.0
    %3933 = vmatprep.subr.mxu0 0.0
    %3934 = vmatpush1.msra.mxu0 0.0
    %3935 = vmatprep.subr.mxu0 0.0
    %3936 = vmatpush1.msra.mxu0 0.0
    %3937 = vmatprep.subr.mxu0 0.0
    %3938 = vmatpush1.msra.mxu0 0.0
    %3939 = vmatprep.subr.mxu0 0.0
    %3940 = vmatpush1.msra.mxu0 0.0
    %3941 = vmatprep.subr.mxu0 0.0
    %3942 = vmatpush1.msra.mxu0 0.0
    %3943 = vmatprep.subr.mxu0 0.0
    %3944 = vmatpush1.msra.mxu0 0.0
    %3945 = vmatprep.subr.mxu0 0.0
    %3946 = vmatpush1.msra.mxu0 0.0
    %3947 = vmatprep.subr.mxu0 0.0
    %3948 = vmatpush1.msra.mxu0 0.0
    %3949 = vmatprep.subr.mxu0 0.0
    %3950 = vmatpush1.msra.mxu0 0.0
    %3951 = vmatprep.subr.mxu0 0.0
    %3952 = vmatpush1.msra.mxu0 0.0
    %3953 = vmatprep.subr.mxu0 0.0
    %3954 = vmatpush1.msra.mxu0 0.0
    %3955 = vmatprep.subr.mxu0 0.0
    %3956 = vmatpush1.msra.mxu0 0.0
    %3957 = vmatprep.subr.mxu0 0.0
    %3958 = vmatpush1.msra.mxu0 0.0
    %3959 = vmatprep.subr.mxu0 0.0
    %3960 = vmatpush1.msra.mxu0 0.0
    %3961 = vmatprep.subr.mxu0 0.0
    %3962 = vmatpush1.msra.mxu0 0.0
    %3963 = vmatprep.subr.mxu0 0.0
    %3964 = vmatpush1.msra.mxu0 0.0
    %3965 = vmatprep.subr.mxu0 0.0
    %3966 = vmatpush1.msra.mxu0 0.0
    %3967 = vmatprep.subr.mxu0 0.0
    %3968 = vmatpush1.msra.mxu0 0.0
    %3969 = vmatprep.subr.mxu0 0.0
    %3970 = vmatpush1.msra.mxu0 0.0
    %3971 = vmatprep.subr.mxu0 0.0
    %3972 = vmatpush1.msra.mxu0 0.0
    %3973 = vmatprep.subr.mxu0 0.0
    %3974 = vmatpush1.msra.mxu0 0.0
    %3975 = vmatprep.subr.mxu0 0.0
    %3976 = vmatpush1.msra.mxu0 0.0
    %3977 = vmatprep.mubr.f32.mxu0 0.0
    %3978 = vmatmul.mubr.f32.gmra.mrb[0].mxu0 %v3911
    %v3979 = vpop.f32.mrb[0].mxu0
    %v3980 = vadd.f32 0.0, %v3979
    %v3981 = vpop.f32.mrb[0].mxu0
    %3982 = vdwg.mxu0
    %v3984 = vrot.slane %v3980, 2
    %v3986 = vadd.f32 %v2356, %v3984
    %3987 = vrot.lane.b32.xlu0 %v3906, 32
    %v3988 = vpop.permute.xlu0 %3987
    %v3989 = vsel %vm299, %v3988, 0
    %3991 = vmatprep.subr.mxu0 0.0
    %3992 = vmatpush1.msra.mxu0 %v248
    %3993 = vmatprep.subr.mxu0 0.0
    %3994 = vmatpush1.msra.mxu0 %v249
    %3995 = vmatprep.subr.mxu0 0.0
    %3996 = vmatpush1.msra.mxu0 %v250
    %3997 = vmatprep.subr.mxu0 0.0
    %3998 = vmatpush1.msra.mxu0 %v251
    %3999 = vmatprep.subr.mxu0 0.0
    %4000 = vmatpush1.msra.mxu0 0.0
    %4001 = vmatprep.subr.mxu0 0.0
    %4002 = vmatpush1.msra.mxu0 0.0
    %4003 = vmatprep.subr.mxu0 0.0
    %4004 = vmatpush1.msra.mxu0 0.0
    %4005 = vmatprep.subr.mxu0 0.0
    %4006 = vmatpush1.msra.mxu0 0.0
    %4007 = vmatprep.subr.mxu0 0.0
    %4008 = vmatpush1.msra.mxu0 0.0
    %4009 = vmatprep.subr.mxu0 0.0
    %4010 = vmatpush1.msra.mxu0 0.0
    %4011 = vmatprep.subr.mxu0 0.0
    %4012 = vmatpush1.msra.mxu0 0.0
    %4013 = vmatprep.subr.mxu0 0.0
    %4014 = vmatpush1.msra.mxu0 0.0
    %4015 = vmatprep.subr.mxu0 0.0
    %4016 = vmatpush1.msra.mxu0 0.0
    %4017 = vmatprep.subr.mxu0 0.0
    %4018 = vmatpush1.msra.mxu0 0.0
    %4019 = vmatprep.subr.mxu0 0.0
    %4020 = vmatpush1.msra.mxu0 0.0
    %4021 = vmatprep.subr.mxu0 0.0
    %4022 = vmatpush1.msra.mxu0 0.0
    %4023 = vmatprep.subr.mxu0 0.0
    %4024 = vmatpush1.msra.mxu0 0.0
    %4025 = vmatprep.subr.mxu0 0.0
    %4026 = vmatpush1.msra.mxu0 0.0
    %4027 = vmatprep.subr.mxu0 0.0
    %4028 = vmatpush1.msra.mxu0 0.0
    %4029 = vmatprep.subr.mxu0 0.0
    %4030 = vmatpush1.msra.mxu0 0.0
    %4031 = vmatprep.subr.mxu0 0.0
    %4032 = vmatpush1.msra.mxu0 0.0
    %4033 = vmatprep.subr.mxu0 0.0
    %4034 = vmatpush1.msra.mxu0 0.0
    %4035 = vmatprep.subr.mxu0 0.0
    %4036 = vmatpush1.msra.mxu0 0.0
    %4037 = vmatprep.subr.mxu0 0.0
    %4038 = vmatpush1.msra.mxu0 0.0
    %4039 = vmatprep.subr.mxu0 0.0
    %4040 = vmatpush1.msra.mxu0 0.0
    %4041 = vmatprep.subr.mxu0 0.0
    %4042 = vmatpush1.msra.mxu0 0.0
    %4043 = vmatprep.subr.mxu0 0.0
    %4044 = vmatpush1.msra.mxu0 0.0
    %4045 = vmatprep.subr.mxu0 0.0
    %4046 = vmatpush1.msra.mxu0 0.0
    %4047 = vmatprep.subr.mxu0 0.0
    %4048 = vmatpush1.msra.mxu0 0.0
    %4049 = vmatprep.subr.mxu0 0.0
    %4050 = vmatpush1.msra.mxu0 0.0
    %4051 = vmatprep.subr.mxu0 0.0
    %4052 = vmatpush1.msra.mxu0 0.0
    %4053 = vmatprep.subr.mxu0 0.0
    %4054 = vmatpush1.msra.mxu0 0.0
    %4055 = vmatprep.mubr.f32.mxu0 0.0
    %4056 = vmatmul.mubr.f32.gmra.mrb[0].mxu0 %v3989
    %v4057 = vpop.f32.mrb[0].mxu0
    %v4058 = vadd.f32 0.0, %v4057
    %v4059 = vpop.f32.mrb[0].mxu0
    %4060 = vdwg.mxu0
    %v4061 = vadd.f32 %v2432, %v4058
    %v4062 = vmul.f32 %v3986, 0.5
    %v4063 = vtanh.pop %v4062
    %v4064 = vmul.f32 %v4063, 0.5
    %v4065 = vadd.f32 %v4064, 0.5
    %v4066 = vmul.f32 %v4061, 0.5
    %v4067 = vtanh.pop %v4066
    %v4068 = vmul.f32 %v4067, 0.5
    %v4069 = vadd.f32 %v4068, 0.5
    %v4070 = vtanh.pop %v3986
    %v4071 = vtanh.pop %v4061
    %v4073 = vrot.slane %v3874, 6
    %v4075 = vmul.f32 %v4065, %v4073
    %4077 = vrot.lane.b32.xlu0 %v4070, 64
    %v4078 = vpop.permute.xlu0 %4077
    %v4080 = vmul.f32 %v4065, %v4078
    %4082 = vrot.lane.b32.xlu0 %v4080, 32
    %v4083 = vpop.permute.xlu0 %4082
    %v4085 = vadd.f32 %v4075, %v4083
    %v4087 = vrot.slane %v3888, 2
    %v4089 = vmul.f32 %v4069, %v4087
    %4091 = vrot.lane.b32.xlu0 %v4071, 64
    %v4092 = vpop.permute.xlu0 %4091
    %v4094 = vmul.f32 %v4069, %v4092
    %4096 = vrot.lane.b32.xlu0 %v4094, 32
    %v4097 = vpop.permute.xlu0 %4096
    %v4099 = vadd.f32 %v4089, %v4097
    %v4100 = vtanh.pop %v4085
    %4102 = vrot.lane.b32.xlu0 %v4100, 64
    %v4103 = vpop.permute.xlu0 %4102
    %v4105 = vmul.f32 %v4065, %v4103
    %v4106 = vtanh.pop %v4099
    %4108 = vrot.lane.b32.xlu0 %v4106, 64
    %v4109 = vpop.permute.xlu0 %4108
    %v4111 = vmul.f32 %v4069, %v4109
    %v4113 = vrot.slane %v4105, 6
    %v4115 = vadd.f32 %v3908, %v4113
    %v4116 = vadd.f32 %v4115, %v4111
    %v4117 = vmul.f32 %v4116, 0.0625
    %v4119 = vlaneseq
    %v4120 = vshrl.u32 %v4119, 7
    %v4121 = vsub.s32 0, %v4120
    %v4122 = vrot.slane %v257, %v4121
    %4125 = vrot.lane.b32.xlu0 %v4117, 32
    %v4126 = vpop.permute.xlu0 %4125
    %v4127 = vsel %vm299, %v4126, 0
    %4129 = vmatprep.subr.mxu0 0.0
    %4130 = vmatpush1.msra.mxu0 %v253
    %4131 = vmatprep.subr.mxu0 0.0
    %4132 = vmatpush1.msra.mxu0 %v254
    %4133 = vmatprep.subr.mxu0 0.0
    %4134 = vmatpush1.msra.mxu0 %v255
    %4135 = vmatprep.subr.mxu0 0.0
    %4136 = vmatpush1.msra.mxu0 %v256
    %4137 = vmatprep.subr.mxu0 0.0
    %4138 = vmatpush1.msra.mxu0 0.0
    %4139 = vmatprep.subr.mxu0 0.0
    %4140 = vmatpush1.msra.mxu0 0.0
    %4141 = vmatprep.subr.mxu0 0.0
    %4142 = vmatpush1.msra.mxu0 0.0
    %4143 = vmatprep.subr.mxu0 0.0
    %4144 = vmatpush1.msra.mxu0 0.0
    %4145 = vmatprep.subr.mxu0 0.0
    %4146 = vmatpush1.msra.mxu0 0.0
    %4147 = vmatprep.subr.mxu0 0.0
    %4148 = vmatpush1.msra.mxu0 0.0
    %4149 = vmatprep.subr.mxu0 0.0
    %4150 = vmatpush1.msra.mxu0 0.0
    %4151 = vmatprep.subr.mxu0 0.0
    %4152 = vmatpush1.msra.mxu0 0.0
    %4153 = vmatprep.subr.mxu0 0.0
    %4154 = vmatpush1.msra.mxu0 0.0
    %4155 = vmatprep.subr.mxu0 0.0
    %4156 = vmatpush1.msra.mxu0 0.0
    %4157 = vmatprep.subr.mxu0 0.0
    %4158 = vmatpush1.msra.mxu0 0.0
    %4159 = vmatprep.subr.mxu0 0.0
    %4160 = vmatpush1.msra.mxu0 0.0
    %4161 = vmatprep.subr.mxu0 0.0
    %4162 = vmatpush1.msra.mxu0 0.0
    %4163 = vmatprep.subr.mxu0 0.0
    %4164 = vmatpush1.msra.mxu0 0.0
    %4165 = vmatprep.subr.mxu0 0.0
    %4166 = vmatpush1.msra.mxu0 0.0
    %4167 = vmatprep.subr.mxu0 0.0
    %4168 = vmatpush1.msra.mxu0 0.0
    %4169 = vmatprep.subr.mxu0 0.0
    %4170 = vmatpush1.msra.mxu0 0.0
    %4171 = vmatprep.subr.mxu0 0.0
    %4172 = vmatpush1.msra.mxu0 0.0
    %4173 = vmatprep.subr.mxu0 0.0
    %4174 = vmatpush1.msra.mxu0 0.0
    %4175 = vmatprep.subr.mxu0 0.0
    %4176 = vmatpush1.msra.mxu0 0.0
    %4177 = vmatprep.subr.mxu0 0.0
    %4178 = vmatpush1.msra.mxu0 0.0
    %4179 = vmatprep.subr.mxu0 0.0
    %4180 = vmatpush1.msra.mxu0 0.0
    %4181 = vmatprep.subr.mxu0 0.0
    %4182 = vmatpush1.msra.mxu0 0.0
    %4183 = vmatprep.subr.mxu0 0.0
    %4184 = vmatpush1.msra.mxu0 0.0
    %4185 = vmatprep.subr.mxu0 0.0
    %4186 = vmatpush1.msra.mxu0 0.0
    %4187 = vmatprep.subr.mxu0 0.0
    %4188 = vmatpush1.msra.mxu0 0.0
    %4189 = vmatprep.subr.mxu0 0.0
    %4190 = vmatpush1.msra.mxu0 0.0
    %4191 = vmatprep.subr.mxu0 0.0
    %4192 = vmatpush1.msra.mxu0 0.0
    %4193 = vmatprep.mubr.f32.mxu0 0.0
    %4194 = vmatmul.mubr.f32.gmra.mrb[0].mxu0 %v4127
    %v4195 = vpop.f32.mrb[0].mxu0
    %v4196 = vadd.f32 %v4122, %v4195
    %v4197 = vpop.f32.mrb[0].mxu0
    %4198 = vdwg.mxu0
    %v4199 = vmax.f32 %v4196, 0.0
    %v4201 = vlaneseq
    %v4202 = vshrl.u32 %v4201, 7
    %v4203 = vsub.s32 0, %v4202
    %v4204 = vrot.slane %v262, %v4203
    %v4207 = vsel %vm299, %v4199, 0
    %4209 = vmatprep.subr.mxu0 0.0
    %4210 = vmatpush1.msra.mxu0 %v258
    %4211 = vmatprep.subr.mxu0 0.0
    %4212 = vmatpush1.msra.mxu0 %v259
    %4213 = vmatprep.subr.mxu0 0.0
    %4214 = vmatpush1.msra.mxu0 %v260
    %4215 = vmatprep.subr.mxu0 0.0
    %4216 = vmatpush1.msra.mxu0 %v261
    %4217 = vmatprep.subr.mxu0 0.0
    %4218 = vmatpush1.msra.mxu0 0.0
    %4219 = vmatprep.subr.mxu0 0.0
    %4220 = vmatpush1.msra.mxu0 0.0
    %4221 = vmatprep.subr.mxu0 0.0
    %4222 = vmatpush1.msra.mxu0 0.0
    %4223 = vmatprep.subr.mxu0 0.0
    %4224 = vmatpush1.msra.mxu0 0.0
    %4225 = vmatprep.subr.mxu0 0.0
    %4226 = vmatpush1.msra.mxu0 0.0
    %4227 = vmatprep.subr.mxu0 0.0
    %4228 = vmatpush1.msra.mxu0 0.0
    %4229 = vmatprep.subr.mxu0 0.0
    %4230 = vmatpush1.msra.mxu0 0.0
    %4231 = vmatprep.subr.mxu0 0.0
    %4232 = vmatpush1.msra.mxu0 0.0
    %4233 = vmatprep.subr.mxu0 0.0
    %4234 = vmatpush1.msra.mxu0 0.0
    %4235 = vmatprep.subr.mxu0 0.0
    %4236 = vmatpush1.msra.mxu0 0.0
    %4237 = vmatprep.subr.mxu0 0.0
    %4238 = vmatpush1.msra.mxu0 0.0
    %4239 = vmatprep.subr.mxu0 0.0
    %4240 = vmatpush1.msra.mxu0 0.0
    %4241 = vmatprep.subr.mxu0 0.0
    %4242 = vmatpush1.msra.mxu0 0.0
    %4243 = vmatprep.subr.mxu0 0.0
    %4244 = vmatpush1.msra.mxu0 0.0
    %4245 = vmatprep.subr.mxu0 0.0
    %4246 = vmatpush1.msra.mxu0 0.0
    %4247 = vmatprep.subr.mxu0 0.0
    %4248 = vmatpush1.msra.mxu0 0.0
    %4249 = vmatprep.subr.mxu0 0.0
    %4250 = vmatpush1.msra.mxu0 0.0
    %4251 = vmatprep.subr.mxu0 0.0
    %4252 = vmatpush1.msra.mxu0 0.0
    %4253 = vmatprep.subr.mxu0 0.0
    %4254 = vmatpush1.msra.mxu0 0.0
    %4255 = vmatprep.subr.mxu0 0.0
    %4256 = vmatpush1.msra.mxu0 0.0
    %4257 = vmatprep.subr.mxu0 0.0
    %4258 = vmatpush1.msra.mxu0 0.0
    %4259 = vmatprep.subr.mxu0 0.0
    %4260 = vmatpush1.msra.mxu0 0.0
    %4261 = vmatprep.subr.mxu0 0.0
    %4262 = vmatpush1.msra.mxu0 0.0
    %4263 = vmatprep.subr.mxu0 0.0
    %4264 = vmatpush1.msra.mxu0 0.0
    %4265 = vmatprep.subr.mxu0 0.0
    %4266 = vmatpush1.msra.mxu0 0.0
    %4267 = vmatprep.subr.mxu0 0.0
    %4268 = vmatpush1.msra.mxu0 0.0
    %4269 = vmatprep.subr.mxu0 0.0
    %4270 = vmatpush1.msra.mxu0 0.0
    %4271 = vmatprep.subr.mxu0 0.0
    %4272 = vmatpush1.msra.mxu0 0.0
    %4273 = vmatprep.mubr.f32.mxu0 0.0
    %4274 = vmatmul.mubr.f32.gmra.mrb[0].mxu0 %v4207
    %v4275 = vpop.f32.mrb[0].mxu0
    %v4276 = vadd.f32 %v4204, %v4275
    %v4277 = vpop.f32.mrb[0].mxu0
    %4278 = vdwg.mxu0
    %v4279 = vmul.f32 %v4276, 0.5
    %v4280 = vtanh.pop %v4279
    %v4281 = vmul.f32 %v4280, 0.5
    %v4282 = vadd.f32 %v4281, 0.5
    %vm4283 = vcmask 1024
    %4284 = vst.msk [vmem:[%s21] sm:$0x3] %vm4283, %v4282
    // Predicated region
    $region126: #{tpu_custom_call.1} parent=1 // pred_check
      _
    $region127: #{tpu_custom_call.1} parent=1 // pred_check_branch
      %4286 = sbr.rel (0) target = $region129
    $region128: #{tpu_custom_call.1} parent=1 // pred_region
      _
    $region129: #{tpu_custom_call.1} parent=1 // pred_fallthru
      _
    // Predicated region
    $region130: #{tpu_custom_call.1} parent=1 // pred_check
      _
    $region131: #{tpu_custom_call.1} parent=1 // pred_check_branch
      %4288 = sbr.rel (0) target = $region133
    $region132: #{tpu_custom_call.1} parent=1 // pred_region
      _
    $region133: #{tpu_custom_call.1} parent=1 // pred_fallthru
      _
    %4289 = vsyncpa [#allocation5], 1
    %4290 = vsyncpa [#allocation7], 1
    %4291 = vsyncpa [#allocation10], 1
    %4292 = vsyncpa [#allocation13], 1
    %4293 = vsyncpa [#allocation16], 1
    %4294 = vsyncpa [#allocation19], 1

</llo_original>
